<compile_context>
chip_gen: v6e
topology: v6e:2x2x1
jax: 0.10.0
libtpu: 0.0.40
codegen_flags: <defaults>
</compile_context>

<pallas_src>
import functools

import numpy as np
import jax
import jax.numpy as jnp
from jax.experimental import pallas as pl
from jax.experimental.pallas import tpu as pltpu

IN_DIM = 16
MEM_DIM = 32
SEQ_LEN = 8
BATCH = 2
MEM_P = 128  # mem_dim zero-padded to one full 128-lane vreg row


def _round_up(x, m):
    return (x + m - 1) // m * m


# ----------------------------- Pallas kernel --------------------------------
def _tree_gru_kernel(nch_ref, cslot_ref, minpad_ref,             # scalar prefetch (SMEM)
                     x_ref, wx_ref, bx_ref, wrzh_ref, whu_ref,   # VMEM inputs
                     out_ref,                                    # VMEM output
                     state_ref,                                  # VMEM scratch
                     *, tb, max_nodes, max_children):
    three = 3 * MEM_P
    g = pl.program_id(0)
    minpad = minpad_ref[g]          # steps < minpad are padding in EVERY tree of the group

    # Hidden state of every node slot of this group's trees: one (1,128) tile per slot.
    # Zero it so masked/padding reads are well defined (cheap: a few vregs).
    state_ref[...] = jnp.zeros((tb * max_nodes, 1, MEM_P), jnp.float32)

    # All x-side projections (rzx | hx fused, all four biases pre-added) for every
    # node of every tree in the group: ONE MXU matmul with M = tb*max_nodes.
    xproj = jnp.dot(x_ref[...], wx_ref[...],
                    preferred_element_type=jnp.float32) + bx_ref[...]  # (tb*max_nodes, 384)

    # Post-order node loop (inherently serial: parent needs children).  max_nodes is
    # small and static here, so a Python unroll gives the scheduler full visibility.
    # TODO(synk): for deep trees switch to lax.fori_loop(pad, max_nodes) with xproj
    # staged through a VMEM scratch — state already lives in VMEM so the body is
    # spill-free either way.
    for t in range(max_nodes):
        @pl.when(t >= minpad)       # skip steps that are padding for every tree in the group
        def _node(t=t):
            ch_rows, x_rows = [], []
            for b in range(tb):
                row0 = b * max_nodes
                sidx = (g * tb + b) * max_nodes + t
                nch = nch_ref[sidx]
                # Child-sum: one dynamic-row load per (possible) child, masked by the
                # real child count (missing children read slot 0, which is discarded
                # by the select — never multiplied, so stale data is harmless).
                ch_b = jnp.zeros((1, MEM_P), jnp.float32)
                for c in range(max_children):
                    slot = cslot_ref[sidx * max_children + c]
                    crow = state_ref[row0 + slot]                 # single (1,128) load
                    ch_b = ch_b + jnp.where(c < nch, crow, 0.0)
                ch_rows.append(ch_b)
                x_rows.append(xproj[row0 + t:row0 + t + 1, :])    # static row — no gather

            ch = jnp.concatenate(ch_rows, axis=0)                 # (tb, 128)
            xr = jnp.concatenate(x_rows, axis=0)                  # (tb, 384)

            # GRU gates, batched over the tb trees in this group.
            rz = jnp.dot(ch, wrzh_ref[...],
                         preferred_element_type=jnp.float32)      # (tb, 256)
            rzact = jax.nn.sigmoid(xr[:, :2 * MEM_P] + rz)        # fused r|z sigmoid
            r = rzact[:, 0:MEM_P]
            z = rzact[:, MEM_P:2 * MEM_P]
            hp = jnp.tanh(xr[:, 2 * MEM_P:three]
                          + jnp.dot(r * ch, whu_ref[...],
                                    preferred_element_type=jnp.float32))
            h = (1.0 - z) * ch + z * hp                           # (tb, 128); padded lanes stay 0

            for b in range(tb):
                state_ref[b * max_nodes + t] = h[b:b + 1, :]      # single row store

    # Only the root state is consumed downstream: one lane-dense (1,128) store per tree.
    for b in range(tb):
        out_ref[b] = state_ref[(b + 1) * max_nodes - 1]


@functools.lru_cache(maxsize=None)
def _get_fused_call(batch, tb, in_dim, max_nodes, max_children):
    kernel = functools.partial(_tree_gru_kernel, tb=tb, max_nodes=max_nodes,
                               max_children=max_children)
    n_groups = batch // tb

    def x_map(g, nch, cs, mp):
        return (g, 0)

    def const_map(g, nch, cs, mp):
        return (0, 0)

    def out_map(g, nch, cs, mp):
        return (g, 0, 0)

    grid_spec = pltpu.PrefetchScalarGridSpec(
        num_scalar_prefetch=3,
        grid=(n_groups,),
        in_specs=[
            pl.BlockSpec((tb * max_nodes, in_dim), x_map),   # schedule-ordered tokens
            # Resident weights / fused biases (constant index_map).
            # TODO(synk): add pipeline_mode=pl.Buffered(1) on these four if mem_dim /
            # in_dim scale up, to avoid double-buffering constants against v7x's
            # smaller 64 MiB VMEM.
            pl.BlockSpec((in_dim, 3 * MEM_P), const_map),    # fused x-side weights
            pl.BlockSpec((1, 3 * MEM_P), const_map),         # fused biases
            pl.BlockSpec((MEM_P, 2 * MEM_P), const_map),     # lane-padded rzh weights
            pl.BlockSpec((MEM_P, MEM_P), const_map),         # lane-padded hu weights
        ],
        out_specs=pl.BlockSpec((tb, 1, MEM_P), out_map),     # root state only
        scratch_shapes=[pltpu.VMEM((tb * max_nodes, 1, MEM_P), jnp.float32)],
    )

    call = pl.pallas_call(
        kernel,
        grid_spec=grid_spec,
        out_shape=jax.ShapeDtypeStruct((batch, 1, MEM_P), jnp.float32),
        # TODO(synk): on v7x use pltpu.CORE_PARALLEL here (and tb = batch // 2) so both
        # TensorCores take a tree group; plain "parallel" does not shard across cores.
        compiler_params=pltpu.CompilerParams(dimension_semantics=("parallel",)),
    )
    return jax.jit(call)


# ------------------------- host-side tree scheduling -------------------------
class Tree:
    def __init__(self, idx, children=()):
        self.idx = idx
        self.children = list(children)
        self.state = None


def _postorder(tree, acc):
    for c in tree.children:
        _postorder(c, acc)
    acc.append(tree)
    return acc


def build_schedule(trees, seq_len):
    """Flatten trees into a padded post-order schedule.

    Padding nodes are placed at the FRONT so the root of every tree always lands in
    slot max_nodes-1 (static index inside the kernel)."""
    orders = [_postorder(t, []) for t in trees]
    max_children = max(1, max((len(n.children) for o in orders for n in o),
                              default=1))
    max_nodes = _round_up(max(8, max(len(o) for o in orders)), 8)

    n_trees = len(trees)
    nidx = np.zeros((n_trees, max_nodes), np.int32)
    nch = np.zeros((n_trees, max_nodes), np.int32)
    cslot = np.zeros((n_trees, max_nodes, max_children), np.int32)
    pads = np.zeros((n_trees,), np.int32)
    for b, order in enumerate(orders):
        pad = max_nodes - len(order)
        pads[b] = pad
        slot_of = {id(n): pad + i for i, n in enumerate(order)}
        for i, node in enumerate(order):
            s = pad + i
            # No in-kernel bounds checks exist on TPU — validate the schedule here.
            assert 0 <= node.idx < seq_len, "token index out of range"
            assert len(node.children) <= max_children
            nidx[b, s] = node.idx
            nch[b, s] = len(node.children)
            for c, child in enumerate(node.children):
                cslot[b, s, c] = slot_of[id(child)]
    return nidx, nch, cslot, pads, max_nodes, max_children


# --------------------------------- module ------------------------------------
class ChildSumTreeGRUPallas:
    def __init__(self, in_dim, mem_dim, key):
        assert mem_dim <= MEM_P
        self.in_dim = in_dim
        self.mem_dim = mem_dim
        ks = jax.random.split(key, 8)

        def linear(kw, kb, fan_in, fan_out):
            bound = 1.0 / float(fan_in) ** 0.5
            w = jax.random.uniform(kw, (fan_in, fan_out), jnp.float32, -bound, bound)
            b = jax.random.uniform(kb, (1, fan_out), jnp.float32, -bound, bound)
            return w, b

        # stored transposed vs PyTorch: y = x @ W + b
        self.w_rzx, self.b_rzx = linear(ks[0], ks[1], in_dim, 2 * mem_dim)
        self.w_rzh, self.b_rzh = linear(ks[2], ks[3], mem_dim, 2 * mem_dim)
        self.w_hx, self.b_hx = linear(ks[4], ks[5], in_dim, mem_dim)
        self.w_hu, self.b_hu = linear(ks[6], ks[7], mem_dim, mem_dim)

        self._pack_params()

    def _pack_params(self):
        # Padded-lane invariant (lanes >= mem_dim stay EXACTLY 0 through the update):
        #   * wx / bx padded columns are 0          -> xr/xz/xh padded lanes are 0
        #   * wrzh / whu padded rows AND columns 0  -> rz / hu-dot padded lanes are 0
        #   * so ch, hp are 0 in padded lanes; r, z are sigmoid(0)=0.5 there, but
        #     h = (1-z)*ch + z*hp = 0.  Adding a bias inside the h-side matmuls or
        #     non-zero padding would silently corrupt lanes >= mem_dim.
        m, md = self.mem_dim, MEM_P
        w_rzx = np.asarray(self.w_rzx); b_rzx = np.asarray(self.b_rzx)
        w_rzh = np.asarray(self.w_rzh); b_rzh = np.asarray(self.b_rzh)
        w_hx = np.asarray(self.w_hx); b_hx = np.asarray(self.b_hx)
        w_hu = np.asarray(self.w_hu); b_hu = np.asarray(self.b_hu)

        # Fused x-side weights: [r | z | h] blocks, each padded to 128 lanes.
        wx = np.zeros((self.in_dim, 3 * md), np.float32)
        wx[:, 0:m] = w_rzx[:, 0:m]
        wx[:, md:md + m] = w_rzx[:, m:2 * m]
        wx[:, 2 * md:2 * md + m] = w_hx
        # All four biases pre-added into the fused bias.
        bx = np.zeros((1, 3 * md), np.float32)
        bx[:, 0:m] = b_rzx[:, 0:m] + b_rzh[:, 0:m]
        bx[:, md:md + m] = b_rzx[:, m:2 * m] + b_rzh[:, m:2 * m]
        bx[:, 2 * md:2 * md + m] = b_hx + b_hu

        # h-side weights, zero-padded so contraction/result lanes are 128-wide.
        wrzh = np.zeros((md, 2 * md), np.float32)
        wrzh[0:m, 0:m] = w_rzh[:, 0:m]
        wrzh[0:m, md:md + m] = w_rzh[:, m:2 * m]
        whu = np.zeros((md, md), np.float32)
        whu[0:m, 0:m] = w_hu
        assert not wrzh[m:, :].any() and not whu[m:, :].any()
        assert not wrzh[:m, m:md].any() and not whu[:m, m:].any()

        # TODO(synk): optionally store wx/wrzh/whu in bf16 (f32 accumulate) on
        # v6e/v7x once trees are batched at production scale.
        self.wx_p = jnp.asarray(wx)
        self.bx_p = jnp.asarray(bx)
        self.wrzh_p = jnp.asarray(wrzh)
        self.whu_p = jnp.asarray(whu)

    def forward(self, trees, inputs, trees_per_step=None):
        batch, seq_len, in_dim = inputs.shape
        assert in_dim == self.in_dim
        nidx, nch, cslot, pads, max_nodes, max_children = build_schedule(trees, seq_len)

        # Trees processed lock-step within one grid step so the per-node matmuls get
        # M = tb.  On v7x pick trees_per_step = batch // 2 (+ CORE_PARALLEL, see TODO
        # in _get_fused_call) so both TensorCores stay loaded.
        tb = batch if trees_per_step is None else trees_per_step
        assert batch % tb == 0
        n_groups = batch // tb
        minpad = pads.reshape(n_groups, tb).min(axis=1).astype(np.int32)

        # Pre-permute tokens into schedule order so xproj row (b, t) IS node t's
        # projection for tree b (removes the in-kernel gather from the serial chain).
        x_sched = inputs[jnp.arange(batch)[:, None], jnp.asarray(nidx)]
        x_sched = x_sched.reshape(batch * max_nodes, in_dim)

        fused = _get_fused_call(batch, tb, in_dim, max_nodes, max_children)
        roots = fused(jnp.asarray(nch.reshape(-1)),
                      jnp.asarray(cslot.reshape(-1)),
                      jnp.asarray(minpad),
                      x_sched, self.wx_p, self.bx_p, self.wrzh_p, self.whu_p)
        # real hidden dims are lanes [:mem_dim] of the root row
        h_states = roots[:, 0, :self.mem_dim]
        # o_states is never written by the reference module -> stays zero
        o_states = jnp.zeros((batch, seq_len, self.mem_dim), jnp.float32)
        return o_states, h_states


# ----------------------------- pure-JAX reference ----------------------------
def _ref_node_forward(mod, x, child_h):
    child_h_sum = jnp.sum(child_h, axis=0, keepdims=True)
    rz = (x.reshape(1, -1) @ mod.w_rzx + mod.b_rzx
          + child_h_sum @ mod.w_rzh + mod.b_rzh)
    r = jax.nn.sigmoid(rz[:, :mod.mem_dim])
    z = jax.nn.sigmoid(rz[:, mod.mem_dim:])
    hp = jnp.tanh(x.reshape(1, -1) @ mod.w_hx + mod.b_hx
                  + (r * child_h_sum) @ mod.w_hu + mod.b_hu)
    return (1.0 - z) * child_h_sum + z * hp


def _ref_tree(mod, tree, inputs):
    child_states = [_ref_tree(mod, c, inputs) for c in tree.children]
    if not child_states:
        child_h = jnp.zeros((1, mod.mem_dim), jnp.float32)
    else:
        child_h = jnp.concatenate(child_states, axis=0)
    return _ref_node_forward(mod, inputs[tree.idx], child_h)


# --------------------------------- main --------------------------------------
if __name__ == "__main__":
    key = jax.random.PRNGKey(0)
    k_param, k_inp = jax.random.split(key)

    model = ChildSumTreeGRUPallas(IN_DIM, MEM_DIM, k_param)
    inputs = jax.random.normal(k_inp, (BATCH, SEQ_LEN, IN_DIM), jnp.float32)

    # deterministic small trees over the 8 sequence positions
    tree0 = Tree(0, [
        Tree(1),
        Tree(2, [Tree(3), Tree(4)]),
        Tree(5, [Tree(6), Tree(7)]),
    ])
    tree1 = Tree(7, [
        Tree(3, [Tree(0), Tree(1), Tree(2)]),
        Tree(6, [Tree(4), Tree(5)]),
    ])
    trees = [tree0, tree1]

    o_states, h_states = model.forward(trees, inputs)
    o_states = jax.block_until_ready(o_states)
    h_states = jax.block_until_ready(h_states)

    # correctness check against a pure-JAX reference of the same recursion
    ref_h = jnp.concatenate(
        [_ref_tree(model, trees[k], inputs[k]) for k in range(BATCH)], axis=0)
    assert o_states.shape == (BATCH, SEQ_LEN, MEM_DIM)
    assert h_states.shape == (BATCH, MEM_DIM)
    assert jnp.allclose(o_states, 0.0)
    assert jnp.allclose(h_states, ref_h, atol=1e-5, rtol=1e-5)

    print("KERNEL_OK")
</pallas_src>

<mosaic_0001>
module attributes {stable_mosaic.version = 11 : i64} {
  func.func @_tree_gru_kernel(%arg0: i32, %arg1: memref<16xi32, #tpu.memory_space<smem>>, %arg2: memref<48xi32, #tpu.memory_space<smem>>, %arg3: memref<1xi32, #tpu.memory_space<smem>>, %arg4: memref<16x16xf32, #tpu.memory_space<vmem>>, %arg5: memref<16x384xf32, #tpu.memory_space<vmem>>, %arg6: memref<1x384xf32, #tpu.memory_space<vmem>>, %arg7: memref<128x256xf32, #tpu.memory_space<vmem>>, %arg8: memref<128x128xf32, #tpu.memory_space<vmem>>, %arg9: memref<2x1x128xf32, #tpu.memory_space<vmem>>, %arg10: memref<16x1x128xf32, #tpu.memory_space<vmem>>) attributes {dimension_semantics = [#tpu.dimension_semantics<parallel>], iteration_bounds = array<i64: 1>, scalar_prefetch = 3 : i64, scratch_operands = 1 : i64, tpu.core_type = #tpu.core_type<tc>, window_params = [{transform_indices = @transform_0, window_bounds = array<i64: 16, 16>}, {pipeline_mode = #tpu.pipeline_mode<synchronous>, transform_indices = @transform_1, window_bounds = array<i64: 16, 384>}, {pipeline_mode = #tpu.pipeline_mode<synchronous>, transform_indices = @transform_2, window_bounds = array<i64: 1, 384>}, {pipeline_mode = #tpu.pipeline_mode<synchronous>, transform_indices = @transform_3, window_bounds = array<i64: 128, 256>}, {pipeline_mode = #tpu.pipeline_mode<synchronous>, transform_indices = @transform_4, window_bounds = array<i64: 128, 128>}, {transform_indices = @transform_5, window_bounds = array<i64: 2, 1, 128>}]} {
    %0 = arith.index_cast %arg0 : i32 to index
    %1 = memref.load %arg3[%0] : memref<1xi32, #tpu.memory_space<smem>>
    %cst = arith.constant 0.000000e+00 : f32
    %2 = vector.broadcast %cst : f32 to vector<16x1x128xf32>
    %c0 = arith.constant 0 : index
    %c0_0 = arith.constant 0 : index
    %c0_1 = arith.constant 0 : index
    %3 = vector.load %arg10[%c0, %c0_0, %c0_1] : memref<16x1x128xf32, #tpu.memory_space<vmem>>, vector<16x1x128xf32>
    tpu.vector_store %arg10[%c0, %c0_0, %c0_1], %2 {strides = array<i32>} : memref<16x1x128xf32, #tpu.memory_space<vmem>>, vector<16x1x128xf32>,
    %c0_2 = arith.constant 0 : index
    %c0_3 = arith.constant 0 : index
    %4 = vector.load %arg4[%c0_2, %c0_3] : memref<16x16xf32, #tpu.memory_space<vmem>>, vector<16x16xf32>
    %c0_4 = arith.constant 0 : index
    %c0_5 = arith.constant 0 : index
    %5 = vector.load %arg5[%c0_4, %c0_5] : memref<16x384xf32, #tpu.memory_space<vmem>>, vector<16x384xf32>
    %cst_6 = arith.constant dense<0.000000e+00> : vector<16x384xf32>
    %6 = tpu.matmul %4, %5, %cst_6 {dimension_numbers = #tpu.dot_dimension_numbers<[1], [0], [0], [1], [0, 0, 1, 1], [], []>} : vector<16x16xf32>, vector<16x384xf32>, vector<16x384xf32> -> vector<16x384xf32>
    %c0_7 = arith.constant 0 : index
    %c0_8 = arith.constant 0 : index
    %7 = vector.load %arg6[%c0_7, %c0_8] : memref<1x384xf32, #tpu.memory_space<vmem>>, vector<1x384xf32>
    %8 = vector.broadcast %7 : vector<1x384xf32> to vector<16x384xf32>
    %9 = arith.addf %6, %8 : vector<16x384xf32>
    %c0_i32 = arith.constant 0 : i32
    %10 = arith.cmpi sle, %1, %c0_i32 : i32
    %11 = arith.extui %10 : i1 to i32
    %c0_i32_9 = arith.constant 0 : i32
    %12 = arith.cmpi ne, %11, %c0_i32_9 : i32
    scf.if %12 {
      %c2_i32_26 = arith.constant 2 : i32
      %44 = arith.muli %arg0, %c2_i32_26 : i32
      %c0_i32_27 = arith.constant 0 : i32
      %45 = arith.addi %44, %c0_i32_27 : i32
      %c8_i32 = arith.constant 8 : i32
      %46 = arith.muli %45, %c8_i32 : i32
      %c0_i32_28 = arith.constant 0 : i32
      %47 = arith.addi %46, %c0_i32_28 : i32
      %48 = arith.index_cast %47 : i32 to index
      %49 = memref.load %arg1[%48] : memref<16xi32, #tpu.memory_space<smem>>
      %cst_29 = arith.constant 0.000000e+00 : f32
      %50 = vector.broadcast %cst_29 : f32 to vector<1x128xf32>
      %c3_i32_30 = arith.constant 3 : i32
      %51 = arith.muli %47, %c3_i32_30 : i32
      %c0_i32_31 = arith.constant 0 : i32
      %52 = arith.addi %51, %c0_i32_31 : i32
      %53 = arith.index_cast %52 : i32 to index
      %54 = memref.load %arg2[%53] : memref<48xi32, #tpu.memory_space<smem>>
      %c0_i32_32 = arith.constant 0 : i32
      %55 = arith.addi %c0_i32_32, %54 : i32
      %56 = arith.index_cast %55 : i32 to index
      %c0_33 = arith.constant 0 : index
      %c0_34 = arith.constant 0 : index
      %57 = vector.load %arg10[%56, %c0_33, %c0_34] : memref<16x1x128xf32, #tpu.memory_space<vmem>>, vector<1x1x128xf32>
      %58 = vector.shape_cast %57 : vector<1x1x128xf32> to vector<1x128xf32>
      %c0_i32_35 = arith.constant 0 : i32
      %59 = arith.cmpi sgt, %49, %c0_i32_35 : i32
      %cst_36 = arith.constant 0.000000e+00 : f32
      %60 = vector.broadcast %cst_36 : f32 to vector<1x128xf32>
      %61 = arith.select %59, %58, %60 : vector<1x128xf32>
      %62 = arith.addf %50, %61 : vector<1x128xf32>
      %c3_i32_37 = arith.constant 3 : i32
      %63 = arith.muli %47, %c3_i32_37 : i32
      %c1_i32_38 = arith.constant 1 : i32
      %64 = arith.addi %63, %c1_i32_38 : i32
      %65 = arith.index_cast %64 : i32 to index
      %66 = memref.load %arg2[%65] : memref<48xi32, #tpu.memory_space<smem>>
      %c0_i32_39 = arith.constant 0 : i32
      %67 = arith.addi %c0_i32_39, %66 : i32
      %68 = arith.index_cast %67 : i32 to index
      %c0_40 = arith.constant 0 : index
      %c0_41 = arith.constant 0 : index
      %69 = vector.load %arg10[%68, %c0_40, %c0_41] : memref<16x1x128xf32, #tpu.memory_space<vmem>>, vector<1x1x128xf32>
      %70 = vector.shape_cast %69 : vector<1x1x128xf32> to vector<1x128xf32>
      %c1_i32_42 = arith.constant 1 : i32
      %71 = arith.cmpi sgt, %49, %c1_i32_42 : i32
      %cst_43 = arith.constant 0.000000e+00 : f32
      %72 = vector.broadcast %cst_43 : f32 to vector<1x128xf32>
      %73 = arith.select %71, %70, %72 : vector<1x128xf32>
      %74 = arith.addf %62, %73 : vector<1x128xf32>
      %c3_i32_44 = arith.constant 3 : i32
      %75 = arith.muli %47, %c3_i32_44 : i32
      %c2_i32_45 = arith.constant 2 : i32
      %76 = arith.addi %75, %c2_i32_45 : i32
      %77 = arith.index_cast %76 : i32 to index
      %78 = memref.load %arg2[%77] : memref<48xi32, #tpu.memory_space<smem>>
      %c0_i32_46 = arith.constant 0 : i32
      %79 = arith.addi %c0_i32_46, %78 : i32
      %80 = arith.index_cast %79 : i32 to index
      %c0_47 = arith.constant 0 : index
      %c0_48 = arith.constant 0 : index
      %81 = vector.load %arg10[%80, %c0_47, %c0_48] : memref<16x1x128xf32, #tpu.memory_space<vmem>>, vector<1x1x128xf32>
      %82 = vector.shape_cast %81 : vector<1x1x128xf32> to vector<1x128xf32>
      %c2_i32_49 = arith.constant 2 : i32
      %83 = arith.cmpi sgt, %49, %c2_i32_49 : i32
      %cst_50 = arith.constant 0.000000e+00 : f32
      %84 = vector.broadcast %cst_50 : f32 to vector<1x128xf32>
      %85 = arith.select %83, %82, %84 : vector<1x128xf32>
      %86 = arith.addf %74, %85 : vector<1x128xf32>
      %87 = vector.extract_strided_slice %9 {offsets = [0, 0], sizes = [1, 384], strides = [1, 1]} : vector<16x384xf32> to vector<1x384xf32>
      %c2_i32_51 = arith.constant 2 : i32
      %88 = arith.muli %arg0, %c2_i32_51 : i32
      %c1_i32_52 = arith.constant 1 : i32
      %89 = arith.addi %88, %c1_i32_52 : i32
      %c8_i32_53 = arith.constant 8 : i32
      %90 = arith.muli %89, %c8_i32_53 : i32
      %c0_i32_54 = arith.constant 0 : i32
      %91 = arith.addi %90, %c0_i32_54 : i32
      %92 = arith.index_cast %91 : i32 to index
      %93 = memref.load %arg1[%92] : memref<16xi32, #tpu.memory_space<smem>>
      %cst_55 = arith.constant 0.000000e+00 : f32
      %94 = vector.broadcast %cst_55 : f32 to vector<1x128xf32>
      %c3_i32_56 = arith.constant 3 : i32
      %95 = arith.muli %91, %c3_i32_56 : i32
      %c0_i32_57 = arith.constant 0 : i32
      %96 = arith.addi %95, %c0_i32_57 : i32
      %97 = arith.index_cast %96 : i32 to index
      %98 = memref.load %arg2[%97] : memref<48xi32, #tpu.memory_space<smem>>
      %c8_i32_58 = arith.constant 8 : i32
      %99 = arith.addi %c8_i32_58, %98 : i32
      %100 = arith.index_cast %99 : i32 to index
      %c0_59 = arith.constant 0 : index
      %c0_60 = arith.constant 0 : index
      %101 = vector.load %arg10[%100, %c0_59, %c0_60] : memref<16x1x128xf32, #tpu.memory_space<vmem>>, vector<1x1x128xf32>
      %102 = vector.shape_cast %101 : vector<1x1x128xf32> to vector<1x128xf32>
      %c0_i32_61 = arith.constant 0 : i32
      %103 = arith.cmpi sgt, %93, %c0_i32_61 : i32
      %cst_62 = arith.constant 0.000000e+00 : f32
      %104 = vector.broadcast %cst_62 : f32 to vector<1x128xf32>
      %105 = arith.select %103, %102, %104 : vector<1x128xf32>
      %106 = arith.addf %94, %105 : vector<1x128xf32>
      %c3_i32_63 = arith.constant 3 : i32
      %107 = arith.muli %91, %c3_i32_63 : i32
      %c1_i32_64 = arith.constant 1 : i32
      %108 = arith.addi %107, %c1_i32_64 : i32
      %109 = arith.index_cast %108 : i32 to index
      %110 = memref.load %arg2[%109] : memref<48xi32, #tpu.memory_space<smem>>
      %c8_i32_65 = arith.constant 8 : i32
      %111 = arith.addi %c8_i32_65, %110 : i32
      %112 = arith.index_cast %111 : i32 to index
      %c0_66 = arith.constant 0 : index
      %c0_67 = arith.constant 0 : index
      %113 = vector.load %arg10[%112, %c0_66, %c0_67] : memref<16x1x128xf32, #tpu.memory_space<vmem>>, vector<1x1x128xf32>
      %114 = vector.shape_cast %113 : vector<1x1x128xf32> to vector<1x128xf32>
      %c1_i32_68 = arith.constant 1 : i32
      %115 = arith.cmpi sgt, %93, %c1_i32_68 : i32
      %cst_69 = arith.constant 0.000000e+00 : f32
      %116 = vector.broadcast %cst_69 : f32 to vector<1x128xf32>
      %117 = arith.select %115, %114, %116 : vector<1x128xf32>
      %118 = arith.addf %106, %117 : vector<1x128xf32>
      %c3_i32_70 = arith.constant 3 : i32
      %119 = arith.muli %91, %c3_i32_70 : i32
      %c2_i32_71 = arith.constant 2 : i32
      %120 = arith.addi %119, %c2_i32_71 : i32
      %121 = arith.index_cast %120 : i32 to index
      %122 = memref.load %arg2[%121] : memref<48xi32, #tpu.memory_space<smem>>
      %c8_i32_72 = arith.constant 8 : i32
      %123 = arith.addi %c8_i32_72, %122 : i32
      %124 = arith.index_cast %123 : i32 to index
      %c0_73 = arith.constant 0 : index
      %c0_74 = arith.constant 0 : index
      %125 = vector.load %arg10[%124, %c0_73, %c0_74] : memref<16x1x128xf32, #tpu.memory_space<vmem>>, vector<1x1x128xf32>
      %126 = vector.shape_cast %125 : vector<1x1x128xf32> to vector<1x128xf32>
      %c2_i32_75 = arith.constant 2 : i32
      %127 = arith.cmpi sgt, %93, %c2_i32_75 : i32
      %cst_76 = arith.constant 0.000000e+00 : f32
      %128 = vector.broadcast %cst_76 : f32 to vector<1x128xf32>
      %129 = arith.select %127, %126, %128 : vector<1x128xf32>
      %130 = arith.addf %118, %129 : vector<1x128xf32>
      %131 = vector.extract_strided_slice %9 {offsets = [8, 0], sizes = [1, 384], strides = [1, 1]} : vector<16x384xf32> to vector<1x384xf32>
      %132 = tpu.concatenate %86, %130 in 0 : vector<1x128xf32>, vector<1x128xf32> -> vector<2x128xf32>
      %133 = tpu.concatenate %87, %131 in 0 : vector<1x384xf32>, vector<1x384xf32> -> vector<2x384xf32>
      %c0_77 = arith.constant 0 : index
      %c0_78 = arith.constant 0 : index
      %134 = vector.load %arg7[%c0_77, %c0_78] : memref<128x256xf32, #tpu.memory_space<vmem>>, vector<128x256xf32>
      %cst_79 = arith.constant dense<0.000000e+00> : vector<2x256xf32>
      %135 = tpu.matmul %132, %134, %cst_79 {dimension_numbers = #tpu.dot_dimension_numbers<[1], [0], [0], [1], [0, 0, 1, 1], [], []>} : vector<2x128xf32>, vector<128x256xf32>, vector<2x256xf32> -> vector<2x256xf32>
      %136 = vector.extract_strided_slice %133 {offsets = [0, 0], sizes = [2, 256], strides = [1, 1]} : vector<2x384xf32> to vector<2x256xf32>
      %137 = arith.addf %136, %135 : vector<2x256xf32>
      %138 = arith.negf %137 : vector<2x256xf32>
      %139 = math.exp %138 : vector<2x256xf32>
      %cst_80 = arith.constant 1.000000e+00 : f32
      %140 = vector.broadcast %cst_80 : f32 to vector<2x256xf32>
      %141 = arith.addf %140, %139 : vector<2x256xf32>
      %142 = arith.divf %140, %141 : vector<2x256xf32>
      %143 = vector.extract_strided_slice %142 {offsets = [0, 0], sizes = [2, 128], strides = [1, 1]} : vector<2x256xf32> to vector<2x128xf32>
      %144 = vector.extract_strided_slice %142 {offsets = [0, 128], sizes = [2, 128], strides = [1, 1]} : vector<2x256xf32> to vector<2x128xf32>
      %145 = vector.extract_strided_slice %133 {offsets = [0, 256], sizes = [2, 128], strides = [1, 1]} : vector<2x384xf32> to vector<2x128xf32>
      %146 = arith.mulf %143, %132 : vector<2x128xf32>
      %c0_81 = arith.constant 0 : index
      %c0_82 = arith.constant 0 : index
      %147 = vector.load %arg8[%c0_81, %c0_82] : memref<128x128xf32, #tpu.memory_space<vmem>>, vector<128x128xf32>
      %cst_83 = arith.constant dense<0.000000e+00> : vector<2x128xf32>
      %148 = tpu.matmul %146, %147, %cst_83 {dimension_numbers = #tpu.dot_dimension_numbers<[1], [0], [0], [1], [0, 0, 1, 1], [], []>} : vector<2x128xf32>, vector<128x128xf32>, vector<2x128xf32> -> vector<2x128xf32>
      %149 = arith.addf %145, %148 : vector<2x128xf32>
      %150 = math.tanh %149 : vector<2x128xf32>
      %cst_84 = arith.constant 1.000000e+00 : f32
      %151 = vector.broadcast %cst_84 : f32 to vector<2x128xf32>
      %152 = arith.subf %151, %144 : vector<2x128xf32>
      %153 = arith.mulf %152, %132 : vector<2x128xf32>
      %154 = arith.mulf %144, %150 : vector<2x128xf32>
      %155 = arith.addf %153, %154 : vector<2x128xf32>
      %156 = vector.extract_strided_slice %155 {offsets = [0, 0], sizes = [1, 128], strides = [1, 1]} : vector<2x128xf32> to vector<1x128xf32>
      %c0_85 = arith.constant 0 : index
      %c0_86 = arith.constant 0 : index
      %c0_87 = arith.constant 0 : index
      %157 = vector.load %arg10[%c0_85, %c0_86, %c0_87] : memref<16x1x128xf32, #tpu.memory_space<vmem>>, vector<1x1x128xf32>
      %158 = vector.shape_cast %157 : vector<1x1x128xf32> to vector<1x128xf32>
      %159 = vector.shape_cast %156 : vector<1x128xf32> to vector<1x1x128xf32>
      tpu.vector_store %arg10[%c0_85, %c0_86, %c0_87], %159 {strides = array<i32>} : memref<16x1x128xf32, #tpu.memory_space<vmem>>, vector<1x1x128xf32>,
      %160 = vector.extract_strided_slice %155 {offsets = [1, 0], sizes = [1, 128], strides = [1, 1]} : vector<2x128xf32> to vector<1x128xf32>
      %c8 = arith.constant 8 : index
      %c0_88 = arith.constant 0 : index
      %c0_89 = arith.constant 0 : index
      %161 = vector.load %arg10[%c8, %c0_88, %c0_89] : memref<16x1x128xf32, #tpu.memory_space<vmem>>, vector<1x1x128xf32>
      %162 = vector.shape_cast %161 : vector<1x1x128xf32> to vector<1x128xf32>
      %163 = vector.shape_cast %160 : vector<1x128xf32> to vector<1x1x128xf32>
      tpu.vector_store %arg10[%c8, %c0_88, %c0_89], %163 {strides = array<i32>} : memref<16x1x128xf32, #tpu.memory_space<vmem>>, vector<1x1x128xf32>,
    } else {
    }
    %c1_i32 = arith.constant 1 : i32
    %13 = arith.cmpi sle, %1, %c1_i32 : i32
    %14 = arith.extui %13 : i1 to i32
    %c0_i32_10 = arith.constant 0 : i32
    %15 = arith.cmpi ne, %14, %c0_i32_10 : i32
    scf.if %15 {
      %c2_i32_26 = arith.constant 2 : i32
      %44 = arith.muli %arg0, %c2_i32_26 : i32
      %c0_i32_27 = arith.constant 0 : i32
      %45 = arith.addi %44, %c0_i32_27 : i32
      %c8_i32 = arith.constant 8 : i32
      %46 = arith.muli %45, %c8_i32 : i32
      %c1_i32_28 = arith.constant 1 : i32
      %47 = arith.addi %46, %c1_i32_28 : i32
      %48 = arith.index_cast %47 : i32 to index
      %49 = memref.load %arg1[%48] : memref<16xi32, #tpu.memory_space<smem>>
      %cst_29 = arith.constant 0.000000e+00 : f32
      %50 = vector.broadcast %cst_29 : f32 to vector<1x128xf32>
      %c3_i32_30 = arith.constant 3 : i32
      %51 = arith.muli %47, %c3_i32_30 : i32
      %c0_i32_31 = arith.constant 0 : i32
      %52 = arith.addi %51, %c0_i32_31 : i32
      %53 = arith.index_cast %52 : i32 to index
      %54 = memref.load %arg2[%53] : memref<48xi32, #tpu.memory_space<smem>>
      %c0_i32_32 = arith.constant 0 : i32
      %55 = arith.addi %c0_i32_32, %54 : i32
      %56 = arith.index_cast %55 : i32 to index
      %c0_33 = arith.constant 0 : index
      %c0_34 = arith.constant 0 : index
      %57 = vector.load %arg10[%56, %c0_33, %c0_34] : memref<16x1x128xf32, #tpu.memory_space<vmem>>, vector<1x1x128xf32>
      %58 = vector.shape_cast %57 : vector<1x1x128xf32> to vector<1x128xf32>
      %c0_i32_35 = arith.constant 0 : i32
      %59 = arith.cmpi sgt, %49, %c0_i32_35 : i32
      %cst_36 = arith.constant 0.000000e+00 : f32
      %60 = vector.broadcast %cst_36 : f32 to vector<1x128xf32>
      %61 = arith.select %59, %58, %60 : vector<1x128xf32>
      %62 = arith.addf %50, %61 : vector<1x128xf32>
      %c3_i32_37 = arith.constant 3 : i32
      %63 = arith.muli %47, %c3_i32_37 : i32
      %c1_i32_38 = arith.constant 1 : i32
      %64 = arith.addi %63, %c1_i32_38 : i32
      %65 = arith.index_cast %64 : i32 to index
      %66 = memref.load %arg2[%65] : memref<48xi32, #tpu.memory_space<smem>>
      %c0_i32_39 = arith.constant 0 : i32
      %67 = arith.addi %c0_i32_39, %66 : i32
      %68 = arith.index_cast %67 : i32 to index
      %c0_40 = arith.constant 0 : index
      %c0_41 = arith.constant 0 : index
      %69 = vector.load %arg10[%68, %c0_40, %c0_41] : memref<16x1x128xf32, #tpu.memory_space<vmem>>, vector<1x1x128xf32>
      %70 = vector.shape_cast %69 : vector<1x1x128xf32> to vector<1x128xf32>
      %c1_i32_42 = arith.constant 1 : i32
      %71 = arith.cmpi sgt, %49, %c1_i32_42 : i32
      %cst_43 = arith.constant 0.000000e+00 : f32
      %72 = vector.broadcast %cst_43 : f32 to vector<1x128xf32>
      %73 = arith.select %71, %70, %72 : vector<1x128xf32>
      %74 = arith.addf %62, %73 : vector<1x128xf32>
      %c3_i32_44 = arith.constant 3 : i32
      %75 = arith.muli %47, %c3_i32_44 : i32
      %c2_i32_45 = arith.constant 2 : i32
      %76 = arith.addi %75, %c2_i32_45 : i32
      %77 = arith.index_cast %76 : i32 to index
      %78 = memref.load %arg2[%77] : memref<48xi32, #tpu.memory_space<smem>>
      %c0_i32_46 = arith.constant 0 : i32
      %79 = arith.addi %c0_i32_46, %78 : i32
      %80 = arith.index_cast %79 : i32 to index
      %c0_47 = arith.constant 0 : index
      %c0_48 = arith.constant 0 : index
      %81 = vector.load %arg10[%80, %c0_47, %c0_48] : memref<16x1x128xf32, #tpu.memory_space<vmem>>, vector<1x1x128xf32>
      %82 = vector.shape_cast %81 : vector<1x1x128xf32> to vector<1x128xf32>
      %c2_i32_49 = arith.constant 2 : i32
      %83 = arith.cmpi sgt, %49, %c2_i32_49 : i32
      %cst_50 = arith.constant 0.000000e+00 : f32
      %84 = vector.broadcast %cst_50 : f32 to vector<1x128xf32>
      %85 = arith.select %83, %82, %84 : vector<1x128xf32>
      %86 = arith.addf %74, %85 : vector<1x128xf32>
      %87 = vector.extract_strided_slice %9 {offsets = [1, 0], sizes = [1, 384], strides = [1, 1]} : vector<16x384xf32> to vector<1x384xf32>
      %c2_i32_51 = arith.constant 2 : i32
      %88 = arith.muli %arg0, %c2_i32_51 : i32
      %c1_i32_52 = arith.constant 1 : i32
      %89 = arith.addi %88, %c1_i32_52 : i32
      %c8_i32_53 = arith.constant 8 : i32
      %90 = arith.muli %89, %c8_i32_53 : i32
      %c1_i32_54 = arith.constant 1 : i32
      %91 = arith.addi %90, %c1_i32_54 : i32
      %92 = arith.index_cast %91 : i32 to index
      %93 = memref.load %arg1[%92] : memref<16xi32, #tpu.memory_space<smem>>
      %cst_55 = arith.constant 0.000000e+00 : f32
      %94 = vector.broadcast %cst_55 : f32 to vector<1x128xf32>
      %c3_i32_56 = arith.constant 3 : i32
      %95 = arith.muli %91, %c3_i32_56 : i32
      %c0_i32_57 = arith.constant 0 : i32
      %96 = arith.addi %95, %c0_i32_57 : i32
      %97 = arith.index_cast %96 : i32 to index
      %98 = memref.load %arg2[%97] : memref<48xi32, #tpu.memory_space<smem>>
      %c8_i32_58 = arith.constant 8 : i32
      %99 = arith.addi %c8_i32_58, %98 : i32
      %100 = arith.index_cast %99 : i32 to index
      %c0_59 = arith.constant 0 : index
      %c0_60 = arith.constant 0 : index
      %101 = vector.load %arg10[%100, %c0_59, %c0_60] : memref<16x1x128xf32, #tpu.memory_space<vmem>>, vector<1x1x128xf32>
      %102 = vector.shape_cast %101 : vector<1x1x128xf32> to vector<1x128xf32>
      %c0_i32_61 = arith.constant 0 : i32
      %103 = arith.cmpi sgt, %93, %c0_i32_61 : i32
      %cst_62 = arith.constant 0.000000e+00 : f32
      %104 = vector.broadcast %cst_62 : f32 to vector<1x128xf32>
      %105 = arith.select %103, %102, %104 : vector<1x128xf32>
      %106 = arith.addf %94, %105 : vector<1x128xf32>
      %c3_i32_63 = arith.constant 3 : i32
      %107 = arith.muli %91, %c3_i32_63 : i32
      %c1_i32_64 = arith.constant 1 : i32
      %108 = arith.addi %107, %c1_i32_64 : i32
      %109 = arith.index_cast %108 : i32 to index
      %110 = memref.load %arg2[%109] : memref<48xi32, #tpu.memory_space<smem>>
      %c8_i32_65 = arith.constant 8 : i32
      %111 = arith.addi %c8_i32_65, %110 : i32
      %112 = arith.index_cast %111 : i32 to index
      %c0_66 = arith.constant 0 : index
      %c0_67 = arith.constant 0 : index
      %113 = vector.load %arg10[%112, %c0_66, %c0_67] : memref<16x1x128xf32, #tpu.memory_space<vmem>>, vector<1x1x128xf32>
      %114 = vector.shape_cast %113 : vector<1x1x128xf32> to vector<1x128xf32>
      %c1_i32_68 = arith.constant 1 : i32
      %115 = arith.cmpi sgt, %93, %c1_i32_68 : i32
      %cst_69 = arith.constant 0.000000e+00 : f32
      %116 = vector.broadcast %cst_69 : f32 to vector<1x128xf32>
      %117 = arith.select %115, %114, %116 : vector<1x128xf32>
      %118 = arith.addf %106, %117 : vector<1x128xf32>
      %c3_i32_70 = arith.constant 3 : i32
      %119 = arith.muli %91, %c3_i32_70 : i32
      %c2_i32_71 = arith.constant 2 : i32
      %120 = arith.addi %119, %c2_i32_71 : i32
      %121 = arith.index_cast %120 : i32 to index
      %122 = memref.load %arg2[%121] : memref<48xi32, #tpu.memory_space<smem>>
      %c8_i32_72 = arith.constant 8 : i32
      %123 = arith.addi %c8_i32_72, %122 : i32
      %124 = arith.index_cast %123 : i32 to index
      %c0_73 = arith.constant 0 : index
      %c0_74 = arith.constant 0 : index
      %125 = vector.load %arg10[%124, %c0_73, %c0_74] : memref<16x1x128xf32, #tpu.memory_space<vmem>>, vector<1x1x128xf32>
      %126 = vector.shape_cast %125 : vector<1x1x128xf32> to vector<1x128xf32>
      %c2_i32_75 = arith.constant 2 : i32
      %127 = arith.cmpi sgt, %93, %c2_i32_75 : i32
      %cst_76 = arith.constant 0.000000e+00 : f32
      %128 = vector.broadcast %cst_76 : f32 to vector<1x128xf32>
      %129 = arith.select %127, %126, %128 : vector<1x128xf32>
      %130 = arith.addf %118, %129 : vector<1x128xf32>
      %131 = vector.extract_strided_slice %9 {offsets = [9, 0], sizes = [1, 384], strides = [1, 1]} : vector<16x384xf32> to vector<1x384xf32>
      %132 = tpu.concatenate %86, %130 in 0 : vector<1x128xf32>, vector<1x128xf32> -> vector<2x128xf32>
      %133 = tpu.concatenate %87, %131 in 0 : vector<1x384xf32>, vector<1x384xf32> -> vector<2x384xf32>
      %c0_77 = arith.constant 0 : index
      %c0_78 = arith.constant 0 : index
      %134 = vector.load %arg7[%c0_77, %c0_78] : memref<128x256xf32, #tpu.memory_space<vmem>>, vector<128x256xf32>
      %cst_79 = arith.constant dense<0.000000e+00> : vector<2x256xf32>
      %135 = tpu.matmul %132, %134, %cst_79 {dimension_numbers = #tpu.dot_dimension_numbers<[1], [0], [0], [1], [0, 0, 1, 1], [], []>} : vector<2x128xf32>, vector<128x256xf32>, vector<2x256xf32> -> vector<2x256xf32>
      %136 = vector.extract_strided_slice %133 {offsets = [0, 0], sizes = [2, 256], strides = [1, 1]} : vector<2x384xf32> to vector<2x256xf32>
      %137 = arith.addf %136, %135 : vector<2x256xf32>
      %138 = arith.negf %137 : vector<2x256xf32>
      %139 = math.exp %138 : vector<2x256xf32>
      %cst_80 = arith.constant 1.000000e+00 : f32
      %140 = vector.broadcast %cst_80 : f32 to vector<2x256xf32>
      %141 = arith.addf %140, %139 : vector<2x256xf32>
      %142 = arith.divf %140, %141 : vector<2x256xf32>
      %143 = vector.extract_strided_slice %142 {offsets = [0, 0], sizes = [2, 128], strides = [1, 1]} : vector<2x256xf32> to vector<2x128xf32>
      %144 = vector.extract_strided_slice %142 {offsets = [0, 128], sizes = [2, 128], strides = [1, 1]} : vector<2x256xf32> to vector<2x128xf32>
      %145 = vector.extract_strided_slice %133 {offsets = [0, 256], sizes = [2, 128], strides = [1, 1]} : vector<2x384xf32> to vector<2x128xf32>
      %146 = arith.mulf %143, %132 : vector<2x128xf32>
      %c0_81 = arith.constant 0 : index
      %c0_82 = arith.constant 0 : index
      %147 = vector.load %arg8[%c0_81, %c0_82] : memref<128x128xf32, #tpu.memory_space<vmem>>, vector<128x128xf32>
      %cst_83 = arith.constant dense<0.000000e+00> : vector<2x128xf32>
      %148 = tpu.matmul %146, %147, %cst_83 {dimension_numbers = #tpu.dot_dimension_numbers<[1], [0], [0], [1], [0, 0, 1, 1], [], []>} : vector<2x128xf32>, vector<128x128xf32>, vector<2x128xf32> -> vector<2x128xf32>
      %149 = arith.addf %145, %148 : vector<2x128xf32>
      %150 = math.tanh %149 : vector<2x128xf32>
      %cst_84 = arith.constant 1.000000e+00 : f32
      %151 = vector.broadcast %cst_84 : f32 to vector<2x128xf32>
      %152 = arith.subf %151, %144 : vector<2x128xf32>
      %153 = arith.mulf %152, %132 : vector<2x128xf32>
      %154 = arith.mulf %144, %150 : vector<2x128xf32>
      %155 = arith.addf %153, %154 : vector<2x128xf32>
      %156 = vector.extract_strided_slice %155 {offsets = [0, 0], sizes = [1, 128], strides = [1, 1]} : vector<2x128xf32> to vector<1x128xf32>
      %c1_85 = arith.constant 1 : index
      %c0_86 = arith.constant 0 : index
      %c0_87 = arith.constant 0 : index
      %157 = vector.load %arg10[%c1_85, %c0_86, %c0_87] : memref<16x1x128xf32, #tpu.memory_space<vmem>>, vector<1x1x128xf32>
      %158 = vector.shape_cast %157 : vector<1x1x128xf32> to vector<1x128xf32>
      %159 = vector.shape_cast %156 : vector<1x128xf32> to vector<1x1x128xf32>
      tpu.vector_store %arg10[%c1_85, %c0_86, %c0_87], %159 {strides = array<i32>} : memref<16x1x128xf32, #tpu.memory_space<vmem>>, vector<1x1x128xf32>,
      %160 = vector.extract_strided_slice %155 {offsets = [1, 0], sizes = [1, 128], strides = [1, 1]} : vector<2x128xf32> to vector<1x128xf32>
      %c9 = arith.constant 9 : index
      %c0_88 = arith.constant 0 : index
      %c0_89 = arith.constant 0 : index
      %161 = vector.load %arg10[%c9, %c0_88, %c0_89] : memref<16x1x128xf32, #tpu.memory_space<vmem>>, vector<1x1x128xf32>
      %162 = vector.shape_cast %161 : vector<1x1x128xf32> to vector<1x128xf32>
      %163 = vector.shape_cast %160 : vector<1x128xf32> to vector<1x1x128xf32>
      tpu.vector_store %arg10[%c9, %c0_88, %c0_89], %163 {strides = array<i32>} : memref<16x1x128xf32, #tpu.memory_space<vmem>>, vector<1x1x128xf32>,
    } else {
    }
    %c2_i32 = arith.constant 2 : i32
    %16 = arith.cmpi sle, %1, %c2_i32 : i32
    %17 = arith.extui %16 : i1 to i32
    %c0_i32_11 = arith.constant 0 : i32
    %18 = arith.cmpi ne, %17, %c0_i32_11 : i32
    scf.if %18 {
      %c2_i32_26 = arith.constant 2 : i32
      %44 = arith.muli %arg0, %c2_i32_26 : i32
      %c0_i32_27 = arith.constant 0 : i32
      %45 = arith.addi %44, %c0_i32_27 : i32
      %c8_i32 = arith.constant 8 : i32
      %46 = arith.muli %45, %c8_i32 : i32
      %c2_i32_28 = arith.constant 2 : i32
      %47 = arith.addi %46, %c2_i32_28 : i32
      %48 = arith.index_cast %47 : i32 to index
      %49 = memref.load %arg1[%48] : memref<16xi32, #tpu.memory_space<smem>>
      %cst_29 = arith.constant 0.000000e+00 : f32
      %50 = vector.broadcast %cst_29 : f32 to vector<1x128xf32>
      %c3_i32_30 = arith.constant 3 : i32
      %51 = arith.muli %47, %c3_i32_30 : i32
      %c0_i32_31 = arith.constant 0 : i32
      %52 = arith.addi %51, %c0_i32_31 : i32
      %53 = arith.index_cast %52 : i32 to index
      %54 = memref.load %arg2[%53] : memref<48xi32, #tpu.memory_space<smem>>
      %c0_i32_32 = arith.constant 0 : i32
      %55 = arith.addi %c0_i32_32, %54 : i32
      %56 = arith.index_cast %55 : i32 to index
      %c0_33 = arith.constant 0 : index
      %c0_34 = arith.constant 0 : index
      %57 = vector.load %arg10[%56, %c0_33, %c0_34] : memref<16x1x128xf32, #tpu.memory_space<vmem>>, vector<1x1x128xf32>
      %58 = vector.shape_cast %57 : vector<1x1x128xf32> to vector<1x128xf32>
      %c0_i32_35 = arith.constant 0 : i32
      %59 = arith.cmpi sgt, %49, %c0_i32_35 : i32
      %cst_36 = arith.constant 0.000000e+00 : f32
      %60 = vector.broadcast %cst_36 : f32 to vector<1x128xf32>
      %61 = arith.select %59, %58, %60 : vector<1x128xf32>
      %62 = arith.addf %50, %61 : vector<1x128xf32>
      %c3_i32_37 = arith.constant 3 : i32
      %63 = arith.muli %47, %c3_i32_37 : i32
      %c1_i32_38 = arith.constant 1 : i32
      %64 = arith.addi %63, %c1_i32_38 : i32
      %65 = arith.index_cast %64 : i32 to index
      %66 = memref.load %arg2[%65] : memref<48xi32, #tpu.memory_space<smem>>
      %c0_i32_39 = arith.constant 0 : i32
      %67 = arith.addi %c0_i32_39, %66 : i32
      %68 = arith.index_cast %67 : i32 to index
      %c0_40 = arith.constant 0 : index
      %c0_41 = arith.constant 0 : index
      %69 = vector.load %arg10[%68, %c0_40, %c0_41] : memref<16x1x128xf32, #tpu.memory_space<vmem>>, vector<1x1x128xf32>
      %70 = vector.shape_cast %69 : vector<1x1x128xf32> to vector<1x128xf32>
      %c1_i32_42 = arith.constant 1 : i32
      %71 = arith.cmpi sgt, %49, %c1_i32_42 : i32
      %cst_43 = arith.constant 0.000000e+00 : f32
      %72 = vector.broadcast %cst_43 : f32 to vector<1x128xf32>
      %73 = arith.select %71, %70, %72 : vector<1x128xf32>
      %74 = arith.addf %62, %73 : vector<1x128xf32>
      %c3_i32_44 = arith.constant 3 : i32
      %75 = arith.muli %47, %c3_i32_44 : i32
      %c2_i32_45 = arith.constant 2 : i32
      %76 = arith.addi %75, %c2_i32_45 : i32
      %77 = arith.index_cast %76 : i32 to index
      %78 = memref.load %arg2[%77] : memref<48xi32, #tpu.memory_space<smem>>
      %c0_i32_46 = arith.constant 0 : i32
      %79 = arith.addi %c0_i32_46, %78 : i32
      %80 = arith.index_cast %79 : i32 to index
      %c0_47 = arith.constant 0 : index
      %c0_48 = arith.constant 0 : index
      %81 = vector.load %arg10[%80, %c0_47, %c0_48] : memref<16x1x128xf32, #tpu.memory_space<vmem>>, vector<1x1x128xf32>
      %82 = vector.shape_cast %81 : vector<1x1x128xf32> to vector<1x128xf32>
      %c2_i32_49 = arith.constant 2 : i32
      %83 = arith.cmpi sgt, %49, %c2_i32_49 : i32
      %cst_50 = arith.constant 0.000000e+00 : f32
      %84 = vector.broadcast %cst_50 : f32 to vector<1x128xf32>
      %85 = arith.select %83, %82, %84 : vector<1x128xf32>
      %86 = arith.addf %74, %85 : vector<1x128xf32>
      %87 = vector.extract_strided_slice %9 {offsets = [2, 0], sizes = [1, 384], strides = [1, 1]} : vector<16x384xf32> to vector<1x384xf32>
      %c2_i32_51 = arith.constant 2 : i32
      %88 = arith.muli %arg0, %c2_i32_51 : i32
      %c1_i32_52 = arith.constant 1 : i32
      %89 = arith.addi %88, %c1_i32_52 : i32
      %c8_i32_53 = arith.constant 8 : i32
      %90 = arith.muli %89, %c8_i32_53 : i32
      %c2_i32_54 = arith.constant 2 : i32
      %91 = arith.addi %90, %c2_i32_54 : i32
      %92 = arith.index_cast %91 : i32 to index
      %93 = memref.load %arg1[%92] : memref<16xi32, #tpu.memory_space<smem>>
      %cst_55 = arith.constant 0.000000e+00 : f32
      %94 = vector.broadcast %cst_55 : f32 to vector<1x128xf32>
      %c3_i32_56 = arith.constant 3 : i32
      %95 = arith.muli %91, %c3_i32_56 : i32
      %c0_i32_57 = arith.constant 0 : i32
      %96 = arith.addi %95, %c0_i32_57 : i32
      %97 = arith.index_cast %96 : i32 to index
      %98 = memref.load %arg2[%97] : memref<48xi32, #tpu.memory_space<smem>>
      %c8_i32_58 = arith.constant 8 : i32
      %99 = arith.addi %c8_i32_58, %98 : i32
      %100 = arith.index_cast %99 : i32 to index
      %c0_59 = arith.constant 0 : index
      %c0_60 = arith.constant 0 : index
      %101 = vector.load %arg10[%100, %c0_59, %c0_60] : memref<16x1x128xf32, #tpu.memory_space<vmem>>, vector<1x1x128xf32>
      %102 = vector.shape_cast %101 : vector<1x1x128xf32> to vector<1x128xf32>
      %c0_i32_61 = arith.constant 0 : i32
      %103 = arith.cmpi sgt, %93, %c0_i32_61 : i32
      %cst_62 = arith.constant 0.000000e+00 : f32
      %104 = vector.broadcast %cst_62 : f32 to vector<1x128xf32>
      %105 = arith.select %103, %102, %104 : vector<1x128xf32>
      %106 = arith.addf %94, %105 : vector<1x128xf32>
      %c3_i32_63 = arith.constant 3 : i32
      %107 = arith.muli %91, %c3_i32_63 : i32
      %c1_i32_64 = arith.constant 1 : i32
      %108 = arith.addi %107, %c1_i32_64 : i32
      %109 = arith.index_cast %108 : i32 to index
      %110 = memref.load %arg2[%109] : memref<48xi32, #tpu.memory_space<smem>>
      %c8_i32_65 = arith.constant 8 : i32
      %111 = arith.addi %c8_i32_65, %110 : i32
      %112 = arith.index_cast %111 : i32 to index
      %c0_66 = arith.constant 0 : index
      %c0_67 = arith.constant 0 : index
      %113 = vector.load %arg10[%112, %c0_66, %c0_67] : memref<16x1x128xf32, #tpu.memory_space<vmem>>, vector<1x1x128xf32>
      %114 = vector.shape_cast %113 : vector<1x1x128xf32> to vector<1x128xf32>
      %c1_i32_68 = arith.constant 1 : i32
      %115 = arith.cmpi sgt, %93, %c1_i32_68 : i32
      %cst_69 = arith.constant 0.000000e+00 : f32
      %116 = vector.broadcast %cst_69 : f32 to vector<1x128xf32>
      %117 = arith.select %115, %114, %116 : vector<1x128xf32>
      %118 = arith.addf %106, %117 : vector<1x128xf32>
      %c3_i32_70 = arith.constant 3 : i32
      %119 = arith.muli %91, %c3_i32_70 : i32
      %c2_i32_71 = arith.constant 2 : i32
      %120 = arith.addi %119, %c2_i32_71 : i32
      %121 = arith.index_cast %120 : i32 to index
      %122 = memref.load %arg2[%121] : memref<48xi32, #tpu.memory_space<smem>>
      %c8_i32_72 = arith.constant 8 : i32
      %123 = arith.addi %c8_i32_72, %122 : i32
      %124 = arith.index_cast %123 : i32 to index
      %c0_73 = arith.constant 0 : index
      %c0_74 = arith.constant 0 : index
      %125 = vector.load %arg10[%124, %c0_73, %c0_74] : memref<16x1x128xf32, #tpu.memory_space<vmem>>, vector<1x1x128xf32>
      %126 = vector.shape_cast %125 : vector<1x1x128xf32> to vector<1x128xf32>
      %c2_i32_75 = arith.constant 2 : i32
      %127 = arith.cmpi sgt, %93, %c2_i32_75 : i32
      %cst_76 = arith.constant 0.000000e+00 : f32
      %128 = vector.broadcast %cst_76 : f32 to vector<1x128xf32>
      %129 = arith.select %127, %126, %128 : vector<1x128xf32>
      %130 = arith.addf %118, %129 : vector<1x128xf32>
      %131 = vector.extract_strided_slice %9 {offsets = [10, 0], sizes = [1, 384], strides = [1, 1]} : vector<16x384xf32> to vector<1x384xf32>
      %132 = tpu.concatenate %86, %130 in 0 : vector<1x128xf32>, vector<1x128xf32> -> vector<2x128xf32>
      %133 = tpu.concatenate %87, %131 in 0 : vector<1x384xf32>, vector<1x384xf32> -> vector<2x384xf32>
      %c0_77 = arith.constant 0 : index
      %c0_78 = arith.constant 0 : index
      %134 = vector.load %arg7[%c0_77, %c0_78] : memref<128x256xf32, #tpu.memory_space<vmem>>, vector<128x256xf32>
      %cst_79 = arith.constant dense<0.000000e+00> : vector<2x256xf32>
      %135 = tpu.matmul %132, %134, %cst_79 {dimension_numbers = #tpu.dot_dimension_numbers<[1], [0], [0], [1], [0, 0, 1, 1], [], []>} : vector<2x128xf32>, vector<128x256xf32>, vector<2x256xf32> -> vector<2x256xf32>
      %136 = vector.extract_strided_slice %133 {offsets = [0, 0], sizes = [2, 256], strides = [1, 1]} : vector<2x384xf32> to vector<2x256xf32>
      %137 = arith.addf %136, %135 : vector<2x256xf32>
      %138 = arith.negf %137 : vector<2x256xf32>
      %139 = math.exp %138 : vector<2x256xf32>
      %cst_80 = arith.constant 1.000000e+00 : f32
      %140 = vector.broadcast %cst_80 : f32 to vector<2x256xf32>
      %141 = arith.addf %140, %139 : vector<2x256xf32>
      %142 = arith.divf %140, %141 : vector<2x256xf32>
      %143 = vector.extract_strided_slice %142 {offsets = [0, 0], sizes = [2, 128], strides = [1, 1]} : vector<2x256xf32> to vector<2x128xf32>
      %144 = vector.extract_strided_slice %142 {offsets = [0, 128], sizes = [2, 128], strides = [1, 1]} : vector<2x256xf32> to vector<2x128xf32>
      %145 = vector.extract_strided_slice %133 {offsets = [0, 256], sizes = [2, 128], strides = [1, 1]} : vector<2x384xf32> to vector<2x128xf32>
      %146 = arith.mulf %143, %132 : vector<2x128xf32>
      %c0_81 = arith.constant 0 : index
      %c0_82 = arith.constant 0 : index
      %147 = vector.load %arg8[%c0_81, %c0_82] : memref<128x128xf32, #tpu.memory_space<vmem>>, vector<128x128xf32>
      %cst_83 = arith.constant dense<0.000000e+00> : vector<2x128xf32>
      %148 = tpu.matmul %146, %147, %cst_83 {dimension_numbers = #tpu.dot_dimension_numbers<[1], [0], [0], [1], [0, 0, 1, 1], [], []>} : vector<2x128xf32>, vector<128x128xf32>, vector<2x128xf32> -> vector<2x128xf32>
      %149 = arith.addf %145, %148 : vector<2x128xf32>
      %150 = math.tanh %149 : vector<2x128xf32>
      %cst_84 = arith.constant 1.000000e+00 : f32
      %151 = vector.broadcast %cst_84 : f32 to vector<2x128xf32>
      %152 = arith.subf %151, %144 : vector<2x128xf32>
      %153 = arith.mulf %152, %132 : vector<2x128xf32>
      %154 = arith.mulf %144, %150 : vector<2x128xf32>
      %155 = arith.addf %153, %154 : vector<2x128xf32>
      %156 = vector.extract_strided_slice %155 {offsets = [0, 0], sizes = [1, 128], strides = [1, 1]} : vector<2x128xf32> to vector<1x128xf32>
      %c2 = arith.constant 2 : index
      %c0_85 = arith.constant 0 : index
      %c0_86 = arith.constant 0 : index
      %157 = vector.load %arg10[%c2, %c0_85, %c0_86] : memref<16x1x128xf32, #tpu.memory_space<vmem>>, vector<1x1x128xf32>
      %158 = vector.shape_cast %157 : vector<1x1x128xf32> to vector<1x128xf32>
      %159 = vector.shape_cast %156 : vector<1x128xf32> to vector<1x1x128xf32>
      tpu.vector_store %arg10[%c2, %c0_85, %c0_86], %159 {strides = array<i32>} : memref<16x1x128xf32, #tpu.memory_space<vmem>>, vector<1x1x128xf32>,
      %160 = vector.extract_strided_slice %155 {offsets = [1, 0], sizes = [1, 128], strides = [1, 1]} : vector<2x128xf32> to vector<1x128xf32>
      %c10 = arith.constant 10 : index
      %c0_87 = arith.constant 0 : index
      %c0_88 = arith.constant 0 : index
      %161 = vector.load %arg10[%c10, %c0_87, %c0_88] : memref<16x1x128xf32, #tpu.memory_space<vmem>>, vector<1x1x128xf32>
      %162 = vector.shape_cast %161 : vector<1x1x128xf32> to vector<1x128xf32>
      %163 = vector.shape_cast %160 : vector<1x128xf32> to vector<1x1x128xf32>
      tpu.vector_store %arg10[%c10, %c0_87, %c0_88], %163 {strides = array<i32>} : memref<16x1x128xf32, #tpu.memory_space<vmem>>, vector<1x1x128xf32>,
    } else {
    }
    %c3_i32 = arith.constant 3 : i32
    %19 = arith.cmpi sle, %1, %c3_i32 : i32
    %20 = arith.extui %19 : i1 to i32
    %c0_i32_12 = arith.constant 0 : i32
    %21 = arith.cmpi ne, %20, %c0_i32_12 : i32
    scf.if %21 {
      %c2_i32_26 = arith.constant 2 : i32
      %44 = arith.muli %arg0, %c2_i32_26 : i32
      %c0_i32_27 = arith.constant 0 : i32
      %45 = arith.addi %44, %c0_i32_27 : i32
      %c8_i32 = arith.constant 8 : i32
      %46 = arith.muli %45, %c8_i32 : i32
      %c3_i32_28 = arith.constant 3 : i32
      %47 = arith.addi %46, %c3_i32_28 : i32
      %48 = arith.index_cast %47 : i32 to index
      %49 = memref.load %arg1[%48] : memref<16xi32, #tpu.memory_space<smem>>
      %cst_29 = arith.constant 0.000000e+00 : f32
      %50 = vector.broadcast %cst_29 : f32 to vector<1x128xf32>
      %c3_i32_30 = arith.constant 3 : i32
      %51 = arith.muli %47, %c3_i32_30 : i32
      %c0_i32_31 = arith.constant 0 : i32
      %52 = arith.addi %51, %c0_i32_31 : i32
      %53 = arith.index_cast %52 : i32 to index
      %54 = memref.load %arg2[%53] : memref<48xi32, #tpu.memory_space<smem>>
      %c0_i32_32 = arith.constant 0 : i32
      %55 = arith.addi %c0_i32_32, %54 : i32
      %56 = arith.index_cast %55 : i32 to index
      %c0_33 = arith.constant 0 : index
      %c0_34 = arith.constant 0 : index
      %57 = vector.load %arg10[%56, %c0_33, %c0_34] : memref<16x1x128xf32, #tpu.memory_space<vmem>>, vector<1x1x128xf32>
      %58 = vector.shape_cast %57 : vector<1x1x128xf32> to vector<1x128xf32>
      %c0_i32_35 = arith.constant 0 : i32
      %59 = arith.cmpi sgt, %49, %c0_i32_35 : i32
      %cst_36 = arith.constant 0.000000e+00 : f32
      %60 = vector.broadcast %cst_36 : f32 to vector<1x128xf32>
      %61 = arith.select %59, %58, %60 : vector<1x128xf32>
      %62 = arith.addf %50, %61 : vector<1x128xf32>
      %c3_i32_37 = arith.constant 3 : i32
      %63 = arith.muli %47, %c3_i32_37 : i32
      %c1_i32_38 = arith.constant 1 : i32
      %64 = arith.addi %63, %c1_i32_38 : i32
      %65 = arith.index_cast %64 : i32 to index
      %66 = memref.load %arg2[%65] : memref<48xi32, #tpu.memory_space<smem>>
      %c0_i32_39 = arith.constant 0 : i32
      %67 = arith.addi %c0_i32_39, %66 : i32
      %68 = arith.index_cast %67 : i32 to index
      %c0_40 = arith.constant 0 : index
      %c0_41 = arith.constant 0 : index
      %69 = vector.load %arg10[%68, %c0_40, %c0_41] : memref<16x1x128xf32, #tpu.memory_space<vmem>>, vector<1x1x128xf32>
      %70 = vector.shape_cast %69 : vector<1x1x128xf32> to vector<1x128xf32>
      %c1_i32_42 = arith.constant 1 : i32
      %71 = arith.cmpi sgt, %49, %c1_i32_42 : i32
      %cst_43 = arith.constant 0.000000e+00 : f32
      %72 = vector.broadcast %cst_43 : f32 to vector<1x128xf32>
      %73 = arith.select %71, %70, %72 : vector<1x128xf32>
      %74 = arith.addf %62, %73 : vector<1x128xf32>
      %c3_i32_44 = arith.constant 3 : i32
      %75 = arith.muli %47, %c3_i32_44 : i32
      %c2_i32_45 = arith.constant 2 : i32
      %76 = arith.addi %75, %c2_i32_45 : i32
      %77 = arith.index_cast %76 : i32 to index
      %78 = memref.load %arg2[%77] : memref<48xi32, #tpu.memory_space<smem>>
      %c0_i32_46 = arith.constant 0 : i32
      %79 = arith.addi %c0_i32_46, %78 : i32
      %80 = arith.index_cast %79 : i32 to index
      %c0_47 = arith.constant 0 : index
      %c0_48 = arith.constant 0 : index
      %81 = vector.load %arg10[%80, %c0_47, %c0_48] : memref<16x1x128xf32, #tpu.memory_space<vmem>>, vector<1x1x128xf32>
      %82 = vector.shape_cast %81 : vector<1x1x128xf32> to vector<1x128xf32>
      %c2_i32_49 = arith.constant 2 : i32
      %83 = arith.cmpi sgt, %49, %c2_i32_49 : i32
      %cst_50 = arith.constant 0.000000e+00 : f32
      %84 = vector.broadcast %cst_50 : f32 to vector<1x128xf32>
      %85 = arith.select %83, %82, %84 : vector<1x128xf32>
      %86 = arith.addf %74, %85 : vector<1x128xf32>
      %87 = vector.extract_strided_slice %9 {offsets = [3, 0], sizes = [1, 384], strides = [1, 1]} : vector<16x384xf32> to vector<1x384xf32>
      %c2_i32_51 = arith.constant 2 : i32
      %88 = arith.muli %arg0, %c2_i32_51 : i32
      %c1_i32_52 = arith.constant 1 : i32
      %89 = arith.addi %88, %c1_i32_52 : i32
      %c8_i32_53 = arith.constant 8 : i32
      %90 = arith.muli %89, %c8_i32_53 : i32
      %c3_i32_54 = arith.constant 3 : i32
      %91 = arith.addi %90, %c3_i32_54 : i32
      %92 = arith.index_cast %91 : i32 to index
      %93 = memref.load %arg1[%92] : memref<16xi32, #tpu.memory_space<smem>>
      %cst_55 = arith.constant 0.000000e+00 : f32
      %94 = vector.broadcast %cst_55 : f32 to vector<1x128xf32>
      %c3_i32_56 = arith.constant 3 : i32
      %95 = arith.muli %91, %c3_i32_56 : i32
      %c0_i32_57 = arith.constant 0 : i32
      %96 = arith.addi %95, %c0_i32_57 : i32
      %97 = arith.index_cast %96 : i32 to index
      %98 = memref.load %arg2[%97] : memref<48xi32, #tpu.memory_space<smem>>
      %c8_i32_58 = arith.constant 8 : i32
      %99 = arith.addi %c8_i32_58, %98 : i32
      %100 = arith.index_cast %99 : i32 to index
      %c0_59 = arith.constant 0 : index
      %c0_60 = arith.constant 0 : index
      %101 = vector.load %arg10[%100, %c0_59, %c0_60] : memref<16x1x128xf32, #tpu.memory_space<vmem>>, vector<1x1x128xf32>
      %102 = vector.shape_cast %101 : vector<1x1x128xf32> to vector<1x128xf32>
      %c0_i32_61 = arith.constant 0 : i32
      %103 = arith.cmpi sgt, %93, %c0_i32_61 : i32
      %cst_62 = arith.constant 0.000000e+00 : f32
      %104 = vector.broadcast %cst_62 : f32 to vector<1x128xf32>
      %105 = arith.select %103, %102, %104 : vector<1x128xf32>
      %106 = arith.addf %94, %105 : vector<1x128xf32>
      %c3_i32_63 = arith.constant 3 : i32
      %107 = arith.muli %91, %c3_i32_63 : i32
      %c1_i32_64 = arith.constant 1 : i32
      %108 = arith.addi %107, %c1_i32_64 : i32
      %109 = arith.index_cast %108 : i32 to index
      %110 = memref.load %arg2[%109] : memref<48xi32, #tpu.memory_space<smem>>
      %c8_i32_65 = arith.constant 8 : i32
      %111 = arith.addi %c8_i32_65, %110 : i32
      %112 = arith.index_cast %111 : i32 to index
      %c0_66 = arith.constant 0 : index
      %c0_67 = arith.constant 0 : index
      %113 = vector.load %arg10[%112, %c0_66, %c0_67] : memref<16x1x128xf32, #tpu.memory_space<vmem>>, vector<1x1x128xf32>
      %114 = vector.shape_cast %113 : vector<1x1x128xf32> to vector<1x128xf32>
      %c1_i32_68 = arith.constant 1 : i32
      %115 = arith.cmpi sgt, %93, %c1_i32_68 : i32
      %cst_69 = arith.constant 0.000000e+00 : f32
      %116 = vector.broadcast %cst_69 : f32 to vector<1x128xf32>
      %117 = arith.select %115, %114, %116 : vector<1x128xf32>
      %118 = arith.addf %106, %117 : vector<1x128xf32>
      %c3_i32_70 = arith.constant 3 : i32
      %119 = arith.muli %91, %c3_i32_70 : i32
      %c2_i32_71 = arith.constant 2 : i32
      %120 = arith.addi %119, %c2_i32_71 : i32
      %121 = arith.index_cast %120 : i32 to index
      %122 = memref.load %arg2[%121] : memref<48xi32, #tpu.memory_space<smem>>
      %c8_i32_72 = arith.constant 8 : i32
      %123 = arith.addi %c8_i32_72, %122 : i32
      %124 = arith.index_cast %123 : i32 to index
      %c0_73 = arith.constant 0 : index
      %c0_74 = arith.constant 0 : index
      %125 = vector.load %arg10[%124, %c0_73, %c0_74] : memref<16x1x128xf32, #tpu.memory_space<vmem>>, vector<1x1x128xf32>
      %126 = vector.shape_cast %125 : vector<1x1x128xf32> to vector<1x128xf32>
      %c2_i32_75 = arith.constant 2 : i32
      %127 = arith.cmpi sgt, %93, %c2_i32_75 : i32
      %cst_76 = arith.constant 0.000000e+00 : f32
      %128 = vector.broadcast %cst_76 : f32 to vector<1x128xf32>
      %129 = arith.select %127, %126, %128 : vector<1x128xf32>
      %130 = arith.addf %118, %129 : vector<1x128xf32>
      %131 = vector.extract_strided_slice %9 {offsets = [11, 0], sizes = [1, 384], strides = [1, 1]} : vector<16x384xf32> to vector<1x384xf32>
      %132 = tpu.concatenate %86, %130 in 0 : vector<1x128xf32>, vector<1x128xf32> -> vector<2x128xf32>
      %133 = tpu.concatenate %87, %131 in 0 : vector<1x384xf32>, vector<1x384xf32> -> vector<2x384xf32>
      %c0_77 = arith.constant 0 : index
      %c0_78 = arith.constant 0 : index
      %134 = vector.load %arg7[%c0_77, %c0_78] : memref<128x256xf32, #tpu.memory_space<vmem>>, vector<128x256xf32>
      %cst_79 = arith.constant dense<0.000000e+00> : vector<2x256xf32>
      %135 = tpu.matmul %132, %134, %cst_79 {dimension_numbers = #tpu.dot_dimension_numbers<[1], [0], [0], [1], [0, 0, 1, 1], [], []>} : vector<2x128xf32>, vector<128x256xf32>, vector<2x256xf32> -> vector<2x256xf32>
      %136 = vector.extract_strided_slice %133 {offsets = [0, 0], sizes = [2, 256], strides = [1, 1]} : vector<2x384xf32> to vector<2x256xf32>
      %137 = arith.addf %136, %135 : vector<2x256xf32>
      %138 = arith.negf %137 : vector<2x256xf32>
      %139 = math.exp %138 : vector<2x256xf32>
      %cst_80 = arith.constant 1.000000e+00 : f32
      %140 = vector.broadcast %cst_80 : f32 to vector<2x256xf32>
      %141 = arith.addf %140, %139 : vector<2x256xf32>
      %142 = arith.divf %140, %141 : vector<2x256xf32>
      %143 = vector.extract_strided_slice %142 {offsets = [0, 0], sizes = [2, 128], strides = [1, 1]} : vector<2x256xf32> to vector<2x128xf32>
      %144 = vector.extract_strided_slice %142 {offsets = [0, 128], sizes = [2, 128], strides = [1, 1]} : vector<2x256xf32> to vector<2x128xf32>
      %145 = vector.extract_strided_slice %133 {offsets = [0, 256], sizes = [2, 128], strides = [1, 1]} : vector<2x384xf32> to vector<2x128xf32>
      %146 = arith.mulf %143, %132 : vector<2x128xf32>
      %c0_81 = arith.constant 0 : index
      %c0_82 = arith.constant 0 : index
      %147 = vector.load %arg8[%c0_81, %c0_82] : memref<128x128xf32, #tpu.memory_space<vmem>>, vector<128x128xf32>
      %cst_83 = arith.constant dense<0.000000e+00> : vector<2x128xf32>
      %148 = tpu.matmul %146, %147, %cst_83 {dimension_numbers = #tpu.dot_dimension_numbers<[1], [0], [0], [1], [0, 0, 1, 1], [], []>} : vector<2x128xf32>, vector<128x128xf32>, vector<2x128xf32> -> vector<2x128xf32>
      %149 = arith.addf %145, %148 : vector<2x128xf32>
      %150 = math.tanh %149 : vector<2x128xf32>
      %cst_84 = arith.constant 1.000000e+00 : f32
      %151 = vector.broadcast %cst_84 : f32 to vector<2x128xf32>
      %152 = arith.subf %151, %144 : vector<2x128xf32>
      %153 = arith.mulf %152, %132 : vector<2x128xf32>
      %154 = arith.mulf %144, %150 : vector<2x128xf32>
      %155 = arith.addf %153, %154 : vector<2x128xf32>
      %156 = vector.extract_strided_slice %155 {offsets = [0, 0], sizes = [1, 128], strides = [1, 1]} : vector<2x128xf32> to vector<1x128xf32>
      %c3 = arith.constant 3 : index
      %c0_85 = arith.constant 0 : index
      %c0_86 = arith.constant 0 : index
      %157 = vector.load %arg10[%c3, %c0_85, %c0_86] : memref<16x1x128xf32, #tpu.memory_space<vmem>>, vector<1x1x128xf32>
      %158 = vector.shape_cast %157 : vector<1x1x128xf32> to vector<1x128xf32>
      %159 = vector.shape_cast %156 : vector<1x128xf32> to vector<1x1x128xf32>
      tpu.vector_store %arg10[%c3, %c0_85, %c0_86], %159 {strides = array<i32>} : memref<16x1x128xf32, #tpu.memory_space<vmem>>, vector<1x1x128xf32>,
      %160 = vector.extract_strided_slice %155 {offsets = [1, 0], sizes = [1, 128], strides = [1, 1]} : vector<2x128xf32> to vector<1x128xf32>
      %c11 = arith.constant 11 : index
      %c0_87 = arith.constant 0 : index
      %c0_88 = arith.constant 0 : index
      %161 = vector.load %arg10[%c11, %c0_87, %c0_88] : memref<16x1x128xf32, #tpu.memory_space<vmem>>, vector<1x1x128xf32>
      %162 = vector.shape_cast %161 : vector<1x1x128xf32> to vector<1x128xf32>
      %163 = vector.shape_cast %160 : vector<1x128xf32> to vector<1x1x128xf32>
      tpu.vector_store %arg10[%c11, %c0_87, %c0_88], %163 {strides = array<i32>} : memref<16x1x128xf32, #tpu.memory_space<vmem>>, vector<1x1x128xf32>,
    } else {
    }
    %c4_i32 = arith.constant 4 : i32
    %22 = arith.cmpi sle, %1, %c4_i32 : i32
    %23 = arith.extui %22 : i1 to i32
    %c0_i32_13 = arith.constant 0 : i32
    %24 = arith.cmpi ne, %23, %c0_i32_13 : i32
    scf.if %24 {
      %c2_i32_26 = arith.constant 2 : i32
      %44 = arith.muli %arg0, %c2_i32_26 : i32
      %c0_i32_27 = arith.constant 0 : i32
      %45 = arith.addi %44, %c0_i32_27 : i32
      %c8_i32 = arith.constant 8 : i32
      %46 = arith.muli %45, %c8_i32 : i32
      %c4_i32_28 = arith.constant 4 : i32
      %47 = arith.addi %46, %c4_i32_28 : i32
      %48 = arith.index_cast %47 : i32 to index
      %49 = memref.load %arg1[%48] : memref<16xi32, #tpu.memory_space<smem>>
      %cst_29 = arith.constant 0.000000e+00 : f32
      %50 = vector.broadcast %cst_29 : f32 to vector<1x128xf32>
      %c3_i32_30 = arith.constant 3 : i32
      %51 = arith.muli %47, %c3_i32_30 : i32
      %c0_i32_31 = arith.constant 0 : i32
      %52 = arith.addi %51, %c0_i32_31 : i32
      %53 = arith.index_cast %52 : i32 to index
      %54 = memref.load %arg2[%53] : memref<48xi32, #tpu.memory_space<smem>>
      %c0_i32_32 = arith.constant 0 : i32
      %55 = arith.addi %c0_i32_32, %54 : i32
      %56 = arith.index_cast %55 : i32 to index
      %c0_33 = arith.constant 0 : index
      %c0_34 = arith.constant 0 : index
      %57 = vector.load %arg10[%56, %c0_33, %c0_34] : memref<16x1x128xf32, #tpu.memory_space<vmem>>, vector<1x1x128xf32>
      %58 = vector.shape_cast %57 : vector<1x1x128xf32> to vector<1x128xf32>
      %c0_i32_35 = arith.constant 0 : i32
      %59 = arith.cmpi sgt, %49, %c0_i32_35 : i32
      %cst_36 = arith.constant 0.000000e+00 : f32
      %60 = vector.broadcast %cst_36 : f32 to vector<1x128xf32>
      %61 = arith.select %59, %58, %60 : vector<1x128xf32>
      %62 = arith.addf %50, %61 : vector<1x128xf32>
      %c3_i32_37 = arith.constant 3 : i32
      %63 = arith.muli %47, %c3_i32_37 : i32
      %c1_i32_38 = arith.constant 1 : i32
      %64 = arith.addi %63, %c1_i32_38 : i32
      %65 = arith.index_cast %64 : i32 to index
      %66 = memref.load %arg2[%65] : memref<48xi32, #tpu.memory_space<smem>>
      %c0_i32_39 = arith.constant 0 : i32
      %67 = arith.addi %c0_i32_39, %66 : i32
      %68 = arith.index_cast %67 : i32 to index
      %c0_40 = arith.constant 0 : index
      %c0_41 = arith.constant 0 : index
      %69 = vector.load %arg10[%68, %c0_40, %c0_41] : memref<16x1x128xf32, #tpu.memory_space<vmem>>, vector<1x1x128xf32>
      %70 = vector.shape_cast %69 : vector<1x1x128xf32> to vector<1x128xf32>
      %c1_i32_42 = arith.constant 1 : i32
      %71 = arith.cmpi sgt, %49, %c1_i32_42 : i32
      %cst_43 = arith.constant 0.000000e+00 : f32
      %72 = vector.broadcast %cst_43 : f32 to vector<1x128xf32>
      %73 = arith.select %71, %70, %72 : vector<1x128xf32>
      %74 = arith.addf %62, %73 : vector<1x128xf32>
      %c3_i32_44 = arith.constant 3 : i32
      %75 = arith.muli %47, %c3_i32_44 : i32
      %c2_i32_45 = arith.constant 2 : i32
      %76 = arith.addi %75, %c2_i32_45 : i32
      %77 = arith.index_cast %76 : i32 to index
      %78 = memref.load %arg2[%77] : memref<48xi32, #tpu.memory_space<smem>>
      %c0_i32_46 = arith.constant 0 : i32
      %79 = arith.addi %c0_i32_46, %78 : i32
      %80 = arith.index_cast %79 : i32 to index
      %c0_47 = arith.constant 0 : index
      %c0_48 = arith.constant 0 : index
      %81 = vector.load %arg10[%80, %c0_47, %c0_48] : memref<16x1x128xf32, #tpu.memory_space<vmem>>, vector<1x1x128xf32>
      %82 = vector.shape_cast %81 : vector<1x1x128xf32> to vector<1x128xf32>
      %c2_i32_49 = arith.constant 2 : i32
      %83 = arith.cmpi sgt, %49, %c2_i32_49 : i32
      %cst_50 = arith.constant 0.000000e+00 : f32
      %84 = vector.broadcast %cst_50 : f32 to vector<1x128xf32>
      %85 = arith.select %83, %82, %84 : vector<1x128xf32>
      %86 = arith.addf %74, %85 : vector<1x128xf32>
      %87 = vector.extract_strided_slice %9 {offsets = [4, 0], sizes = [1, 384], strides = [1, 1]} : vector<16x384xf32> to vector<1x384xf32>
      %c2_i32_51 = arith.constant 2 : i32
      %88 = arith.muli %arg0, %c2_i32_51 : i32
      %c1_i32_52 = arith.constant 1 : i32
      %89 = arith.addi %88, %c1_i32_52 : i32
      %c8_i32_53 = arith.constant 8 : i32
      %90 = arith.muli %89, %c8_i32_53 : i32
      %c4_i32_54 = arith.constant 4 : i32
      %91 = arith.addi %90, %c4_i32_54 : i32
      %92 = arith.index_cast %91 : i32 to index
      %93 = memref.load %arg1[%92] : memref<16xi32, #tpu.memory_space<smem>>
      %cst_55 = arith.constant 0.000000e+00 : f32
      %94 = vector.broadcast %cst_55 : f32 to vector<1x128xf32>
      %c3_i32_56 = arith.constant 3 : i32
      %95 = arith.muli %91, %c3_i32_56 : i32
      %c0_i32_57 = arith.constant 0 : i32
      %96 = arith.addi %95, %c0_i32_57 : i32
      %97 = arith.index_cast %96 : i32 to index
      %98 = memref.load %arg2[%97] : memref<48xi32, #tpu.memory_space<smem>>
      %c8_i32_58 = arith.constant 8 : i32
      %99 = arith.addi %c8_i32_58, %98 : i32
      %100 = arith.index_cast %99 : i32 to index
      %c0_59 = arith.constant 0 : index
      %c0_60 = arith.constant 0 : index
      %101 = vector.load %arg10[%100, %c0_59, %c0_60] : memref<16x1x128xf32, #tpu.memory_space<vmem>>, vector<1x1x128xf32>
      %102 = vector.shape_cast %101 : vector<1x1x128xf32> to vector<1x128xf32>
      %c0_i32_61 = arith.constant 0 : i32
      %103 = arith.cmpi sgt, %93, %c0_i32_61 : i32
      %cst_62 = arith.constant 0.000000e+00 : f32
      %104 = vector.broadcast %cst_62 : f32 to vector<1x128xf32>
      %105 = arith.select %103, %102, %104 : vector<1x128xf32>
      %106 = arith.addf %94, %105 : vector<1x128xf32>
      %c3_i32_63 = arith.constant 3 : i32
      %107 = arith.muli %91, %c3_i32_63 : i32
      %c1_i32_64 = arith.constant 1 : i32
      %108 = arith.addi %107, %c1_i32_64 : i32
      %109 = arith.index_cast %108 : i32 to index
      %110 = memref.load %arg2[%109] : memref<48xi32, #tpu.memory_space<smem>>
      %c8_i32_65 = arith.constant 8 : i32
      %111 = arith.addi %c8_i32_65, %110 : i32
      %112 = arith.index_cast %111 : i32 to index
      %c0_66 = arith.constant 0 : index
      %c0_67 = arith.constant 0 : index
      %113 = vector.load %arg10[%112, %c0_66, %c0_67] : memref<16x1x128xf32, #tpu.memory_space<vmem>>, vector<1x1x128xf32>
      %114 = vector.shape_cast %113 : vector<1x1x128xf32> to vector<1x128xf32>
      %c1_i32_68 = arith.constant 1 : i32
      %115 = arith.cmpi sgt, %93, %c1_i32_68 : i32
      %cst_69 = arith.constant 0.000000e+00 : f32
      %116 = vector.broadcast %cst_69 : f32 to vector<1x128xf32>
      %117 = arith.select %115, %114, %116 : vector<1x128xf32>
      %118 = arith.addf %106, %117 : vector<1x128xf32>
      %c3_i32_70 = arith.constant 3 : i32
      %119 = arith.muli %91, %c3_i32_70 : i32
      %c2_i32_71 = arith.constant 2 : i32
      %120 = arith.addi %119, %c2_i32_71 : i32
      %121 = arith.index_cast %120 : i32 to index
      %122 = memref.load %arg2[%121] : memref<48xi32, #tpu.memory_space<smem>>
      %c8_i32_72 = arith.constant 8 : i32
      %123 = arith.addi %c8_i32_72, %122 : i32
      %124 = arith.index_cast %123 : i32 to index
      %c0_73 = arith.constant 0 : index
      %c0_74 = arith.constant 0 : index
      %125 = vector.load %arg10[%124, %c0_73, %c0_74] : memref<16x1x128xf32, #tpu.memory_space<vmem>>, vector<1x1x128xf32>
      %126 = vector.shape_cast %125 : vector<1x1x128xf32> to vector<1x128xf32>
      %c2_i32_75 = arith.constant 2 : i32
      %127 = arith.cmpi sgt, %93, %c2_i32_75 : i32
      %cst_76 = arith.constant 0.000000e+00 : f32
      %128 = vector.broadcast %cst_76 : f32 to vector<1x128xf32>
      %129 = arith.select %127, %126, %128 : vector<1x128xf32>
      %130 = arith.addf %118, %129 : vector<1x128xf32>
      %131 = vector.extract_strided_slice %9 {offsets = [12, 0], sizes = [1, 384], strides = [1, 1]} : vector<16x384xf32> to vector<1x384xf32>
      %132 = tpu.concatenate %86, %130 in 0 : vector<1x128xf32>, vector<1x128xf32> -> vector<2x128xf32>
      %133 = tpu.concatenate %87, %131 in 0 : vector<1x384xf32>, vector<1x384xf32> -> vector<2x384xf32>
      %c0_77 = arith.constant 0 : index
      %c0_78 = arith.constant 0 : index
      %134 = vector.load %arg7[%c0_77, %c0_78] : memref<128x256xf32, #tpu.memory_space<vmem>>, vector<128x256xf32>
      %cst_79 = arith.constant dense<0.000000e+00> : vector<2x256xf32>
      %135 = tpu.matmul %132, %134, %cst_79 {dimension_numbers = #tpu.dot_dimension_numbers<[1], [0], [0], [1], [0, 0, 1, 1], [], []>} : vector<2x128xf32>, vector<128x256xf32>, vector<2x256xf32> -> vector<2x256xf32>
      %136 = vector.extract_strided_slice %133 {offsets = [0, 0], sizes = [2, 256], strides = [1, 1]} : vector<2x384xf32> to vector<2x256xf32>
      %137 = arith.addf %136, %135 : vector<2x256xf32>
      %138 = arith.negf %137 : vector<2x256xf32>
      %139 = math.exp %138 : vector<2x256xf32>
      %cst_80 = arith.constant 1.000000e+00 : f32
      %140 = vector.broadcast %cst_80 : f32 to vector<2x256xf32>
      %141 = arith.addf %140, %139 : vector<2x256xf32>
      %142 = arith.divf %140, %141 : vector<2x256xf32>
      %143 = vector.extract_strided_slice %142 {offsets = [0, 0], sizes = [2, 128], strides = [1, 1]} : vector<2x256xf32> to vector<2x128xf32>
      %144 = vector.extract_strided_slice %142 {offsets = [0, 128], sizes = [2, 128], strides = [1, 1]} : vector<2x256xf32> to vector<2x128xf32>
      %145 = vector.extract_strided_slice %133 {offsets = [0, 256], sizes = [2, 128], strides = [1, 1]} : vector<2x384xf32> to vector<2x128xf32>
      %146 = arith.mulf %143, %132 : vector<2x128xf32>
      %c0_81 = arith.constant 0 : index
      %c0_82 = arith.constant 0 : index
      %147 = vector.load %arg8[%c0_81, %c0_82] : memref<128x128xf32, #tpu.memory_space<vmem>>, vector<128x128xf32>
      %cst_83 = arith.constant dense<0.000000e+00> : vector<2x128xf32>
      %148 = tpu.matmul %146, %147, %cst_83 {dimension_numbers = #tpu.dot_dimension_numbers<[1], [0], [0], [1], [0, 0, 1, 1], [], []>} : vector<2x128xf32>, vector<128x128xf32>, vector<2x128xf32> -> vector<2x128xf32>
      %149 = arith.addf %145, %148 : vector<2x128xf32>
      %150 = math.tanh %149 : vector<2x128xf32>
      %cst_84 = arith.constant 1.000000e+00 : f32
      %151 = vector.broadcast %cst_84 : f32 to vector<2x128xf32>
      %152 = arith.subf %151, %144 : vector<2x128xf32>
      %153 = arith.mulf %152, %132 : vector<2x128xf32>
      %154 = arith.mulf %144, %150 : vector<2x128xf32>
      %155 = arith.addf %153, %154 : vector<2x128xf32>
      %156 = vector.extract_strided_slice %155 {offsets = [0, 0], sizes = [1, 128], strides = [1, 1]} : vector<2x128xf32> to vector<1x128xf32>
      %c4 = arith.constant 4 : index
      %c0_85 = arith.constant 0 : index
      %c0_86 = arith.constant 0 : index
      %157 = vector.load %arg10[%c4, %c0_85, %c0_86] : memref<16x1x128xf32, #tpu.memory_space<vmem>>, vector<1x1x128xf32>
      %158 = vector.shape_cast %157 : vector<1x1x128xf32> to vector<1x128xf32>
      %159 = vector.shape_cast %156 : vector<1x128xf32> to vector<1x1x128xf32>
      tpu.vector_store %arg10[%c4, %c0_85, %c0_86], %159 {strides = array<i32>} : memref<16x1x128xf32, #tpu.memory_space<vmem>>, vector<1x1x128xf32>,
      %160 = vector.extract_strided_slice %155 {offsets = [1, 0], sizes = [1, 128], strides = [1, 1]} : vector<2x128xf32> to vector<1x128xf32>
      %c12 = arith.constant 12 : index
      %c0_87 = arith.constant 0 : index
      %c0_88 = arith.constant 0 : index
      %161 = vector.load %arg10[%c12, %c0_87, %c0_88] : memref<16x1x128xf32, #tpu.memory_space<vmem>>, vector<1x1x128xf32>
      %162 = vector.shape_cast %161 : vector<1x1x128xf32> to vector<1x128xf32>
      %163 = vector.shape_cast %160 : vector<1x128xf32> to vector<1x1x128xf32>
      tpu.vector_store %arg10[%c12, %c0_87, %c0_88], %163 {strides = array<i32>} : memref<16x1x128xf32, #tpu.memory_space<vmem>>, vector<1x1x128xf32>,
    } else {
    }
    %c5_i32 = arith.constant 5 : i32
    %25 = arith.cmpi sle, %1, %c5_i32 : i32
    %26 = arith.extui %25 : i1 to i32
    %c0_i32_14 = arith.constant 0 : i32
    %27 = arith.cmpi ne, %26, %c0_i32_14 : i32
    scf.if %27 {
      %c2_i32_26 = arith.constant 2 : i32
      %44 = arith.muli %arg0, %c2_i32_26 : i32
      %c0_i32_27 = arith.constant 0 : i32
      %45 = arith.addi %44, %c0_i32_27 : i32
      %c8_i32 = arith.constant 8 : i32
      %46 = arith.muli %45, %c8_i32 : i32
      %c5_i32_28 = arith.constant 5 : i32
      %47 = arith.addi %46, %c5_i32_28 : i32
      %48 = arith.index_cast %47 : i32 to index
      %49 = memref.load %arg1[%48] : memref<16xi32, #tpu.memory_space<smem>>
      %cst_29 = arith.constant 0.000000e+00 : f32
      %50 = vector.broadcast %cst_29 : f32 to vector<1x128xf32>
      %c3_i32_30 = arith.constant 3 : i32
      %51 = arith.muli %47, %c3_i32_30 : i32
      %c0_i32_31 = arith.constant 0 : i32
      %52 = arith.addi %51, %c0_i32_31 : i32
      %53 = arith.index_cast %52 : i32 to index
      %54 = memref.load %arg2[%53] : memref<48xi32, #tpu.memory_space<smem>>
      %c0_i32_32 = arith.constant 0 : i32
      %55 = arith.addi %c0_i32_32, %54 : i32
      %56 = arith.index_cast %55 : i32 to index
      %c0_33 = arith.constant 0 : index
      %c0_34 = arith.constant 0 : index
      %57 = vector.load %arg10[%56, %c0_33, %c0_34] : memref<16x1x128xf32, #tpu.memory_space<vmem>>, vector<1x1x128xf32>
      %58 = vector.shape_cast %57 : vector<1x1x128xf32> to vector<1x128xf32>
      %c0_i32_35 = arith.constant 0 : i32
      %59 = arith.cmpi sgt, %49, %c0_i32_35 : i32
      %cst_36 = arith.constant 0.000000e+00 : f32
      %60 = vector.broadcast %cst_36 : f32 to vector<1x128xf32>
      %61 = arith.select %59, %58, %60 : vector<1x128xf32>
      %62 = arith.addf %50, %61 : vector<1x128xf32>
      %c3_i32_37 = arith.constant 3 : i32
      %63 = arith.muli %47, %c3_i32_37 : i32
      %c1_i32_38 = arith.constant 1 : i32
      %64 = arith.addi %63, %c1_i32_38 : i32
      %65 = arith.index_cast %64 : i32 to index
      %66 = memref.load %arg2[%65] : memref<48xi32, #tpu.memory_space<smem>>
      %c0_i32_39 = arith.constant 0 : i32
      %67 = arith.addi %c0_i32_39, %66 : i32
      %68 = arith.index_cast %67 : i32 to index
      %c0_40 = arith.constant 0 : index
      %c0_41 = arith.constant 0 : index
      %69 = vector.load %arg10[%68, %c0_40, %c0_41] : memref<16x1x128xf32, #tpu.memory_space<vmem>>, vector<1x1x128xf32>
      %70 = vector.shape_cast %69 : vector<1x1x128xf32> to vector<1x128xf32>
      %c1_i32_42 = arith.constant 1 : i32
      %71 = arith.cmpi sgt, %49, %c1_i32_42 : i32
      %cst_43 = arith.constant 0.000000e+00 : f32
      %72 = vector.broadcast %cst_43 : f32 to vector<1x128xf32>
      %73 = arith.select %71, %70, %72 : vector<1x128xf32>
      %74 = arith.addf %62, %73 : vector<1x128xf32>
      %c3_i32_44 = arith.constant 3 : i32
      %75 = arith.muli %47, %c3_i32_44 : i32
      %c2_i32_45 = arith.constant 2 : i32
      %76 = arith.addi %75, %c2_i32_45 : i32
      %77 = arith.index_cast %76 : i32 to index
      %78 = memref.load %arg2[%77] : memref<48xi32, #tpu.memory_space<smem>>
      %c0_i32_46 = arith.constant 0 : i32
      %79 = arith.addi %c0_i32_46, %78 : i32
      %80 = arith.index_cast %79 : i32 to index
      %c0_47 = arith.constant 0 : index
      %c0_48 = arith.constant 0 : index
      %81 = vector.load %arg10[%80, %c0_47, %c0_48] : memref<16x1x128xf32, #tpu.memory_space<vmem>>, vector<1x1x128xf32>
      %82 = vector.shape_cast %81 : vector<1x1x128xf32> to vector<1x128xf32>
      %c2_i32_49 = arith.constant 2 : i32
      %83 = arith.cmpi sgt, %49, %c2_i32_49 : i32
      %cst_50 = arith.constant 0.000000e+00 : f32
      %84 = vector.broadcast %cst_50 : f32 to vector<1x128xf32>
      %85 = arith.select %83, %82, %84 : vector<1x128xf32>
      %86 = arith.addf %74, %85 : vector<1x128xf32>
      %87 = vector.extract_strided_slice %9 {offsets = [5, 0], sizes = [1, 384], strides = [1, 1]} : vector<16x384xf32> to vector<1x384xf32>
      %c2_i32_51 = arith.constant 2 : i32
      %88 = arith.muli %arg0, %c2_i32_51 : i32
      %c1_i32_52 = arith.constant 1 : i32
      %89 = arith.addi %88, %c1_i32_52 : i32
      %c8_i32_53 = arith.constant 8 : i32
      %90 = arith.muli %89, %c8_i32_53 : i32
      %c5_i32_54 = arith.constant 5 : i32
      %91 = arith.addi %90, %c5_i32_54 : i32
      %92 = arith.index_cast %91 : i32 to index
      %93 = memref.load %arg1[%92] : memref<16xi32, #tpu.memory_space<smem>>
      %cst_55 = arith.constant 0.000000e+00 : f32
      %94 = vector.broadcast %cst_55 : f32 to vector<1x128xf32>
      %c3_i32_56 = arith.constant 3 : i32
      %95 = arith.muli %91, %c3_i32_56 : i32
      %c0_i32_57 = arith.constant 0 : i32
      %96 = arith.addi %95, %c0_i32_57 : i32
      %97 = arith.index_cast %96 : i32 to index
      %98 = memref.load %arg2[%97] : memref<48xi32, #tpu.memory_space<smem>>
      %c8_i32_58 = arith.constant 8 : i32
      %99 = arith.addi %c8_i32_58, %98 : i32
      %100 = arith.index_cast %99 : i32 to index
      %c0_59 = arith.constant 0 : index
      %c0_60 = arith.constant 0 : index
      %101 = vector.load %arg10[%100, %c0_59, %c0_60] : memref<16x1x128xf32, #tpu.memory_space<vmem>>, vector<1x1x128xf32>
      %102 = vector.shape_cast %101 : vector<1x1x128xf32> to vector<1x128xf32>
      %c0_i32_61 = arith.constant 0 : i32
      %103 = arith.cmpi sgt, %93, %c0_i32_61 : i32
      %cst_62 = arith.constant 0.000000e+00 : f32
      %104 = vector.broadcast %cst_62 : f32 to vector<1x128xf32>
      %105 = arith.select %103, %102, %104 : vector<1x128xf32>
      %106 = arith.addf %94, %105 : vector<1x128xf32>
      %c3_i32_63 = arith.constant 3 : i32
      %107 = arith.muli %91, %c3_i32_63 : i32
      %c1_i32_64 = arith.constant 1 : i32
      %108 = arith.addi %107, %c1_i32_64 : i32
      %109 = arith.index_cast %108 : i32 to index
      %110 = memref.load %arg2[%109] : memref<48xi32, #tpu.memory_space<smem>>
      %c8_i32_65 = arith.constant 8 : i32
      %111 = arith.addi %c8_i32_65, %110 : i32
      %112 = arith.index_cast %111 : i32 to index
      %c0_66 = arith.constant 0 : index
      %c0_67 = arith.constant 0 : index
      %113 = vector.load %arg10[%112, %c0_66, %c0_67] : memref<16x1x128xf32, #tpu.memory_space<vmem>>, vector<1x1x128xf32>
      %114 = vector.shape_cast %113 : vector<1x1x128xf32> to vector<1x128xf32>
      %c1_i32_68 = arith.constant 1 : i32
      %115 = arith.cmpi sgt, %93, %c1_i32_68 : i32
      %cst_69 = arith.constant 0.000000e+00 : f32
      %116 = vector.broadcast %cst_69 : f32 to vector<1x128xf32>
      %117 = arith.select %115, %114, %116 : vector<1x128xf32>
      %118 = arith.addf %106, %117 : vector<1x128xf32>
      %c3_i32_70 = arith.constant 3 : i32
      %119 = arith.muli %91, %c3_i32_70 : i32
      %c2_i32_71 = arith.constant 2 : i32
      %120 = arith.addi %119, %c2_i32_71 : i32
      %121 = arith.index_cast %120 : i32 to index
      %122 = memref.load %arg2[%121] : memref<48xi32, #tpu.memory_space<smem>>
      %c8_i32_72 = arith.constant 8 : i32
      %123 = arith.addi %c8_i32_72, %122 : i32
      %124 = arith.index_cast %123 : i32 to index
      %c0_73 = arith.constant 0 : index
      %c0_74 = arith.constant 0 : index
      %125 = vector.load %arg10[%124, %c0_73, %c0_74] : memref<16x1x128xf32, #tpu.memory_space<vmem>>, vector<1x1x128xf32>
      %126 = vector.shape_cast %125 : vector<1x1x128xf32> to vector<1x128xf32>
      %c2_i32_75 = arith.constant 2 : i32
      %127 = arith.cmpi sgt, %93, %c2_i32_75 : i32
      %cst_76 = arith.constant 0.000000e+00 : f32
      %128 = vector.broadcast %cst_76 : f32 to vector<1x128xf32>
      %129 = arith.select %127, %126, %128 : vector<1x128xf32>
      %130 = arith.addf %118, %129 : vector<1x128xf32>
      %131 = vector.extract_strided_slice %9 {offsets = [13, 0], sizes = [1, 384], strides = [1, 1]} : vector<16x384xf32> to vector<1x384xf32>
      %132 = tpu.concatenate %86, %130 in 0 : vector<1x128xf32>, vector<1x128xf32> -> vector<2x128xf32>
      %133 = tpu.concatenate %87, %131 in 0 : vector<1x384xf32>, vector<1x384xf32> -> vector<2x384xf32>
      %c0_77 = arith.constant 0 : index
      %c0_78 = arith.constant 0 : index
      %134 = vector.load %arg7[%c0_77, %c0_78] : memref<128x256xf32, #tpu.memory_space<vmem>>, vector<128x256xf32>
      %cst_79 = arith.constant dense<0.000000e+00> : vector<2x256xf32>
      %135 = tpu.matmul %132, %134, %cst_79 {dimension_numbers = #tpu.dot_dimension_numbers<[1], [0], [0], [1], [0, 0, 1, 1], [], []>} : vector<2x128xf32>, vector<128x256xf32>, vector<2x256xf32> -> vector<2x256xf32>
      %136 = vector.extract_strided_slice %133 {offsets = [0, 0], sizes = [2, 256], strides = [1, 1]} : vector<2x384xf32> to vector<2x256xf32>
      %137 = arith.addf %136, %135 : vector<2x256xf32>
      %138 = arith.negf %137 : vector<2x256xf32>
      %139 = math.exp %138 : vector<2x256xf32>
      %cst_80 = arith.constant 1.000000e+00 : f32
      %140 = vector.broadcast %cst_80 : f32 to vector<2x256xf32>
      %141 = arith.addf %140, %139 : vector<2x256xf32>
      %142 = arith.divf %140, %141 : vector<2x256xf32>
      %143 = vector.extract_strided_slice %142 {offsets = [0, 0], sizes = [2, 128], strides = [1, 1]} : vector<2x256xf32> to vector<2x128xf32>
      %144 = vector.extract_strided_slice %142 {offsets = [0, 128], sizes = [2, 128], strides = [1, 1]} : vector<2x256xf32> to vector<2x128xf32>
      %145 = vector.extract_strided_slice %133 {offsets = [0, 256], sizes = [2, 128], strides = [1, 1]} : vector<2x384xf32> to vector<2x128xf32>
      %146 = arith.mulf %143, %132 : vector<2x128xf32>
      %c0_81 = arith.constant 0 : index
      %c0_82 = arith.constant 0 : index
      %147 = vector.load %arg8[%c0_81, %c0_82] : memref<128x128xf32, #tpu.memory_space<vmem>>, vector<128x128xf32>
      %cst_83 = arith.constant dense<0.000000e+00> : vector<2x128xf32>
      %148 = tpu.matmul %146, %147, %cst_83 {dimension_numbers = #tpu.dot_dimension_numbers<[1], [0], [0], [1], [0, 0, 1, 1], [], []>} : vector<2x128xf32>, vector<128x128xf32>, vector<2x128xf32> -> vector<2x128xf32>
      %149 = arith.addf %145, %148 : vector<2x128xf32>
      %150 = math.tanh %149 : vector<2x128xf32>
      %cst_84 = arith.constant 1.000000e+00 : f32
      %151 = vector.broadcast %cst_84 : f32 to vector<2x128xf32>
      %152 = arith.subf %151, %144 : vector<2x128xf32>
      %153 = arith.mulf %152, %132 : vector<2x128xf32>
      %154 = arith.mulf %144, %150 : vector<2x128xf32>
      %155 = arith.addf %153, %154 : vector<2x128xf32>
      %156 = vector.extract_strided_slice %155 {offsets = [0, 0], sizes = [1, 128], strides = [1, 1]} : vector<2x128xf32> to vector<1x128xf32>
      %c5 = arith.constant 5 : index
      %c0_85 = arith.constant 0 : index
      %c0_86 = arith.constant 0 : index
      %157 = vector.load %arg10[%c5, %c0_85, %c0_86] : memref<16x1x128xf32, #tpu.memory_space<vmem>>, vector<1x1x128xf32>
      %158 = vector.shape_cast %157 : vector<1x1x128xf32> to vector<1x128xf32>
      %159 = vector.shape_cast %156 : vector<1x128xf32> to vector<1x1x128xf32>
      tpu.vector_store %arg10[%c5, %c0_85, %c0_86], %159 {strides = array<i32>} : memref<16x1x128xf32, #tpu.memory_space<vmem>>, vector<1x1x128xf32>,
      %160 = vector.extract_strided_slice %155 {offsets = [1, 0], sizes = [1, 128], strides = [1, 1]} : vector<2x128xf32> to vector<1x128xf32>
      %c13 = arith.constant 13 : index
      %c0_87 = arith.constant 0 : index
      %c0_88 = arith.constant 0 : index
      %161 = vector.load %arg10[%c13, %c0_87, %c0_88] : memref<16x1x128xf32, #tpu.memory_space<vmem>>, vector<1x1x128xf32>
      %162 = vector.shape_cast %161 : vector<1x1x128xf32> to vector<1x128xf32>
      %163 = vector.shape_cast %160 : vector<1x128xf32> to vector<1x1x128xf32>
      tpu.vector_store %arg10[%c13, %c0_87, %c0_88], %163 {strides = array<i32>} : memref<16x1x128xf32, #tpu.memory_space<vmem>>, vector<1x1x128xf32>,
    } else {
    }
    %c6_i32 = arith.constant 6 : i32
    %28 = arith.cmpi sle, %1, %c6_i32 : i32
    %29 = arith.extui %28 : i1 to i32
    %c0_i32_15 = arith.constant 0 : i32
    %30 = arith.cmpi ne, %29, %c0_i32_15 : i32
    scf.if %30 {
      %c2_i32_26 = arith.constant 2 : i32
      %44 = arith.muli %arg0, %c2_i32_26 : i32
      %c0_i32_27 = arith.constant 0 : i32
      %45 = arith.addi %44, %c0_i32_27 : i32
      %c8_i32 = arith.constant 8 : i32
      %46 = arith.muli %45, %c8_i32 : i32
      %c6_i32_28 = arith.constant 6 : i32
      %47 = arith.addi %46, %c6_i32_28 : i32
      %48 = arith.index_cast %47 : i32 to index
      %49 = memref.load %arg1[%48] : memref<16xi32, #tpu.memory_space<smem>>
      %cst_29 = arith.constant 0.000000e+00 : f32
      %50 = vector.broadcast %cst_29 : f32 to vector<1x128xf32>
      %c3_i32_30 = arith.constant 3 : i32
      %51 = arith.muli %47, %c3_i32_30 : i32
      %c0_i32_31 = arith.constant 0 : i32
      %52 = arith.addi %51, %c0_i32_31 : i32
      %53 = arith.index_cast %52 : i32 to index
      %54 = memref.load %arg2[%53] : memref<48xi32, #tpu.memory_space<smem>>
      %c0_i32_32 = arith.constant 0 : i32
      %55 = arith.addi %c0_i32_32, %54 : i32
      %56 = arith.index_cast %55 : i32 to index
      %c0_33 = arith.constant 0 : index
      %c0_34 = arith.constant 0 : index
      %57 = vector.load %arg10[%56, %c0_33, %c0_34] : memref<16x1x128xf32, #tpu.memory_space<vmem>>, vector<1x1x128xf32>
      %58 = vector.shape_cast %57 : vector<1x1x128xf32> to vector<1x128xf32>
      %c0_i32_35 = arith.constant 0 : i32
      %59 = arith.cmpi sgt, %49, %c0_i32_35 : i32
      %cst_36 = arith.constant 0.000000e+00 : f32
      %60 = vector.broadcast %cst_36 : f32 to vector<1x128xf32>
      %61 = arith.select %59, %58, %60 : vector<1x128xf32>
      %62 = arith.addf %50, %61 : vector<1x128xf32>
      %c3_i32_37 = arith.constant 3 : i32
      %63 = arith.muli %47, %c3_i32_37 : i32
      %c1_i32_38 = arith.constant 1 : i32
      %64 = arith.addi %63, %c1_i32_38 : i32
      %65 = arith.index_cast %64 : i32 to index
      %66 = memref.load %arg2[%65] : memref<48xi32, #tpu.memory_space<smem>>
      %c0_i32_39 = arith.constant 0 : i32
      %67 = arith.addi %c0_i32_39, %66 : i32
      %68 = arith.index_cast %67 : i32 to index
      %c0_40 = arith.constant 0 : index
      %c0_41 = arith.constant 0 : index
      %69 = vector.load %arg10[%68, %c0_40, %c0_41] : memref<16x1x128xf32, #tpu.memory_space<vmem>>, vector<1x1x128xf32>
      %70 = vector.shape_cast %69 : vector<1x1x128xf32> to vector<1x128xf32>
      %c1_i32_42 = arith.constant 1 : i32
      %71 = arith.cmpi sgt, %49, %c1_i32_42 : i32
      %cst_43 = arith.constant 0.000000e+00 : f32
      %72 = vector.broadcast %cst_43 : f32 to vector<1x128xf32>
      %73 = arith.select %71, %70, %72 : vector<1x128xf32>
      %74 = arith.addf %62, %73 : vector<1x128xf32>
      %c3_i32_44 = arith.constant 3 : i32
      %75 = arith.muli %47, %c3_i32_44 : i32
      %c2_i32_45 = arith.constant 2 : i32
      %76 = arith.addi %75, %c2_i32_45 : i32
      %77 = arith.index_cast %76 : i32 to index
      %78 = memref.load %arg2[%77] : memref<48xi32, #tpu.memory_space<smem>>
      %c0_i32_46 = arith.constant 0 : i32
      %79 = arith.addi %c0_i32_46, %78 : i32
      %80 = arith.index_cast %79 : i32 to index
      %c0_47 = arith.constant 0 : index
      %c0_48 = arith.constant 0 : index
      %81 = vector.load %arg10[%80, %c0_47, %c0_48] : memref<16x1x128xf32, #tpu.memory_space<vmem>>, vector<1x1x128xf32>
      %82 = vector.shape_cast %81 : vector<1x1x128xf32> to vector<1x128xf32>
      %c2_i32_49 = arith.constant 2 : i32
      %83 = arith.cmpi sgt, %49, %c2_i32_49 : i32
      %cst_50 = arith.constant 0.000000e+00 : f32
      %84 = vector.broadcast %cst_50 : f32 to vector<1x128xf32>
      %85 = arith.select %83, %82, %84 : vector<1x128xf32>
      %86 = arith.addf %74, %85 : vector<1x128xf32>
      %87 = vector.extract_strided_slice %9 {offsets = [6, 0], sizes = [1, 384], strides = [1, 1]} : vector<16x384xf32> to vector<1x384xf32>
      %c2_i32_51 = arith.constant 2 : i32
      %88 = arith.muli %arg0, %c2_i32_51 : i32
      %c1_i32_52 = arith.constant 1 : i32
      %89 = arith.addi %88, %c1_i32_52 : i32
      %c8_i32_53 = arith.constant 8 : i32
      %90 = arith.muli %89, %c8_i32_53 : i32
      %c6_i32_54 = arith.constant 6 : i32
      %91 = arith.addi %90, %c6_i32_54 : i32
      %92 = arith.index_cast %91 : i32 to index
      %93 = memref.load %arg1[%92] : memref<16xi32, #tpu.memory_space<smem>>
      %cst_55 = arith.constant 0.000000e+00 : f32
      %94 = vector.broadcast %cst_55 : f32 to vector<1x128xf32>
      %c3_i32_56 = arith.constant 3 : i32
      %95 = arith.muli %91, %c3_i32_56 : i32
      %c0_i32_57 = arith.constant 0 : i32
      %96 = arith.addi %95, %c0_i32_57 : i32
      %97 = arith.index_cast %96 : i32 to index
      %98 = memref.load %arg2[%97] : memref<48xi32, #tpu.memory_space<smem>>
      %c8_i32_58 = arith.constant 8 : i32
      %99 = arith.addi %c8_i32_58, %98 : i32
      %100 = arith.index_cast %99 : i32 to index
      %c0_59 = arith.constant 0 : index
      %c0_60 = arith.constant 0 : index
      %101 = vector.load %arg10[%100, %c0_59, %c0_60] : memref<16x1x128xf32, #tpu.memory_space<vmem>>, vector<1x1x128xf32>
      %102 = vector.shape_cast %101 : vector<1x1x128xf32> to vector<1x128xf32>
      %c0_i32_61 = arith.constant 0 : i32
      %103 = arith.cmpi sgt, %93, %c0_i32_61 : i32
      %cst_62 = arith.constant 0.000000e+00 : f32
      %104 = vector.broadcast %cst_62 : f32 to vector<1x128xf32>
      %105 = arith.select %103, %102, %104 : vector<1x128xf32>
      %106 = arith.addf %94, %105 : vector<1x128xf32>
      %c3_i32_63 = arith.constant 3 : i32
      %107 = arith.muli %91, %c3_i32_63 : i32
      %c1_i32_64 = arith.constant 1 : i32
      %108 = arith.addi %107, %c1_i32_64 : i32
      %109 = arith.index_cast %108 : i32 to index
      %110 = memref.load %arg2[%109] : memref<48xi32, #tpu.memory_space<smem>>
      %c8_i32_65 = arith.constant 8 : i32
      %111 = arith.addi %c8_i32_65, %110 : i32
      %112 = arith.index_cast %111 : i32 to index
      %c0_66 = arith.constant 0 : index
      %c0_67 = arith.constant 0 : index
      %113 = vector.load %arg10[%112, %c0_66, %c0_67] : memref<16x1x128xf32, #tpu.memory_space<vmem>>, vector<1x1x128xf32>
      %114 = vector.shape_cast %113 : vector<1x1x128xf32> to vector<1x128xf32>
      %c1_i32_68 = arith.constant 1 : i32
      %115 = arith.cmpi sgt, %93, %c1_i32_68 : i32
      %cst_69 = arith.constant 0.000000e+00 : f32
      %116 = vector.broadcast %cst_69 : f32 to vector<1x128xf32>
      %117 = arith.select %115, %114, %116 : vector<1x128xf32>
      %118 = arith.addf %106, %117 : vector<1x128xf32>
      %c3_i32_70 = arith.constant 3 : i32
      %119 = arith.muli %91, %c3_i32_70 : i32
      %c2_i32_71 = arith.constant 2 : i32
      %120 = arith.addi %119, %c2_i32_71 : i32
      %121 = arith.index_cast %120 : i32 to index
      %122 = memref.load %arg2[%121] : memref<48xi32, #tpu.memory_space<smem>>
      %c8_i32_72 = arith.constant 8 : i32
      %123 = arith.addi %c8_i32_72, %122 : i32
      %124 = arith.index_cast %123 : i32 to index
      %c0_73 = arith.constant 0 : index
      %c0_74 = arith.constant 0 : index
      %125 = vector.load %arg10[%124, %c0_73, %c0_74] : memref<16x1x128xf32, #tpu.memory_space<vmem>>, vector<1x1x128xf32>
      %126 = vector.shape_cast %125 : vector<1x1x128xf32> to vector<1x128xf32>
      %c2_i32_75 = arith.constant 2 : i32
      %127 = arith.cmpi sgt, %93, %c2_i32_75 : i32
      %cst_76 = arith.constant 0.000000e+00 : f32
      %128 = vector.broadcast %cst_76 : f32 to vector<1x128xf32>
      %129 = arith.select %127, %126, %128 : vector<1x128xf32>
      %130 = arith.addf %118, %129 : vector<1x128xf32>
      %131 = vector.extract_strided_slice %9 {offsets = [14, 0], sizes = [1, 384], strides = [1, 1]} : vector<16x384xf32> to vector<1x384xf32>
      %132 = tpu.concatenate %86, %130 in 0 : vector<1x128xf32>, vector<1x128xf32> -> vector<2x128xf32>
      %133 = tpu.concatenate %87, %131 in 0 : vector<1x384xf32>, vector<1x384xf32> -> vector<2x384xf32>
      %c0_77 = arith.constant 0 : index
      %c0_78 = arith.constant 0 : index
      %134 = vector.load %arg7[%c0_77, %c0_78] : memref<128x256xf32, #tpu.memory_space<vmem>>, vector<128x256xf32>
      %cst_79 = arith.constant dense<0.000000e+00> : vector<2x256xf32>
      %135 = tpu.matmul %132, %134, %cst_79 {dimension_numbers = #tpu.dot_dimension_numbers<[1], [0], [0], [1], [0, 0, 1, 1], [], []>} : vector<2x128xf32>, vector<128x256xf32>, vector<2x256xf32> -> vector<2x256xf32>
      %136 = vector.extract_strided_slice %133 {offsets = [0, 0], sizes = [2, 256], strides = [1, 1]} : vector<2x384xf32> to vector<2x256xf32>
      %137 = arith.addf %136, %135 : vector<2x256xf32>
      %138 = arith.negf %137 : vector<2x256xf32>
      %139 = math.exp %138 : vector<2x256xf32>
      %cst_80 = arith.constant 1.000000e+00 : f32
      %140 = vector.broadcast %cst_80 : f32 to vector<2x256xf32>
      %141 = arith.addf %140, %139 : vector<2x256xf32>
      %142 = arith.divf %140, %141 : vector<2x256xf32>
      %143 = vector.extract_strided_slice %142 {offsets = [0, 0], sizes = [2, 128], strides = [1, 1]} : vector<2x256xf32> to vector<2x128xf32>
      %144 = vector.extract_strided_slice %142 {offsets = [0, 128], sizes = [2, 128], strides = [1, 1]} : vector<2x256xf32> to vector<2x128xf32>
      %145 = vector.extract_strided_slice %133 {offsets = [0, 256], sizes = [2, 128], strides = [1, 1]} : vector<2x384xf32> to vector<2x128xf32>
      %146 = arith.mulf %143, %132 : vector<2x128xf32>
      %c0_81 = arith.constant 0 : index
      %c0_82 = arith.constant 0 : index
      %147 = vector.load %arg8[%c0_81, %c0_82] : memref<128x128xf32, #tpu.memory_space<vmem>>, vector<128x128xf32>
      %cst_83 = arith.constant dense<0.000000e+00> : vector<2x128xf32>
      %148 = tpu.matmul %146, %147, %cst_83 {dimension_numbers = #tpu.dot_dimension_numbers<[1], [0], [0], [1], [0, 0, 1, 1], [], []>} : vector<2x128xf32>, vector<128x128xf32>, vector<2x128xf32> -> vector<2x128xf32>
      %149 = arith.addf %145, %148 : vector<2x128xf32>
      %150 = math.tanh %149 : vector<2x128xf32>
      %cst_84 = arith.constant 1.000000e+00 : f32
      %151 = vector.broadcast %cst_84 : f32 to vector<2x128xf32>
      %152 = arith.subf %151, %144 : vector<2x128xf32>
      %153 = arith.mulf %152, %132 : vector<2x128xf32>
      %154 = arith.mulf %144, %150 : vector<2x128xf32>
      %155 = arith.addf %153, %154 : vector<2x128xf32>
      %156 = vector.extract_strided_slice %155 {offsets = [0, 0], sizes = [1, 128], strides = [1, 1]} : vector<2x128xf32> to vector<1x128xf32>
      %c6 = arith.constant 6 : index
      %c0_85 = arith.constant 0 : index
      %c0_86 = arith.constant 0 : index
      %157 = vector.load %arg10[%c6, %c0_85, %c0_86] : memref<16x1x128xf32, #tpu.memory_space<vmem>>, vector<1x1x128xf32>
      %158 = vector.shape_cast %157 : vector<1x1x128xf32> to vector<1x128xf32>
      %159 = vector.shape_cast %156 : vector<1x128xf32> to vector<1x1x128xf32>
      tpu.vector_store %arg10[%c6, %c0_85, %c0_86], %159 {strides = array<i32>} : memref<16x1x128xf32, #tpu.memory_space<vmem>>, vector<1x1x128xf32>,
      %160 = vector.extract_strided_slice %155 {offsets = [1, 0], sizes = [1, 128], strides = [1, 1]} : vector<2x128xf32> to vector<1x128xf32>
      %c14 = arith.constant 14 : index
      %c0_87 = arith.constant 0 : index
      %c0_88 = arith.constant 0 : index
      %161 = vector.load %arg10[%c14, %c0_87, %c0_88] : memref<16x1x128xf32, #tpu.memory_space<vmem>>, vector<1x1x128xf32>
      %162 = vector.shape_cast %161 : vector<1x1x128xf32> to vector<1x128xf32>
      %163 = vector.shape_cast %160 : vector<1x128xf32> to vector<1x1x128xf32>
      tpu.vector_store %arg10[%c14, %c0_87, %c0_88], %163 {strides = array<i32>} : memref<16x1x128xf32, #tpu.memory_space<vmem>>, vector<1x1x128xf32>,
    } else {
    }
    %c7_i32 = arith.constant 7 : i32
    %31 = arith.cmpi sle, %1, %c7_i32 : i32
    %32 = arith.extui %31 : i1 to i32
    %c0_i32_16 = arith.constant 0 : i32
    %33 = arith.cmpi ne, %32, %c0_i32_16 : i32
    scf.if %33 {
      %c2_i32_26 = arith.constant 2 : i32
      %44 = arith.muli %arg0, %c2_i32_26 : i32
      %c0_i32_27 = arith.constant 0 : i32
      %45 = arith.addi %44, %c0_i32_27 : i32
      %c8_i32 = arith.constant 8 : i32
      %46 = arith.muli %45, %c8_i32 : i32
      %c7_i32_28 = arith.constant 7 : i32
      %47 = arith.addi %46, %c7_i32_28 : i32
      %48 = arith.index_cast %47 : i32 to index
      %49 = memref.load %arg1[%48] : memref<16xi32, #tpu.memory_space<smem>>
      %cst_29 = arith.constant 0.000000e+00 : f32
      %50 = vector.broadcast %cst_29 : f32 to vector<1x128xf32>
      %c3_i32_30 = arith.constant 3 : i32
      %51 = arith.muli %47, %c3_i32_30 : i32
      %c0_i32_31 = arith.constant 0 : i32
      %52 = arith.addi %51, %c0_i32_31 : i32
      %53 = arith.index_cast %52 : i32 to index
      %54 = memref.load %arg2[%53] : memref<48xi32, #tpu.memory_space<smem>>
      %c0_i32_32 = arith.constant 0 : i32
      %55 = arith.addi %c0_i32_32, %54 : i32
      %56 = arith.index_cast %55 : i32 to index
      %c0_33 = arith.constant 0 : index
      %c0_34 = arith.constant 0 : index
      %57 = vector.load %arg10[%56, %c0_33, %c0_34] : memref<16x1x128xf32, #tpu.memory_space<vmem>>, vector<1x1x128xf32>
      %58 = vector.shape_cast %57 : vector<1x1x128xf32> to vector<1x128xf32>
      %c0_i32_35 = arith.constant 0 : i32
      %59 = arith.cmpi sgt, %49, %c0_i32_35 : i32
      %cst_36 = arith.constant 0.000000e+00 : f32
      %60 = vector.broadcast %cst_36 : f32 to vector<1x128xf32>
      %61 = arith.select %59, %58, %60 : vector<1x128xf32>
      %62 = arith.addf %50, %61 : vector<1x128xf32>
      %c3_i32_37 = arith.constant 3 : i32
      %63 = arith.muli %47, %c3_i32_37 : i32
      %c1_i32_38 = arith.constant 1 : i32
      %64 = arith.addi %63, %c1_i32_38 : i32
      %65 = arith.index_cast %64 : i32 to index
      %66 = memref.load %arg2[%65] : memref<48xi32, #tpu.memory_space<smem>>
      %c0_i32_39 = arith.constant 0 : i32
      %67 = arith.addi %c0_i32_39, %66 : i32
      %68 = arith.index_cast %67 : i32 to index
      %c0_40 = arith.constant 0 : index
      %c0_41 = arith.constant 0 : index
      %69 = vector.load %arg10[%68, %c0_40, %c0_41] : memref<16x1x128xf32, #tpu.memory_space<vmem>>, vector<1x1x128xf32>
      %70 = vector.shape_cast %69 : vector<1x1x128xf32> to vector<1x128xf32>
      %c1_i32_42 = arith.constant 1 : i32
      %71 = arith.cmpi sgt, %49, %c1_i32_42 : i32
      %cst_43 = arith.constant 0.000000e+00 : f32
      %72 = vector.broadcast %cst_43 : f32 to vector<1x128xf32>
      %73 = arith.select %71, %70, %72 : vector<1x128xf32>
      %74 = arith.addf %62, %73 : vector<1x128xf32>
      %c3_i32_44 = arith.constant 3 : i32
      %75 = arith.muli %47, %c3_i32_44 : i32
      %c2_i32_45 = arith.constant 2 : i32
      %76 = arith.addi %75, %c2_i32_45 : i32
      %77 = arith.index_cast %76 : i32 to index
      %78 = memref.load %arg2[%77] : memref<48xi32, #tpu.memory_space<smem>>
      %c0_i32_46 = arith.constant 0 : i32
      %79 = arith.addi %c0_i32_46, %78 : i32
      %80 = arith.index_cast %79 : i32 to index
      %c0_47 = arith.constant 0 : index
      %c0_48 = arith.constant 0 : index
      %81 = vector.load %arg10[%80, %c0_47, %c0_48] : memref<16x1x128xf32, #tpu.memory_space<vmem>>, vector<1x1x128xf32>
      %82 = vector.shape_cast %81 : vector<1x1x128xf32> to vector<1x128xf32>
      %c2_i32_49 = arith.constant 2 : i32
      %83 = arith.cmpi sgt, %49, %c2_i32_49 : i32
      %cst_50 = arith.constant 0.000000e+00 : f32
      %84 = vector.broadcast %cst_50 : f32 to vector<1x128xf32>
      %85 = arith.select %83, %82, %84 : vector<1x128xf32>
      %86 = arith.addf %74, %85 : vector<1x128xf32>
      %87 = vector.extract_strided_slice %9 {offsets = [7, 0], sizes = [1, 384], strides = [1, 1]} : vector<16x384xf32> to vector<1x384xf32>
      %c2_i32_51 = arith.constant 2 : i32
      %88 = arith.muli %arg0, %c2_i32_51 : i32
      %c1_i32_52 = arith.constant 1 : i32
      %89 = arith.addi %88, %c1_i32_52 : i32
      %c8_i32_53 = arith.constant 8 : i32
      %90 = arith.muli %89, %c8_i32_53 : i32
      %c7_i32_54 = arith.constant 7 : i32
      %91 = arith.addi %90, %c7_i32_54 : i32
      %92 = arith.index_cast %91 : i32 to index
      %93 = memref.load %arg1[%92] : memref<16xi32, #tpu.memory_space<smem>>
      %cst_55 = arith.constant 0.000000e+00 : f32
      %94 = vector.broadcast %cst_55 : f32 to vector<1x128xf32>
      %c3_i32_56 = arith.constant 3 : i32
      %95 = arith.muli %91, %c3_i32_56 : i32
      %c0_i32_57 = arith.constant 0 : i32
      %96 = arith.addi %95, %c0_i32_57 : i32
      %97 = arith.index_cast %96 : i32 to index
      %98 = memref.load %arg2[%97] : memref<48xi32, #tpu.memory_space<smem>>
      %c8_i32_58 = arith.constant 8 : i32
      %99 = arith.addi %c8_i32_58, %98 : i32
      %100 = arith.index_cast %99 : i32 to index
      %c0_59 = arith.constant 0 : index
      %c0_60 = arith.constant 0 : index
      %101 = vector.load %arg10[%100, %c0_59, %c0_60] : memref<16x1x128xf32, #tpu.memory_space<vmem>>, vector<1x1x128xf32>
      %102 = vector.shape_cast %101 : vector<1x1x128xf32> to vector<1x128xf32>
      %c0_i32_61 = arith.constant 0 : i32
      %103 = arith.cmpi sgt, %93, %c0_i32_61 : i32
      %cst_62 = arith.constant 0.000000e+00 : f32
      %104 = vector.broadcast %cst_62 : f32 to vector<1x128xf32>
      %105 = arith.select %103, %102, %104 : vector<1x128xf32>
      %106 = arith.addf %94, %105 : vector<1x128xf32>
      %c3_i32_63 = arith.constant 3 : i32
      %107 = arith.muli %91, %c3_i32_63 : i32
      %c1_i32_64 = arith.constant 1 : i32
      %108 = arith.addi %107, %c1_i32_64 : i32
      %109 = arith.index_cast %108 : i32 to index
      %110 = memref.load %arg2[%109] : memref<48xi32, #tpu.memory_space<smem>>
      %c8_i32_65 = arith.constant 8 : i32
      %111 = arith.addi %c8_i32_65, %110 : i32
      %112 = arith.index_cast %111 : i32 to index
      %c0_66 = arith.constant 0 : index
      %c0_67 = arith.constant 0 : index
      %113 = vector.load %arg10[%112, %c0_66, %c0_67] : memref<16x1x128xf32, #tpu.memory_space<vmem>>, vector<1x1x128xf32>
      %114 = vector.shape_cast %113 : vector<1x1x128xf32> to vector<1x128xf32>
      %c1_i32_68 = arith.constant 1 : i32
      %115 = arith.cmpi sgt, %93, %c1_i32_68 : i32
      %cst_69 = arith.constant 0.000000e+00 : f32
      %116 = vector.broadcast %cst_69 : f32 to vector<1x128xf32>
      %117 = arith.select %115, %114, %116 : vector<1x128xf32>
      %118 = arith.addf %106, %117 : vector<1x128xf32>
      %c3_i32_70 = arith.constant 3 : i32
      %119 = arith.muli %91, %c3_i32_70 : i32
      %c2_i32_71 = arith.constant 2 : i32
      %120 = arith.addi %119, %c2_i32_71 : i32
      %121 = arith.index_cast %120 : i32 to index
      %122 = memref.load %arg2[%121] : memref<48xi32, #tpu.memory_space<smem>>
      %c8_i32_72 = arith.constant 8 : i32
      %123 = arith.addi %c8_i32_72, %122 : i32
      %124 = arith.index_cast %123 : i32 to index
      %c0_73 = arith.constant 0 : index
      %c0_74 = arith.constant 0 : index
      %125 = vector.load %arg10[%124, %c0_73, %c0_74] : memref<16x1x128xf32, #tpu.memory_space<vmem>>, vector<1x1x128xf32>
      %126 = vector.shape_cast %125 : vector<1x1x128xf32> to vector<1x128xf32>
      %c2_i32_75 = arith.constant 2 : i32
      %127 = arith.cmpi sgt, %93, %c2_i32_75 : i32
      %cst_76 = arith.constant 0.000000e+00 : f32
      %128 = vector.broadcast %cst_76 : f32 to vector<1x128xf32>
      %129 = arith.select %127, %126, %128 : vector<1x128xf32>
      %130 = arith.addf %118, %129 : vector<1x128xf32>
      %131 = vector.extract_strided_slice %9 {offsets = [15, 0], sizes = [1, 384], strides = [1, 1]} : vector<16x384xf32> to vector<1x384xf32>
      %132 = tpu.concatenate %86, %130 in 0 : vector<1x128xf32>, vector<1x128xf32> -> vector<2x128xf32>
      %133 = tpu.concatenate %87, %131 in 0 : vector<1x384xf32>, vector<1x384xf32> -> vector<2x384xf32>
      %c0_77 = arith.constant 0 : index
      %c0_78 = arith.constant 0 : index
      %134 = vector.load %arg7[%c0_77, %c0_78] : memref<128x256xf32, #tpu.memory_space<vmem>>, vector<128x256xf32>
      %cst_79 = arith.constant dense<0.000000e+00> : vector<2x256xf32>
      %135 = tpu.matmul %132, %134, %cst_79 {dimension_numbers = #tpu.dot_dimension_numbers<[1], [0], [0], [1], [0, 0, 1, 1], [], []>} : vector<2x128xf32>, vector<128x256xf32>, vector<2x256xf32> -> vector<2x256xf32>
      %136 = vector.extract_strided_slice %133 {offsets = [0, 0], sizes = [2, 256], strides = [1, 1]} : vector<2x384xf32> to vector<2x256xf32>
      %137 = arith.addf %136, %135 : vector<2x256xf32>
      %138 = arith.negf %137 : vector<2x256xf32>
      %139 = math.exp %138 : vector<2x256xf32>
      %cst_80 = arith.constant 1.000000e+00 : f32
      %140 = vector.broadcast %cst_80 : f32 to vector<2x256xf32>
      %141 = arith.addf %140, %139 : vector<2x256xf32>
      %142 = arith.divf %140, %141 : vector<2x256xf32>
      %143 = vector.extract_strided_slice %142 {offsets = [0, 0], sizes = [2, 128], strides = [1, 1]} : vector<2x256xf32> to vector<2x128xf32>
      %144 = vector.extract_strided_slice %142 {offsets = [0, 128], sizes = [2, 128], strides = [1, 1]} : vector<2x256xf32> to vector<2x128xf32>
      %145 = vector.extract_strided_slice %133 {offsets = [0, 256], sizes = [2, 128], strides = [1, 1]} : vector<2x384xf32> to vector<2x128xf32>
      %146 = arith.mulf %143, %132 : vector<2x128xf32>
      %c0_81 = arith.constant 0 : index
      %c0_82 = arith.constant 0 : index
      %147 = vector.load %arg8[%c0_81, %c0_82] : memref<128x128xf32, #tpu.memory_space<vmem>>, vector<128x128xf32>
      %cst_83 = arith.constant dense<0.000000e+00> : vector<2x128xf32>
      %148 = tpu.matmul %146, %147, %cst_83 {dimension_numbers = #tpu.dot_dimension_numbers<[1], [0], [0], [1], [0, 0, 1, 1], [], []>} : vector<2x128xf32>, vector<128x128xf32>, vector<2x128xf32> -> vector<2x128xf32>
      %149 = arith.addf %145, %148 : vector<2x128xf32>
      %150 = math.tanh %149 : vector<2x128xf32>
      %cst_84 = arith.constant 1.000000e+00 : f32
      %151 = vector.broadcast %cst_84 : f32 to vector<2x128xf32>
      %152 = arith.subf %151, %144 : vector<2x128xf32>
      %153 = arith.mulf %152, %132 : vector<2x128xf32>
      %154 = arith.mulf %144, %150 : vector<2x128xf32>
      %155 = arith.addf %153, %154 : vector<2x128xf32>
      %156 = vector.extract_strided_slice %155 {offsets = [0, 0], sizes = [1, 128], strides = [1, 1]} : vector<2x128xf32> to vector<1x128xf32>
      %c7_85 = arith.constant 7 : index
      %c0_86 = arith.constant 0 : index
      %c0_87 = arith.constant 0 : index
      %157 = vector.load %arg10[%c7_85, %c0_86, %c0_87] : memref<16x1x128xf32, #tpu.memory_space<vmem>>, vector<1x1x128xf32>
      %158 = vector.shape_cast %157 : vector<1x1x128xf32> to vector<1x128xf32>
      %159 = vector.shape_cast %156 : vector<1x128xf32> to vector<1x1x128xf32>
      tpu.vector_store %arg10[%c7_85, %c0_86, %c0_87], %159 {strides = array<i32>} : memref<16x1x128xf32, #tpu.memory_space<vmem>>, vector<1x1x128xf32>,
      %160 = vector.extract_strided_slice %155 {offsets = [1, 0], sizes = [1, 128], strides = [1, 1]} : vector<2x128xf32> to vector<1x128xf32>
      %c15_88 = arith.constant 15 : index
      %c0_89 = arith.constant 0 : index
      %c0_90 = arith.constant 0 : index
      %161 = vector.load %arg10[%c15_88, %c0_89, %c0_90] : memref<16x1x128xf32, #tpu.memory_space<vmem>>, vector<1x1x128xf32>
      %162 = vector.shape_cast %161 : vector<1x1x128xf32> to vector<1x128xf32>
      %163 = vector.shape_cast %160 : vector<1x128xf32> to vector<1x1x128xf32>
      tpu.vector_store %arg10[%c15_88, %c0_89, %c0_90], %163 {strides = array<i32>} : memref<16x1x128xf32, #tpu.memory_space<vmem>>, vector<1x1x128xf32>,
    } else {
    }
    %c7 = arith.constant 7 : index
    %c0_17 = arith.constant 0 : index
    %c0_18 = arith.constant 0 : index
    %34 = vector.load %arg10[%c7, %c0_17, %c0_18] : memref<16x1x128xf32, #tpu.memory_space<vmem>>, vector<1x1x128xf32>
    %35 = vector.shape_cast %34 : vector<1x1x128xf32> to vector<1x128xf32>
    %c0_19 = arith.constant 0 : index
    %c0_20 = arith.constant 0 : index
    %c0_21 = arith.constant 0 : index
    %36 = vector.load %arg9[%c0_19, %c0_20, %c0_21] : memref<2x1x128xf32, #tpu.memory_space<vmem>>, vector<1x1x128xf32>
    %37 = vector.shape_cast %36 : vector<1x1x128xf32> to vector<1x128xf32>
    %38 = vector.shape_cast %35 : vector<1x128xf32> to vector<1x1x128xf32>
    tpu.vector_store %arg9[%c0_19, %c0_20, %c0_21], %38 {strides = array<i32>} : memref<2x1x128xf32, #tpu.memory_space<vmem>>, vector<1x1x128xf32>,
    %c15 = arith.constant 15 : index
    %c0_22 = arith.constant 0 : index
    %c0_23 = arith.constant 0 : index
    %39 = vector.load %arg10[%c15, %c0_22, %c0_23] : memref<16x1x128xf32, #tpu.memory_space<vmem>>, vector<1x1x128xf32>
    %40 = vector.shape_cast %39 : vector<1x1x128xf32> to vector<1x128xf32>
    %c1 = arith.constant 1 : index
    %c0_24 = arith.constant 0 : index
    %c0_25 = arith.constant 0 : index
    %41 = vector.load %arg9[%c1, %c0_24, %c0_25] : memref<2x1x128xf32, #tpu.memory_space<vmem>>, vector<1x1x128xf32>
    %42 = vector.shape_cast %41 : vector<1x1x128xf32> to vector<1x128xf32>
    %43 = vector.shape_cast %40 : vector<1x128xf32> to vector<1x1x128xf32>
    tpu.vector_store %arg9[%c1, %c0_24, %c0_25], %43 {strides = array<i32>} : memref<2x1x128xf32, #tpu.memory_space<vmem>>, vector<1x1x128xf32>,
    return
  }
  func.func @transform_0(%arg0: i32, %arg1: memref<16xi32, #tpu.memory_space<smem>>, %arg2: memref<48xi32, #tpu.memory_space<smem>>, %arg3: memref<1xi32, #tpu.memory_space<smem>>) -> (i32, i32) {
    %c0_i32 = arith.constant 0 : i32
    %c0_i32_0 = arith.constant 0 : i32
    return %arg0, %c0_i32 : i32, i32
  }
  func.func @transform_1(%arg0: i32, %arg1: memref<16xi32, #tpu.memory_space<smem>>, %arg2: memref<48xi32, #tpu.memory_space<smem>>, %arg3: memref<1xi32, #tpu.memory_space<smem>>) -> (i32, i32) {
    %c0_i32 = arith.constant 0 : i32
    %c0_i32_0 = arith.constant 0 : i32
    %c0_i32_1 = arith.constant 0 : i32
    return %c0_i32, %c0_i32_0 : i32, i32
  }
  func.func @transform_2(%arg0: i32, %arg1: memref<16xi32, #tpu.memory_space<smem>>, %arg2: memref<48xi32, #tpu.memory_space<smem>>, %arg3: memref<1xi32, #tpu.memory_space<smem>>) -> (i32, i32) {
    %c0_i32 = arith.constant 0 : i32
    %c0_i32_0 = arith.constant 0 : i32
    %c0_i32_1 = arith.constant 0 : i32
    return %c0_i32, %c0_i32_0 : i32, i32
  }
  func.func @transform_3(%arg0: i32, %arg1: memref<16xi32, #tpu.memory_space<smem>>, %arg2: memref<48xi32, #tpu.memory_space<smem>>, %arg3: memref<1xi32, #tpu.memory_space<smem>>) -> (i32, i32) {
    %c0_i32 = arith.constant 0 : i32
    %c0_i32_0 = arith.constant 0 : i32
    %c0_i32_1 = arith.constant 0 : i32
    return %c0_i32, %c0_i32_0 : i32, i32
  }
  func.func @transform_4(%arg0: i32, %arg1: memref<16xi32, #tpu.memory_space<smem>>, %arg2: memref<48xi32, #tpu.memory_space<smem>>, %arg3: memref<1xi32, #tpu.memory_space<smem>>) -> (i32, i32) {
    %c0_i32 = arith.constant 0 : i32
    %c0_i32_0 = arith.constant 0 : i32
    %c0_i32_1 = arith.constant 0 : i32
    return %c0_i32, %c0_i32_0 : i32, i32
  }
  func.func @transform_5(%arg0: i32, %arg1: memref<16xi32, #tpu.memory_space<smem>>, %arg2: memref<48xi32, #tpu.memory_space<smem>>, %arg3: memref<1xi32, #tpu.memory_space<smem>>) -> (i32, i32, i32) {
    %c0_i32 = arith.constant 0 : i32
    %c0_i32_0 = arith.constant 0 : i32
    %c0_i32_1 = arith.constant 0 : i32
    return %arg0, %c0_i32, %c0_i32_0 : i32, i32, i32
  }
}

</mosaic_0001>

<llo_original>
// kernel: tpu_custom_call.1
$region0: #{tpu_custom_call.1}
  #allocation0 [shape = 'u32[]', space=smem, size = 0x4, offset = 0x4, fixed_abs, tag = 'smem constant byte address 0x4 - core index']
  #allocation1 [shape = 'u32[144,128]{1,0:T(1,128)}', space=vmem, size = 0x12000, scoped, tag = 'internal scratch']
  #allocation2 [shape = 'f32[16,1,128]{2,1,0:T(1,128)}', space=vmem, size = 0x2000, scoped, tag = 'scratch operand']
  #allocation3 [shape = 's32[1]{0}', space=sflag, size = 0x4, scoped, tag = 'scoped memory for tpu_custom_call.1']
  #allocation4 [shape = 'u8[512]{0}', space=smem, size = 0x200, scoped, tag = 'prefetched SMEM operand 0']
  #allocation5 [shape = 'u8[512]{0}', space=smem, size = 0x200, scoped, tag = 'prefetched SMEM operand 1']
  #allocation6 [shape = 's32[1]{0:T(128)S(6)}', space=smem, size = 0x200, scoped, tag = 'prefetched SMEM operand 2']
  %s0 = inlined_call_operand.vmem [shape: s32[16], index: 0, kind: input, shape index: {}]
  %s1 = inlined_call_operand.vmem [shape: s32[48], index: 1, kind: input, shape index: {}]
  %s2 = inlined_call_operand.<no memory space> [shape: s32[1], index: 2, kind: input, shape index: {}]
  %s3 = inlined_call_operand.hbm [shape: f32[16,16], index: 3, kind: input, shape index: {}]
  %s4 = inlined_call_operand.hbm [shape: f32[16,384], index: 4, kind: input, shape index: {}]
  %s5 = inlined_call_operand.vmem [shape: f32[1,384], index: 5, kind: input, shape index: {}]
  %s6 = inlined_call_operand.hbm [shape: f32[128,256], index: 6, kind: input, shape index: {}]
  %s7 = inlined_call_operand.hbm [shape: f32[128,128], index: 7, kind: input, shape index: {}]
  %s8 = inlined_call_operand.hbm [shape: f32[2,1,128], index: 8, kind: output, shape index: {}]
  %s9 = sld [smem:[#allocation0]]
  $region78: #{tpu_custom_call.1} parent=0
    _
  %s11 = ssub.s32 1, %s9
  %s12 = scalar_select 0, %s11, %s9
  %s13 = sshll.u32 %s0, 4
  %s14 = int_to_ptr.vmem [resolvable:$true] %s13
  %16 = dma.vmem_to_smem %s14, 16, [#allocation4], [#allocation3]
  %s17 = sshll.u32 %s1, 4
  %s18 = int_to_ptr.vmem [resolvable:$true] %s17
  %20 = dma.vmem_to_smem %s18, 16, [#allocation5], [#allocation3]
  %21 = sst [smem:[#allocation6]] %s2
  %22 = dma.done [#allocation3], 32
  %23 = sfence
  $region1: #{tpu_custom_call.1} parent=0
    #allocation7 [shape = 'u8[8192]{0}', space=vmem, size = 0x2000, scoped, tag = 'input window, operand 3, single buffered']
    #allocation8 [shape = 's32[1]{0}', space=sflag, size = 0x4, scoped, tag = 'scoped memory for tpu_custom_call.1']
    #allocation9 [shape = 's32[1]{0}', space=sflag, size = 0x4, scoped, tag = 'scoped memory for tpu_custom_call.1']
    #allocation10 [shape = 'u8[24576]{0}', space=vmem, size = 0x6000, scoped, tag = 'input window, operand 4, single buffered']
    #allocation11 [shape = 's32[1]{0}', space=sflag, size = 0x4, scoped, tag = 'scoped memory for tpu_custom_call.1']
    #allocation12 [shape = 'u8[131072]{0}', space=vmem, size = 0x20000, scoped, tag = 'input window, operand 6, single buffered']
    #allocation13 [shape = 'u8[65536]{0}', space=vmem, size = 0x10000, scoped, tag = 'input window, operand 7, single buffered']
    #allocation14 [shape = 's32[1]{0}', space=sflag, size = 0x4, scoped, tag = 'scoped memory for tpu_custom_call.1']
    #allocation15 [shape = 'u8[1024]{0}', space=vmem, size = 0x400, scoped, tag = 'output window, operand 0, single buffered']
    %24 = vsyncpa [#allocation8], 0
    %25 = vsyncpa [#allocation11], 0
    %26 = vsyncpa [#allocation14], 0
    %27 = vsyncpa [#allocation9], 0
    // Predicated region
    $region2: #{tpu_custom_call.1} parent=1 // pred_check
      _
    $region3: #{tpu_custom_call.1} parent=1 // pred_check_branch
      %29 = sbr.rel (0) target = $region5
    $region4: #{tpu_custom_call.1} parent=1 // pred_region
      %s31 = ssub.s32 256, 256
      %32 = vsyncadd [#allocation8], %s31
      %s33 = sshll.u32 [#allocation7], 4
      %s34 = int_to_ptr.vmem [resolvable:$true] %s33
      %39 = dma.hbm_to_vmem [thread:$0]  %s3, 256, %s34, [#allocation8], 128, 128, 8
    $region5: #{tpu_custom_call.1} parent=1 // pred_fallthru
      _
    // Predicated region
    $region6: #{tpu_custom_call.1} parent=1 // pred_check
      _
    $region7: #{tpu_custom_call.1} parent=1 // pred_check_branch
      %41 = sbr.rel (0) target = $region9
    $region8: #{tpu_custom_call.1} parent=1 // pred_region
      %s43 = ssub.s32 768, 768
      %44 = vsyncadd [#allocation11], %s43
      %s45 = sshll.u32 [#allocation10], 4
      %s46 = int_to_ptr.vmem [resolvable:$true] %s45
      %51 = dma.hbm_to_vmem [thread:$0]  %s4, 768, %s46, [#allocation11], 384, 384, 24
    $region9: #{tpu_custom_call.1} parent=1 // pred_fallthru
      _
    // Predicated region
    $region10: #{tpu_custom_call.1} parent=1 // pred_check
      _
    $region11: #{tpu_custom_call.1} parent=1 // pred_check_branch
      %53 = sbr.rel (0) target = $region13
    $region12: #{tpu_custom_call.1} parent=1 // pred_region
      _
    $region13: #{tpu_custom_call.1} parent=1 // pred_fallthru
      _
    // Predicated region
    $region14: #{tpu_custom_call.1} parent=1 // pred_check
      _
    $region15: #{tpu_custom_call.1} parent=1 // pred_check_branch
      %55 = sbr.rel (0) target = $region17
    $region16: #{tpu_custom_call.1} parent=1 // pred_region
      %s57 = ssub.s32 4096, 4096
      %58 = vsyncadd [#allocation11], %s57
      %s59 = sshll.u32 [#allocation12], 4
      %s60 = int_to_ptr.vmem [resolvable:$true] %s59
      %65 = dma.hbm_to_vmem [thread:$0]  %s6, 4096, %s60, [#allocation11], 256, 256, 16
    $region17: #{tpu_custom_call.1} parent=1 // pred_fallthru
      _
    // Predicated region
    $region18: #{tpu_custom_call.1} parent=1 // pred_check
      _
    $region19: #{tpu_custom_call.1} parent=1 // pred_check_branch
      %67 = sbr.rel (0) target = $region21
    $region20: #{tpu_custom_call.1} parent=1 // pred_region
      %s69 = ssub.s32 2048, 2048
      %70 = vsyncadd [#allocation14], %s69
      %s71 = sshll.u32 [#allocation13], 4
      %s72 = int_to_ptr.vmem [resolvable:$true] %s71
      %77 = dma.hbm_to_vmem [thread:$0]  %s7, 2048, %s72, [#allocation14], 128, 128, 8
    $region21: #{tpu_custom_call.1} parent=1 // pred_fallthru
      _
    // Predicated region
    $region22: #{tpu_custom_call.1} parent=1 // pred_check
      _
    $region23: #{tpu_custom_call.1} parent=1 // pred_check_branch
      %79 = sbr.rel (0) target = $region25
    $region24: #{tpu_custom_call.1} parent=1 // pred_region
      %80 = dma.done [#allocation8], 256
    $region25: #{tpu_custom_call.1} parent=1 // pred_fallthru
      _
    // Predicated region
    $region26: #{tpu_custom_call.1} parent=1 // pred_check
      _
    $region27: #{tpu_custom_call.1} parent=1 // pred_check_branch
      %82 = sbr.rel (0) target = $region29
    $region28: #{tpu_custom_call.1} parent=1 // pred_region
      %83 = dma.done [#allocation11], 768
    $region29: #{tpu_custom_call.1} parent=1 // pred_fallthru
      _
    // Predicated region
    $region30: #{tpu_custom_call.1} parent=1 // pred_check
      _
    $region31: #{tpu_custom_call.1} parent=1 // pred_check_branch
      %85 = sbr.rel (0) target = $region33
    $region32: #{tpu_custom_call.1} parent=1 // pred_region
      %86 = dma.done [#allocation11], 4096
    $region33: #{tpu_custom_call.1} parent=1 // pred_fallthru
      _
    // Predicated region
    $region34: #{tpu_custom_call.1} parent=1 // pred_check
      _
    $region35: #{tpu_custom_call.1} parent=1 // pred_check_branch
      %88 = sbr.rel (0) target = $region37
    $region36: #{tpu_custom_call.1} parent=1 // pred_region
      %89 = dma.done [#allocation14], 2048
    $region37: #{tpu_custom_call.1} parent=1 // pred_fallthru
      _
    %s90 = sld [smem:[#allocation6]]
    %91 = vst [vmem:[#allocation2] sm:$0x1] 0.0
    %92 = vst [vmem:[#allocation2 + $0x1] sm:$0x1] 0.0
    %93 = vst [vmem:[#allocation2 + $0x2] sm:$0x1] 0.0
    %94 = vst [vmem:[#allocation2 + $0x3] sm:$0x1] 0.0
    %95 = vst [vmem:[#allocation2 + $0x4] sm:$0x1] 0.0
    %96 = vst [vmem:[#allocation2 + $0x5] sm:$0x1] 0.0
    %97 = vst [vmem:[#allocation2 + $0x6] sm:$0x1] 0.0
    %98 = vst [vmem:[#allocation2 + $0x7] sm:$0x1] 0.0
    %99 = vst [vmem:[#allocation2 + $0x8] sm:$0x1] 0.0
    %100 = vst [vmem:[#allocation2 + $0x9] sm:$0x1] 0.0
    %101 = vst [vmem:[#allocation2 + $0xa] sm:$0x1] 0.0
    %102 = vst [vmem:[#allocation2 + $0xb] sm:$0x1] 0.0
    %103 = vst [vmem:[#allocation2 + $0xc] sm:$0x1] 0.0
    %104 = vst [vmem:[#allocation2 + $0xd] sm:$0x1] 0.0
    %105 = vst [vmem:[#allocation2 + $0xe] sm:$0x1] 0.0
    %106 = vst [vmem:[#allocation2 + $0xf] sm:$0x1] 0.0
    %v107 = vld [vmem:[#allocation7] sm:$0xff]
    %v108 = vld [vmem:[#allocation7 + $0x8] sm:$0xff]
    %v109 = vld [vmem:[#allocation10] sm:$0xff]
    %v110 = vld [vmem:[#allocation10 + $0x8] sm:$0xff]
    %v111 = vld [vmem:[#allocation10 + $0x10] sm:$0xff]
    %v112 = vld [vmem:[#allocation10 + $0x18] sm:$0xff]
    %v113 = vld [vmem:[#allocation10 + $0x20] sm:$0xff]
    %v114 = vld [vmem:[#allocation10 + $0x28] sm:$0xff]
    %v115 = vld [vmem:[%s5] sm:$0x7]
    %v117 = vlaneseq
    %v118 = vshrl.u32 %v117, 7
    %v119 = vsub.s32 0, %v118
    %v120 = vrot.slane %v115, %v119
    %v121 = vlaneseq
    %v122 = vshrl.u32 %v121, 7
    %v123 = vsub.s32 1, %v122
    %v124 = vrot.slane %v115, %v123
    %v125 = vlaneseq
    %v126 = vshrl.u32 %v125, 7
    %v127 = vsub.s32 2, %v126
    %v128 = vrot.slane %v115, %v127
    %vm132 = vcmask 130048
    %v134 = vsel %vm132, %v107, 0
    %v137 = vsel %vm132, %v108, 0
    %139 = vmatprep.subr.mxu0 0.0
    %140 = vmatpush1.msra.mxu0 0.0
    %141 = vmatprep.subr.mxu0 0.0
    %142 = vmatpush1.msra.mxu0 0.0
    %143 = vmatprep.subr.mxu0 0.0
    %144 = vmatpush1.msra.mxu0 0.0
    %145 = vmatprep.subr.mxu0 0.0
    %146 = vmatpush1.msra.mxu0 0.0
    %147 = vmatprep.subr.mxu0 0.0
    %148 = vmatpush1.msra.mxu0 0.0
    %149 = vmatprep.subr.mxu0 0.0
    %150 = vmatpush1.msra.mxu0 0.0
    %151 = vmatprep.subr.mxu0 0.0
    %152 = vmatpush1.msra.mxu0 0.0
    %153 = vmatprep.subr.mxu0 0.0
    %154 = vmatpush1.msra.mxu0 0.0
    %155 = vmatprep.subr.mxu0 0.0
    %156 = vmatpush1.msra.mxu0 0.0
    %157 = vmatprep.subr.mxu0 0.0
    %158 = vmatpush1.msra.mxu0 0.0
    %159 = vmatprep.subr.mxu0 0.0
    %160 = vmatpush1.msra.mxu0 0.0
    %161 = vmatprep.subr.mxu0 0.0
    %162 = vmatpush1.msra.mxu0 0.0
    %163 = vmatprep.subr.mxu0 0.0
    %164 = vmatpush1.msra.mxu0 0.0
    %165 = vmatprep.subr.mxu0 0.0
    %166 = vmatpush1.msra.mxu0 0.0
    %167 = vmatprep.subr.mxu0 %v113
    %168 = vmatpush1.msra.mxu0 %v112
    %169 = vmatprep.subr.mxu0 %v110
    %170 = vmatpush1.msra.mxu0 %v109
    %171 = vmatprep.subr.mxu0 0.0
    %172 = vmatpush2.msra.mxu0 0.0
    %173 = vmatprep.subr.mxu0 0.0
    %174 = vmatpush2.msra.mxu0 0.0
    %175 = vmatprep.subr.mxu0 0.0
    %176 = vmatpush2.msra.mxu0 0.0
    %177 = vmatprep.subr.mxu0 0.0
    %178 = vmatpush2.msra.mxu0 0.0
    %179 = vmatprep.subr.mxu0 0.0
    %180 = vmatpush2.msra.mxu0 0.0
    %181 = vmatprep.subr.mxu0 0.0
    %182 = vmatpush2.msra.mxu0 0.0
    %183 = vmatprep.subr.mxu0 0.0
    %184 = vmatpush2.msra.mxu0 0.0
    %185 = vmatprep.subr.mxu0 0.0
    %186 = vmatpush2.msra.mxu0 0.0
    %187 = vmatprep.subr.mxu0 0.0
    %188 = vmatpush2.msra.mxu0 0.0
    %189 = vmatprep.subr.mxu0 0.0
    %190 = vmatpush2.msra.mxu0 0.0
    %191 = vmatprep.subr.mxu0 0.0
    %192 = vmatpush2.msra.mxu0 0.0
    %193 = vmatprep.subr.mxu0 0.0
    %194 = vmatpush2.msra.mxu0 0.0
    %195 = vmatprep.subr.mxu0 0.0
    %196 = vmatpush2.msra.mxu0 0.0
    %197 = vmatprep.subr.mxu0 0.0
    %198 = vmatpush2.msra.mxu0 0.0
    %199 = vmatprep.subr.mxu0 0.0
    %200 = vmatpush2.msra.mxu0 0.0
    %201 = vmatprep.subr.mxu0 0.0
    %202 = vmatpush2.msra.mxu0 0.0
    %203 = vmatprep.mubr.f32.mxu0 0.0
    %204 = vmatmul.mubr.f32.gmra.mxu0 %v134
    %v205 = vpop.f32.mrf.mxu0
    %v206 = vadd.f32 %v120, %v205
    %v207 = vpop.f32.mrf.mxu0
    %v208 = vadd.f32 %v124, %v207
    %209 = vmatprep.mubr.f32.mxu0 0.0
    %210 = vmatmul.mubr.f32.gmra.mxu0 %v137
    %v211 = vpop.f32.mrf.mxu0
    %v212 = vadd.f32 %v120, %v211
    %v213 = vpop.f32.mrf.mxu0
    %v214 = vadd.f32 %v124, %v213
    %215 = vdwg.mxu0
    %216 = vmatprep.subr.mxu0 0.0
    %217 = vmatpush1.msra.mxu0 0.0
    %218 = vmatprep.subr.mxu0 0.0
    %219 = vmatpush1.msra.mxu0 0.0
    %220 = vmatprep.subr.mxu0 0.0
    %221 = vmatpush1.msra.mxu0 0.0
    %222 = vmatprep.subr.mxu0 0.0
    %223 = vmatpush1.msra.mxu0 0.0
    %224 = vmatprep.subr.mxu0 0.0
    %225 = vmatpush1.msra.mxu0 0.0
    %226 = vmatprep.subr.mxu0 0.0
    %227 = vmatpush1.msra.mxu0 0.0
    %228 = vmatprep.subr.mxu0 0.0
    %229 = vmatpush1.msra.mxu0 0.0
    %230 = vmatprep.subr.mxu0 0.0
    %231 = vmatpush1.msra.mxu0 0.0
    %232 = vmatprep.subr.mxu0 0.0
    %233 = vmatpush1.msra.mxu0 0.0
    %234 = vmatprep.subr.mxu0 0.0
    %235 = vmatpush1.msra.mxu0 0.0
    %236 = vmatprep.subr.mxu0 0.0
    %237 = vmatpush1.msra.mxu0 0.0
    %238 = vmatprep.subr.mxu0 0.0
    %239 = vmatpush1.msra.mxu0 0.0
    %240 = vmatprep.subr.mxu0 0.0
    %241 = vmatpush1.msra.mxu0 0.0
    %242 = vmatprep.subr.mxu0 0.0
    %243 = vmatpush1.msra.mxu0 0.0
    %244 = vmatprep.subr.mxu0 0.0
    %245 = vmatpush1.msra.mxu0 %v114
    %246 = vmatprep.subr.mxu0 0.0
    %247 = vmatpush1.msra.mxu0 %v111
    %248 = vmatprep.subr.mxu0 0.0
    %249 = vmatpush2.msra.mxu0 0.0
    %250 = vmatprep.subr.mxu0 0.0
    %251 = vmatpush2.msra.mxu0 0.0
    %252 = vmatprep.subr.mxu0 0.0
    %253 = vmatpush2.msra.mxu0 0.0
    %254 = vmatprep.subr.mxu0 0.0
    %255 = vmatpush2.msra.mxu0 0.0
    %256 = vmatprep.subr.mxu0 0.0
    %257 = vmatpush2.msra.mxu0 0.0
    %258 = vmatprep.subr.mxu0 0.0
    %259 = vmatpush2.msra.mxu0 0.0
    %260 = vmatprep.subr.mxu0 0.0
    %261 = vmatpush2.msra.mxu0 0.0
    %262 = vmatprep.subr.mxu0 0.0
    %263 = vmatpush2.msra.mxu0 0.0
    %264 = vmatprep.subr.mxu0 0.0
    %265 = vmatpush2.msra.mxu0 0.0
    %266 = vmatprep.subr.mxu0 0.0
    %267 = vmatpush2.msra.mxu0 0.0
    %268 = vmatprep.subr.mxu0 0.0
    %269 = vmatpush2.msra.mxu0 0.0
    %270 = vmatprep.subr.mxu0 0.0
    %271 = vmatpush2.msra.mxu0 0.0
    %272 = vmatprep.subr.mxu0 0.0
    %273 = vmatpush2.msra.mxu0 0.0
    %274 = vmatprep.subr.mxu0 0.0
    %275 = vmatpush2.msra.mxu0 0.0
    %276 = vmatprep.subr.mxu0 0.0
    %277 = vmatpush2.msra.mxu0 0.0
    %278 = vmatprep.subr.mxu0 0.0
    %279 = vmatpush2.msra.mxu0 0.0
    %280 = vmatprep.mubr.f32.mxu0 0.0
    %281 = vmatmul.mubr.f32.gmra.mxu0 %v134
    %v282 = vpop.f32.mrf.mxu0
    %v283 = vadd.f32 %v128, %v282
    %v284 = vpop.f32.mrf.mxu0
    %285 = vmatprep.mubr.f32.mxu0 0.0
    %286 = vmatmul.mubr.f32.gmra.mxu0 %v137
    %v287 = vpop.f32.mrf.mxu0
    %v288 = vadd.f32 %v128, %v287
    %v289 = vpop.f32.mrf.mxu0
    %290 = vdwg.mxu0
    %p291 = scmp.le.s32.totalorder %s90, 0
    // Predicated region
    $region38: #{tpu_custom_call.1} parent=1 // pred_check
      %p292 = pneg %p291
    $region39: #{tpu_custom_call.1} parent=1 // pred_check_branch
      %294 = sbr.rel (%p292) target = $region41
    $region40: #{tpu_custom_call.1} parent=1 // pred_region
      %s295 = smul.u32 0, 16
      %s296 = sld [smem:[#allocation4 + %s295]]
      %s297 = smul.u32 0, 48
      %s298 = sld [smem:[#allocation5 + %s297]]
      %s299 = scalar_lea.vmem [#allocation2], %s298
      %v300 = vld [vmem:[%s299] sm:$0x1]
      %p301 = scmp.gt.s32.totalorder %s296, 0
      %s302 = scalar_select %p301, 1, 0
      %v303 = vstv %s302
      %vm304 = vcmp.eq.s32.totalorder %v303, 1
      %v305 = vsel %vm304, %v300, 0.0
      %v306 = vadd.f32 %v305, 0.0
      %s307 = sadd.s32 %s297, 1
      %s308 = sld [smem:[#allocation5 + %s307]]
      %s309 = scalar_lea.vmem [#allocation2], %s308
      %v310 = vld [vmem:[%s309] sm:$0x1]
      %p311 = scmp.gt.s32.totalorder %s296, 1
      %s312 = scalar_select %p311, 1, 0
      %v313 = vstv %s312
      %vm314 = vcmp.eq.s32.totalorder %v313, 1
      %v315 = vsel %vm314, %v310, 0.0
      %v316 = vadd.f32 %v306, %v315
      %s317 = sadd.s32 %s297, 2
      %s318 = sld [smem:[#allocation5 + %s317]]
      %s319 = scalar_lea.vmem [#allocation2], %s318
      %v320 = vld [vmem:[%s319] sm:$0x1]
      %p321 = scmp.gt.s32.totalorder %s296, 2
      %s322 = scalar_select %p321, 1, 0
      %v323 = vstv %s322
      %vm324 = vcmp.eq.s32.totalorder %v323, 1
      %v325 = vsel %vm324, %v320, 0.0
      %v326 = vadd.f32 %v316, %v325
      %s327 = smul.u32 0, 2
      %s328 = sadd.s32 %s327, 1
      %s329 = smul.u32 %s328, 8
      %s330 = sld [smem:[#allocation4 + %s329]]
      %s331 = smul.u32 %s328, 24
      %s332 = sld [smem:[#allocation5 + %s331]]
      %s333 = sadd.s32 %s332, 8
      %s334 = scalar_lea.vmem [#allocation2], %s333
      %v335 = vld [vmem:[%s334] sm:$0x1]
      %p336 = scmp.gt.s32.totalorder %s330, 0
      %s337 = scalar_select %p336, 1, 0
      %v338 = vstv %s337
      %vm339 = vcmp.eq.s32.totalorder %v338, 1
      %v340 = vsel %vm339, %v335, 0.0
      %v341 = vadd.f32 %v340, 0.0
      %s342 = sadd.s32 %s331, 1
      %s343 = sld [smem:[#allocation5 + %s342]]
      %s344 = sadd.s32 %s343, 8
      %s345 = scalar_lea.vmem [#allocation2], %s344
      %v346 = vld [vmem:[%s345] sm:$0x1]
      %p347 = scmp.gt.s32.totalorder %s330, 1
      %s348 = scalar_select %p347, 1, 0
      %v349 = vstv %s348
      %vm350 = vcmp.eq.s32.totalorder %v349, 1
      %v351 = vsel %vm350, %v346, 0.0
      %v352 = vadd.f32 %v341, %v351
      %s353 = sadd.s32 %s331, 2
      %s354 = sld [smem:[#allocation5 + %s353]]
      %s355 = sadd.s32 %s354, 8
      %s356 = scalar_lea.vmem [#allocation2], %s355
      %v357 = vld [vmem:[%s356] sm:$0x1]
      %p358 = scmp.gt.s32.totalorder %s330, 2
      %s359 = scalar_select %p358, 1, 0
      %v360 = vstv %s359
      %vm361 = vcmp.eq.s32.totalorder %v360, 1
      %v362 = vsel %vm361, %v357, 0.0
      %v363 = vadd.f32 %v352, %v362
      %v365 = vlaneseq
      %v366 = vshrl.u32 %v365, 7
      %v367 = vsub.s32 0, %v366
      %v368 = vrot.slane %v363, %v367
      %vm370 = vcmask 1040384
      %v371 = vsel %vm370, %v326, %v368
      %v375 = vrot.slane %v212, 7
      %v376 = vrot.slane %v214, 7
      %v377 = vrot.slane %v288, 7
      %v381 = vsel %vm370, %v206, %v375
      %v382 = vsel %vm370, %v208, %v376
      %v383 = vsel %vm370, %v283, %v377
      %v384 = vld [vmem:[#allocation12] sm:$0xff]
      %v385 = vld [vmem:[#allocation12 + $0x8] sm:$0xff]
      %v386 = vld [vmem:[#allocation12 + $0x10] sm:$0xff]
      %v387 = vld [vmem:[#allocation12 + $0x18] sm:$0xff]
      %v388 = vld [vmem:[#allocation12 + $0x20] sm:$0xff]
      %v389 = vld [vmem:[#allocation12 + $0x28] sm:$0xff]
      %v390 = vld [vmem:[#allocation12 + $0x30] sm:$0xff]
      %v391 = vld [vmem:[#allocation12 + $0x38] sm:$0xff]
      %v392 = vld [vmem:[#allocation12 + $0x40] sm:$0xff]
      %v393 = vld [vmem:[#allocation12 + $0x48] sm:$0xff]
      %v394 = vld [vmem:[#allocation12 + $0x50] sm:$0xff]
      %v395 = vld [vmem:[#allocation12 + $0x58] sm:$0xff]
      %v396 = vld [vmem:[#allocation12 + $0x60] sm:$0xff]
      %v397 = vld [vmem:[#allocation12 + $0x68] sm:$0xff]
      %v398 = vld [vmem:[#allocation12 + $0x70] sm:$0xff]
      %v399 = vld [vmem:[#allocation12 + $0x78] sm:$0xff]
      %v400 = vld [vmem:[#allocation12 + $0x80] sm:$0xff]
      %v401 = vld [vmem:[#allocation12 + $0x88] sm:$0xff]
      %v402 = vld [vmem:[#allocation12 + $0x90] sm:$0xff]
      %v403 = vld [vmem:[#allocation12 + $0x98] sm:$0xff]
      %v404 = vld [vmem:[#allocation12 + $0xa0] sm:$0xff]
      %v405 = vld [vmem:[#allocation12 + $0xa8] sm:$0xff]
      %v406 = vld [vmem:[#allocation12 + $0xb0] sm:$0xff]
      %v407 = vld [vmem:[#allocation12 + $0xb8] sm:$0xff]
      %v408 = vld [vmem:[#allocation12 + $0xc0] sm:$0xff]
      %v409 = vld [vmem:[#allocation12 + $0xc8] sm:$0xff]
      %v410 = vld [vmem:[#allocation12 + $0xd0] sm:$0xff]
      %v411 = vld [vmem:[#allocation12 + $0xd8] sm:$0xff]
      %v412 = vld [vmem:[#allocation12 + $0xe0] sm:$0xff]
      %v413 = vld [vmem:[#allocation12 + $0xe8] sm:$0xff]
      %v414 = vld [vmem:[#allocation12 + $0xf0] sm:$0xff]
      %v415 = vld [vmem:[#allocation12 + $0xf8] sm:$0xff]
      %416 = vmatprep.subr.mxu0 %v415
      %417 = vmatpush1.msra.mxu0 %v414
      %418 = vmatprep.subr.mxu0 %v413
      %419 = vmatpush1.msra.mxu0 %v412
      %420 = vmatprep.subr.mxu0 %v411
      %421 = vmatpush1.msra.mxu0 %v410
      %422 = vmatprep.subr.mxu0 %v409
      %423 = vmatpush1.msra.mxu0 %v408
      %424 = vmatprep.subr.mxu0 %v407
      %425 = vmatpush1.msra.mxu0 %v406
      %426 = vmatprep.subr.mxu0 %v405
      %427 = vmatpush1.msra.mxu0 %v404
      %428 = vmatprep.subr.mxu0 %v403
      %429 = vmatpush1.msra.mxu0 %v402
      %430 = vmatprep.subr.mxu0 %v401
      %431 = vmatpush1.msra.mxu0 %v400
      %432 = vmatprep.subr.mxu0 %v399
      %433 = vmatpush1.msra.mxu0 %v398
      %434 = vmatprep.subr.mxu0 %v397
      %435 = vmatpush1.msra.mxu0 %v396
      %436 = vmatprep.subr.mxu0 %v395
      %437 = vmatpush1.msra.mxu0 %v394
      %438 = vmatprep.subr.mxu0 %v393
      %439 = vmatpush1.msra.mxu0 %v392
      %440 = vmatprep.subr.mxu0 %v391
      %441 = vmatpush1.msra.mxu0 %v390
      %442 = vmatprep.subr.mxu0 %v389
      %443 = vmatpush1.msra.mxu0 %v388
      %444 = vmatprep.subr.mxu0 %v387
      %445 = vmatpush1.msra.mxu0 %v386
      %446 = vmatprep.subr.mxu0 %v385
      %447 = vmatpush1.msra.mxu0 %v384
      %448 = vmatprep.subr.mxu0 0.0
      %449 = vmatpush2.msra.mxu0 0.0
      %450 = vmatprep.subr.mxu0 0.0
      %451 = vmatpush2.msra.mxu0 0.0
      %452 = vmatprep.subr.mxu0 0.0
      %453 = vmatpush2.msra.mxu0 0.0
      %454 = vmatprep.subr.mxu0 0.0
      %455 = vmatpush2.msra.mxu0 0.0
      %456 = vmatprep.subr.mxu0 0.0
      %457 = vmatpush2.msra.mxu0 0.0
      %458 = vmatprep.subr.mxu0 0.0
      %459 = vmatpush2.msra.mxu0 0.0
      %460 = vmatprep.subr.mxu0 0.0
      %461 = vmatpush2.msra.mxu0 0.0
      %462 = vmatprep.subr.mxu0 0.0
      %463 = vmatpush2.msra.mxu0 0.0
      %464 = vmatprep.subr.mxu0 0.0
      %465 = vmatpush2.msra.mxu0 0.0
      %466 = vmatprep.subr.mxu0 0.0
      %467 = vmatpush2.msra.mxu0 0.0
      %468 = vmatprep.subr.mxu0 0.0
      %469 = vmatpush2.msra.mxu0 0.0
      %470 = vmatprep.subr.mxu0 0.0
      %471 = vmatpush2.msra.mxu0 0.0
      %472 = vmatprep.subr.mxu0 0.0
      %473 = vmatpush2.msra.mxu0 0.0
      %474 = vmatprep.subr.mxu0 0.0
      %475 = vmatpush2.msra.mxu0 0.0
      %476 = vmatprep.subr.mxu0 0.0
      %477 = vmatpush2.msra.mxu0 0.0
      %478 = vmatprep.subr.mxu0 0.0
      %479 = vmatpush2.msra.mxu0 0.0
      %480 = vmatprep.mubr.f32.mxu0 0.0
      %481 = vmatmul.mubr.f32.gmra.mxu0 %v371
      %v482 = vpop.f32.mrf.mxu0
      %v483 = vadd.f32 0.0, %v482
      %v484 = vpop.f32.mrf.mxu0
      %v485 = vadd.f32 0.0, %v484
      %486 = vdwg.mxu0
      %v487 = vadd.f32 %v381, %v483
      %v488 = vadd.f32 %v382, %v485
      %v489 = vxor.u32 %v487, 2147483648
      %v490 = vxor.u32 %v488, 2147483648
      %v491 = vmul.f32 %v489, 1.442695
      %v492 = vpow.pop %v491
      %v493 = vmul.f32 %v490, 1.442695
      %v494 = vpow.pop %v493
      %v495 = vadd.f32 %v492, 1.0
      %v496 = vadd.f32 %v494, 1.0
      %v497 = vrcp.pop %v495
      %v498 = vmul.f32 1.0, %v497
      %v499 = vrcp.pop %v496
      %v500 = vmul.f32 1.0, %v499
      %v501 = vmul.f32 %v498, %v371
      %v502 = vld [vmem:[#allocation13] sm:$0xff]
      %v503 = vld [vmem:[#allocation13 + $0x8] sm:$0xff]
      %v504 = vld [vmem:[#allocation13 + $0x10] sm:$0xff]
      %v505 = vld [vmem:[#allocation13 + $0x18] sm:$0xff]
      %v506 = vld [vmem:[#allocation13 + $0x20] sm:$0xff]
      %v507 = vld [vmem:[#allocation13 + $0x28] sm:$0xff]
      %v508 = vld [vmem:[#allocation13 + $0x30] sm:$0xff]
      %v509 = vld [vmem:[#allocation13 + $0x38] sm:$0xff]
      %v510 = vld [vmem:[#allocation13 + $0x40] sm:$0xff]
      %v511 = vld [vmem:[#allocation13 + $0x48] sm:$0xff]
      %v512 = vld [vmem:[#allocation13 + $0x50] sm:$0xff]
      %v513 = vld [vmem:[#allocation13 + $0x58] sm:$0xff]
      %v514 = vld [vmem:[#allocation13 + $0x60] sm:$0xff]
      %v515 = vld [vmem:[#allocation13 + $0x68] sm:$0xff]
      %v516 = vld [vmem:[#allocation13 + $0x70] sm:$0xff]
      %v517 = vld [vmem:[#allocation13 + $0x78] sm:$0xff]
      %518 = vmatprep.subr.mxu0 0.0
      %519 = vmatpush1.msra.mxu0 %v517
      %520 = vmatprep.subr.mxu0 0.0
      %521 = vmatpush1.msra.mxu0 %v516
      %522 = vmatprep.subr.mxu0 0.0
      %523 = vmatpush1.msra.mxu0 %v515
      %524 = vmatprep.subr.mxu0 0.0
      %525 = vmatpush1.msra.mxu0 %v514
      %526 = vmatprep.subr.mxu0 0.0
      %527 = vmatpush1.msra.mxu0 %v513
      %528 = vmatprep.subr.mxu0 0.0
      %529 = vmatpush1.msra.mxu0 %v512
      %530 = vmatprep.subr.mxu0 0.0
      %531 = vmatpush1.msra.mxu0 %v511
      %532 = vmatprep.subr.mxu0 0.0
      %533 = vmatpush1.msra.mxu0 %v510
      %534 = vmatprep.subr.mxu0 0.0
      %535 = vmatpush1.msra.mxu0 %v509
      %536 = vmatprep.subr.mxu0 0.0
      %537 = vmatpush1.msra.mxu0 %v508
      %538 = vmatprep.subr.mxu0 0.0
      %539 = vmatpush1.msra.mxu0 %v507
      %540 = vmatprep.subr.mxu0 0.0
      %541 = vmatpush1.msra.mxu0 %v506
      %542 = vmatprep.subr.mxu0 0.0
      %543 = vmatpush1.msra.mxu0 %v505
      %544 = vmatprep.subr.mxu0 0.0
      %545 = vmatpush1.msra.mxu0 %v504
      %546 = vmatprep.subr.mxu0 0.0
      %547 = vmatpush1.msra.mxu0 %v503
      %548 = vmatprep.subr.mxu0 0.0
      %549 = vmatpush1.msra.mxu0 %v502
      %550 = vmatprep.subr.mxu0 0.0
      %551 = vmatpush2.msra.mxu0 0.0
      %552 = vmatprep.subr.mxu0 0.0
      %553 = vmatpush2.msra.mxu0 0.0
      %554 = vmatprep.subr.mxu0 0.0
      %555 = vmatpush2.msra.mxu0 0.0
      %556 = vmatprep.subr.mxu0 0.0
      %557 = vmatpush2.msra.mxu0 0.0
      %558 = vmatprep.subr.mxu0 0.0
      %559 = vmatpush2.msra.mxu0 0.0
      %560 = vmatprep.subr.mxu0 0.0
      %561 = vmatpush2.msra.mxu0 0.0
      %562 = vmatprep.subr.mxu0 0.0
      %563 = vmatpush2.msra.mxu0 0.0
      %564 = vmatprep.subr.mxu0 0.0
      %565 = vmatpush2.msra.mxu0 0.0
      %566 = vmatprep.subr.mxu0 0.0
      %567 = vmatpush2.msra.mxu0 0.0
      %568 = vmatprep.subr.mxu0 0.0
      %569 = vmatpush2.msra.mxu0 0.0
      %570 = vmatprep.subr.mxu0 0.0
      %571 = vmatpush2.msra.mxu0 0.0
      %572 = vmatprep.subr.mxu0 0.0
      %573 = vmatpush2.msra.mxu0 0.0
      %574 = vmatprep.subr.mxu0 0.0
      %575 = vmatpush2.msra.mxu0 0.0
      %576 = vmatprep.subr.mxu0 0.0
      %577 = vmatpush2.msra.mxu0 0.0
      %578 = vmatprep.subr.mxu0 0.0
      %579 = vmatpush2.msra.mxu0 0.0
      %580 = vmatprep.subr.mxu0 0.0
      %581 = vmatpush2.msra.mxu0 0.0
      %582 = vmatprep.mubr.f32.mxu0 0.0
      %583 = vmatmul.mubr.f32.gmra.mxu0 %v501
      %v584 = vpop.f32.mrf.mxu0
      %v585 = vadd.f32 0.0, %v584
      %v586 = vpop.f32.mrf.mxu0
      %587 = vdwg.mxu0
      %v588 = vadd.f32 %v383, %v585
      %v589 = vtanh.pop %v588
      %v590 = vsub.f32 1.0, %v500
      %v591 = vmul.f32 %v590, %v371
      %v592 = vmul.f32 %v500, %v589
      %v593 = vadd.f32 %v591, %v592
      %594 = vst [vmem:[#allocation2] sm:$0x1] %v593
      %s595 = scalar_lea.vmem [#allocation2], 8
      %596 = vst [vmem:[%s595 - $0x1] sm:$0x2] %v593
    $region41: #{tpu_custom_call.1} parent=1 // pred_fallthru
      _
    %p597 = scmp.le.s32.totalorder %s90, 1
    // Predicated region
    $region42: #{tpu_custom_call.1} parent=1 // pred_check
      %p598 = pneg %p597
    $region43: #{tpu_custom_call.1} parent=1 // pred_check_branch
      %600 = sbr.rel (%p598) target = $region45
    $region44: #{tpu_custom_call.1} parent=1 // pred_region
      %s601 = smul.u32 0, 16
      %s602 = sadd.s32 %s601, 1
      %s603 = sld [smem:[#allocation4 + %s602]]
      %s604 = smul.u32 %s602, 3
      %s605 = sld [smem:[#allocation5 + %s604]]
      %s606 = scalar_lea.vmem [#allocation2], %s605
      %v607 = vld [vmem:[%s606] sm:$0x1]
      %p608 = scmp.gt.s32.totalorder %s603, 0
      %s609 = scalar_select %p608, 1, 0
      %v610 = vstv %s609
      %vm611 = vcmp.eq.s32.totalorder %v610, 1
      %v612 = vsel %vm611, %v607, 0.0
      %v613 = vadd.f32 %v612, 0.0
      %s614 = sadd.s32 %s604, 1
      %s615 = sld [smem:[#allocation5 + %s614]]
      %s616 = scalar_lea.vmem [#allocation2], %s615
      %v617 = vld [vmem:[%s616] sm:$0x1]
      %p618 = scmp.gt.s32.totalorder %s603, 1
      %s619 = scalar_select %p618, 1, 0
      %v620 = vstv %s619
      %vm621 = vcmp.eq.s32.totalorder %v620, 1
      %v622 = vsel %vm621, %v617, 0.0
      %v623 = vadd.f32 %v613, %v622
      %s624 = sadd.s32 %s604, 2
      %s625 = sld [smem:[#allocation5 + %s624]]
      %s626 = scalar_lea.vmem [#allocation2], %s625
      %v627 = vld [vmem:[%s626] sm:$0x1]
      %p628 = scmp.gt.s32.totalorder %s603, 2
      %s629 = scalar_select %p628, 1, 0
      %v630 = vstv %s629
      %vm631 = vcmp.eq.s32.totalorder %v630, 1
      %v632 = vsel %vm631, %v627, 0.0
      %v633 = vadd.f32 %v623, %v632
      %s634 = smul.u32 0, 2
      %s635 = sadd.s32 %s634, 1
      %s636 = smul.u32 %s635, 8
      %s637 = sadd.s32 %s636, 1
      %s638 = sld [smem:[#allocation4 + %s637]]
      %s639 = smul.u32 %s637, 3
      %s640 = sld [smem:[#allocation5 + %s639]]
      %s641 = sadd.s32 %s640, 8
      %s642 = scalar_lea.vmem [#allocation2], %s641
      %v643 = vld [vmem:[%s642] sm:$0x1]
      %p644 = scmp.gt.s32.totalorder %s638, 0
      %s645 = scalar_select %p644, 1, 0
      %v646 = vstv %s645
      %vm647 = vcmp.eq.s32.totalorder %v646, 1
      %v648 = vsel %vm647, %v643, 0.0
      %v649 = vadd.f32 %v648, 0.0
      %s650 = sadd.s32 %s639, 1
      %s651 = sld [smem:[#allocation5 + %s650]]
      %s652 = sadd.s32 %s651, 8
      %s653 = scalar_lea.vmem [#allocation2], %s652
      %v654 = vld [vmem:[%s653] sm:$0x1]
      %p655 = scmp.gt.s32.totalorder %s638, 1
      %s656 = scalar_select %p655, 1, 0
      %v657 = vstv %s656
      %vm658 = vcmp.eq.s32.totalorder %v657, 1
      %v659 = vsel %vm658, %v654, 0.0
      %v660 = vadd.f32 %v649, %v659
      %s661 = sadd.s32 %s639, 2
      %s662 = sld [smem:[#allocation5 + %s661]]
      %s663 = sadd.s32 %s662, 8
      %s664 = scalar_lea.vmem [#allocation2], %s663
      %v665 = vld [vmem:[%s664] sm:$0x1]
      %p666 = scmp.gt.s32.totalorder %s638, 2
      %s667 = scalar_select %p666, 1, 0
      %v668 = vstv %s667
      %vm669 = vcmp.eq.s32.totalorder %v668, 1
      %v670 = vsel %vm669, %v665, 0.0
      %v671 = vadd.f32 %v660, %v670
      %v673 = vlaneseq
      %v674 = vshrl.u32 %v673, 7
      %v675 = vsub.s32 0, %v674
      %v676 = vrot.slane %v671, %v675
      %vm678 = vcmask 1040384
      %v679 = vsel %vm678, %v633, %v676
      %v683 = vrot.slane %v206, 1
      %v684 = vrot.slane %v208, 1
      %v685 = vrot.slane %v283, 1
      %v689 = vsel %vm678, %v683, %v212
      %v690 = vsel %vm678, %v684, %v214
      %v691 = vsel %vm678, %v685, %v288
      %v692 = vld [vmem:[#allocation12] sm:$0xff]
      %v693 = vld [vmem:[#allocation12 + $0x8] sm:$0xff]
      %v694 = vld [vmem:[#allocation12 + $0x10] sm:$0xff]
      %v695 = vld [vmem:[#allocation12 + $0x18] sm:$0xff]
      %v696 = vld [vmem:[#allocation12 + $0x20] sm:$0xff]
      %v697 = vld [vmem:[#allocation12 + $0x28] sm:$0xff]
      %v698 = vld [vmem:[#allocation12 + $0x30] sm:$0xff]
      %v699 = vld [vmem:[#allocation12 + $0x38] sm:$0xff]
      %v700 = vld [vmem:[#allocation12 + $0x40] sm:$0xff]
      %v701 = vld [vmem:[#allocation12 + $0x48] sm:$0xff]
      %v702 = vld [vmem:[#allocation12 + $0x50] sm:$0xff]
      %v703 = vld [vmem:[#allocation12 + $0x58] sm:$0xff]
      %v704 = vld [vmem:[#allocation12 + $0x60] sm:$0xff]
      %v705 = vld [vmem:[#allocation12 + $0x68] sm:$0xff]
      %v706 = vld [vmem:[#allocation12 + $0x70] sm:$0xff]
      %v707 = vld [vmem:[#allocation12 + $0x78] sm:$0xff]
      %v708 = vld [vmem:[#allocation12 + $0x80] sm:$0xff]
      %v709 = vld [vmem:[#allocation12 + $0x88] sm:$0xff]
      %v710 = vld [vmem:[#allocation12 + $0x90] sm:$0xff]
      %v711 = vld [vmem:[#allocation12 + $0x98] sm:$0xff]
      %v712 = vld [vmem:[#allocation12 + $0xa0] sm:$0xff]
      %v713 = vld [vmem:[#allocation12 + $0xa8] sm:$0xff]
      %v714 = vld [vmem:[#allocation12 + $0xb0] sm:$0xff]
      %v715 = vld [vmem:[#allocation12 + $0xb8] sm:$0xff]
      %v716 = vld [vmem:[#allocation12 + $0xc0] sm:$0xff]
      %v717 = vld [vmem:[#allocation12 + $0xc8] sm:$0xff]
      %v718 = vld [vmem:[#allocation12 + $0xd0] sm:$0xff]
      %v719 = vld [vmem:[#allocation12 + $0xd8] sm:$0xff]
      %v720 = vld [vmem:[#allocation12 + $0xe0] sm:$0xff]
      %v721 = vld [vmem:[#allocation12 + $0xe8] sm:$0xff]
      %v722 = vld [vmem:[#allocation12 + $0xf0] sm:$0xff]
      %v723 = vld [vmem:[#allocation12 + $0xf8] sm:$0xff]
      %724 = vmatprep.subr.mxu0 %v723
      %725 = vmatpush1.msra.mxu0 %v722
      %726 = vmatprep.subr.mxu0 %v721
      %727 = vmatpush1.msra.mxu0 %v720
      %728 = vmatprep.subr.mxu0 %v719
      %729 = vmatpush1.msra.mxu0 %v718
      %730 = vmatprep.subr.mxu0 %v717
      %731 = vmatpush1.msra.mxu0 %v716
      %732 = vmatprep.subr.mxu0 %v715
      %733 = vmatpush1.msra.mxu0 %v714
      %734 = vmatprep.subr.mxu0 %v713
      %735 = vmatpush1.msra.mxu0 %v712
      %736 = vmatprep.subr.mxu0 %v711
      %737 = vmatpush1.msra.mxu0 %v710
      %738 = vmatprep.subr.mxu0 %v709
      %739 = vmatpush1.msra.mxu0 %v708
      %740 = vmatprep.subr.mxu0 %v707
      %741 = vmatpush1.msra.mxu0 %v706
      %742 = vmatprep.subr.mxu0 %v705
      %743 = vmatpush1.msra.mxu0 %v704
      %744 = vmatprep.subr.mxu0 %v703
      %745 = vmatpush1.msra.mxu0 %v702
      %746 = vmatprep.subr.mxu0 %v701
      %747 = vmatpush1.msra.mxu0 %v700
      %748 = vmatprep.subr.mxu0 %v699
      %749 = vmatpush1.msra.mxu0 %v698
      %750 = vmatprep.subr.mxu0 %v697
      %751 = vmatpush1.msra.mxu0 %v696
      %752 = vmatprep.subr.mxu0 %v695
      %753 = vmatpush1.msra.mxu0 %v694
      %754 = vmatprep.subr.mxu0 %v693
      %755 = vmatpush1.msra.mxu0 %v692
      %756 = vmatprep.subr.mxu0 0.0
      %757 = vmatpush2.msra.mxu0 0.0
      %758 = vmatprep.subr.mxu0 0.0
      %759 = vmatpush2.msra.mxu0 0.0
      %760 = vmatprep.subr.mxu0 0.0
      %761 = vmatpush2.msra.mxu0 0.0
      %762 = vmatprep.subr.mxu0 0.0
      %763 = vmatpush2.msra.mxu0 0.0
      %764 = vmatprep.subr.mxu0 0.0
      %765 = vmatpush2.msra.mxu0 0.0
      %766 = vmatprep.subr.mxu0 0.0
      %767 = vmatpush2.msra.mxu0 0.0
      %768 = vmatprep.subr.mxu0 0.0
      %769 = vmatpush2.msra.mxu0 0.0
      %770 = vmatprep.subr.mxu0 0.0
      %771 = vmatpush2.msra.mxu0 0.0
      %772 = vmatprep.subr.mxu0 0.0
      %773 = vmatpush2.msra.mxu0 0.0
      %774 = vmatprep.subr.mxu0 0.0
      %775 = vmatpush2.msra.mxu0 0.0
      %776 = vmatprep.subr.mxu0 0.0
      %777 = vmatpush2.msra.mxu0 0.0
      %778 = vmatprep.subr.mxu0 0.0
      %779 = vmatpush2.msra.mxu0 0.0
      %780 = vmatprep.subr.mxu0 0.0
      %781 = vmatpush2.msra.mxu0 0.0
      %782 = vmatprep.subr.mxu0 0.0
      %783 = vmatpush2.msra.mxu0 0.0
      %784 = vmatprep.subr.mxu0 0.0
      %785 = vmatpush2.msra.mxu0 0.0
      %786 = vmatprep.subr.mxu0 0.0
      %787 = vmatpush2.msra.mxu0 0.0
      %788 = vmatprep.mubr.f32.mxu0 0.0
      %789 = vmatmul.mubr.f32.gmra.mxu0 %v679
      %v790 = vpop.f32.mrf.mxu0
      %v791 = vadd.f32 0.0, %v790
      %v792 = vpop.f32.mrf.mxu0
      %v793 = vadd.f32 0.0, %v792
      %794 = vdwg.mxu0
      %v795 = vadd.f32 %v689, %v791
      %v796 = vadd.f32 %v690, %v793
      %v797 = vxor.u32 %v795, 2147483648
      %v798 = vxor.u32 %v796, 2147483648
      %v799 = vmul.f32 %v797, 1.442695
      %v800 = vpow.pop %v799
      %v801 = vmul.f32 %v798, 1.442695
      %v802 = vpow.pop %v801
      %v803 = vadd.f32 %v800, 1.0
      %v804 = vadd.f32 %v802, 1.0
      %v805 = vrcp.pop %v803
      %v806 = vmul.f32 1.0, %v805
      %v807 = vrcp.pop %v804
      %v808 = vmul.f32 1.0, %v807
      %v809 = vmul.f32 %v806, %v679
      %v810 = vld [vmem:[#allocation13] sm:$0xff]
      %v811 = vld [vmem:[#allocation13 + $0x8] sm:$0xff]
      %v812 = vld [vmem:[#allocation13 + $0x10] sm:$0xff]
      %v813 = vld [vmem:[#allocation13 + $0x18] sm:$0xff]
      %v814 = vld [vmem:[#allocation13 + $0x20] sm:$0xff]
      %v815 = vld [vmem:[#allocation13 + $0x28] sm:$0xff]
      %v816 = vld [vmem:[#allocation13 + $0x30] sm:$0xff]
      %v817 = vld [vmem:[#allocation13 + $0x38] sm:$0xff]
      %v818 = vld [vmem:[#allocation13 + $0x40] sm:$0xff]
      %v819 = vld [vmem:[#allocation13 + $0x48] sm:$0xff]
      %v820 = vld [vmem:[#allocation13 + $0x50] sm:$0xff]
      %v821 = vld [vmem:[#allocation13 + $0x58] sm:$0xff]
      %v822 = vld [vmem:[#allocation13 + $0x60] sm:$0xff]
      %v823 = vld [vmem:[#allocation13 + $0x68] sm:$0xff]
      %v824 = vld [vmem:[#allocation13 + $0x70] sm:$0xff]
      %v825 = vld [vmem:[#allocation13 + $0x78] sm:$0xff]
      %826 = vmatprep.subr.mxu0 0.0
      %827 = vmatpush1.msra.mxu0 %v825
      %828 = vmatprep.subr.mxu0 0.0
      %829 = vmatpush1.msra.mxu0 %v824
      %830 = vmatprep.subr.mxu0 0.0
      %831 = vmatpush1.msra.mxu0 %v823
      %832 = vmatprep.subr.mxu0 0.0
      %833 = vmatpush1.msra.mxu0 %v822
      %834 = vmatprep.subr.mxu0 0.0
      %835 = vmatpush1.msra.mxu0 %v821
      %836 = vmatprep.subr.mxu0 0.0
      %837 = vmatpush1.msra.mxu0 %v820
      %838 = vmatprep.subr.mxu0 0.0
      %839 = vmatpush1.msra.mxu0 %v819
      %840 = vmatprep.subr.mxu0 0.0
      %841 = vmatpush1.msra.mxu0 %v818
      %842 = vmatprep.subr.mxu0 0.0
      %843 = vmatpush1.msra.mxu0 %v817
      %844 = vmatprep.subr.mxu0 0.0
      %845 = vmatpush1.msra.mxu0 %v816
      %846 = vmatprep.subr.mxu0 0.0
      %847 = vmatpush1.msra.mxu0 %v815
      %848 = vmatprep.subr.mxu0 0.0
      %849 = vmatpush1.msra.mxu0 %v814
      %850 = vmatprep.subr.mxu0 0.0
      %851 = vmatpush1.msra.mxu0 %v813
      %852 = vmatprep.subr.mxu0 0.0
      %853 = vmatpush1.msra.mxu0 %v812
      %854 = vmatprep.subr.mxu0 0.0
      %855 = vmatpush1.msra.mxu0 %v811
      %856 = vmatprep.subr.mxu0 0.0
      %857 = vmatpush1.msra.mxu0 %v810
      %858 = vmatprep.subr.mxu0 0.0
      %859 = vmatpush2.msra.mxu0 0.0
      %860 = vmatprep.subr.mxu0 0.0
      %861 = vmatpush2.msra.mxu0 0.0
      %862 = vmatprep.subr.mxu0 0.0
      %863 = vmatpush2.msra.mxu0 0.0
      %864 = vmatprep.subr.mxu0 0.0
      %865 = vmatpush2.msra.mxu0 0.0
      %866 = vmatprep.subr.mxu0 0.0
      %867 = vmatpush2.msra.mxu0 0.0
      %868 = vmatprep.subr.mxu0 0.0
      %869 = vmatpush2.msra.mxu0 0.0
      %870 = vmatprep.subr.mxu0 0.0
      %871 = vmatpush2.msra.mxu0 0.0
      %872 = vmatprep.subr.mxu0 0.0
      %873 = vmatpush2.msra.mxu0 0.0
      %874 = vmatprep.subr.mxu0 0.0
      %875 = vmatpush2.msra.mxu0 0.0
      %876 = vmatprep.subr.mxu0 0.0
      %877 = vmatpush2.msra.mxu0 0.0
      %878 = vmatprep.subr.mxu0 0.0
      %879 = vmatpush2.msra.mxu0 0.0
      %880 = vmatprep.subr.mxu0 0.0
      %881 = vmatpush2.msra.mxu0 0.0
      %882 = vmatprep.subr.mxu0 0.0
      %883 = vmatpush2.msra.mxu0 0.0
      %884 = vmatprep.subr.mxu0 0.0
      %885 = vmatpush2.msra.mxu0 0.0
      %886 = vmatprep.subr.mxu0 0.0
      %887 = vmatpush2.msra.mxu0 0.0
      %888 = vmatprep.subr.mxu0 0.0
      %889 = vmatpush2.msra.mxu0 0.0
      %890 = vmatprep.mubr.f32.mxu0 0.0
      %891 = vmatmul.mubr.f32.gmra.mxu0 %v809
      %v892 = vpop.f32.mrf.mxu0
      %v893 = vadd.f32 0.0, %v892
      %v894 = vpop.f32.mrf.mxu0
      %895 = vdwg.mxu0
      %v896 = vadd.f32 %v691, %v893
      %v897 = vtanh.pop %v896
      %v898 = vsub.f32 1.0, %v808
      %v899 = vmul.f32 %v898, %v679
      %v900 = vmul.f32 %v808, %v897
      %v901 = vadd.f32 %v899, %v900
      %s902 = scalar_lea.vmem [#allocation2], 1
      %903 = vst [vmem:[%s902] sm:$0x1] %v901
      %s904 = scalar_lea.vmem [#allocation2], 9
      %905 = vst [vmem:[%s904 - $0x1] sm:$0x2] %v901
    $region45: #{tpu_custom_call.1} parent=1 // pred_fallthru
      _
    %p906 = scmp.le.s32.totalorder %s90, 2
    // Predicated region
    $region46: #{tpu_custom_call.1} parent=1 // pred_check
      %p907 = pneg %p906
    $region47: #{tpu_custom_call.1} parent=1 // pred_check_branch
      %909 = sbr.rel (%p907) target = $region49
    $region48: #{tpu_custom_call.1} parent=1 // pred_region
      %s910 = smul.u32 0, 16
      %s911 = sadd.s32 %s910, 2
      %s912 = sld [smem:[#allocation4 + %s911]]
      %s913 = smul.u32 %s911, 3
      %s914 = sld [smem:[#allocation5 + %s913]]
      %s915 = scalar_lea.vmem [#allocation2], %s914
      %v916 = vld [vmem:[%s915] sm:$0x1]
      %p917 = scmp.gt.s32.totalorder %s912, 0
      %s918 = scalar_select %p917, 1, 0
      %v919 = vstv %s918
      %vm920 = vcmp.eq.s32.totalorder %v919, 1
      %v921 = vsel %vm920, %v916, 0.0
      %v922 = vadd.f32 %v921, 0.0
      %s923 = sadd.s32 %s913, 1
      %s924 = sld [smem:[#allocation5 + %s923]]
      %s925 = scalar_lea.vmem [#allocation2], %s924
      %v926 = vld [vmem:[%s925] sm:$0x1]
      %p927 = scmp.gt.s32.totalorder %s912, 1
      %s928 = scalar_select %p927, 1, 0
      %v929 = vstv %s928
      %vm930 = vcmp.eq.s32.totalorder %v929, 1
      %v931 = vsel %vm930, %v926, 0.0
      %v932 = vadd.f32 %v922, %v931
      %s933 = sadd.s32 %s913, 2
      %s934 = sld [smem:[#allocation5 + %s933]]
      %s935 = scalar_lea.vmem [#allocation2], %s934
      %v936 = vld [vmem:[%s935] sm:$0x1]
      %p937 = scmp.gt.s32.totalorder %s912, 2
      %s938 = scalar_select %p937, 1, 0
      %v939 = vstv %s938
      %vm940 = vcmp.eq.s32.totalorder %v939, 1
      %v941 = vsel %vm940, %v936, 0.0
      %v942 = vadd.f32 %v932, %v941
      %s943 = smul.u32 0, 2
      %s944 = sadd.s32 %s943, 1
      %s945 = smul.u32 %s944, 8
      %s946 = sadd.s32 %s945, 2
      %s947 = sld [smem:[#allocation4 + %s946]]
      %s948 = smul.u32 %s946, 3
      %s949 = sld [smem:[#allocation5 + %s948]]
      %s950 = sadd.s32 %s949, 8
      %s951 = scalar_lea.vmem [#allocation2], %s950
      %v952 = vld [vmem:[%s951] sm:$0x1]
      %p953 = scmp.gt.s32.totalorder %s947, 0
      %s954 = scalar_select %p953, 1, 0
      %v955 = vstv %s954
      %vm956 = vcmp.eq.s32.totalorder %v955, 1
      %v957 = vsel %vm956, %v952, 0.0
      %v958 = vadd.f32 %v957, 0.0
      %s959 = sadd.s32 %s948, 1
      %s960 = sld [smem:[#allocation5 + %s959]]
      %s961 = sadd.s32 %s960, 8
      %s962 = scalar_lea.vmem [#allocation2], %s961
      %v963 = vld [vmem:[%s962] sm:$0x1]
      %p964 = scmp.gt.s32.totalorder %s947, 1
      %s965 = scalar_select %p964, 1, 0
      %v966 = vstv %s965
      %vm967 = vcmp.eq.s32.totalorder %v966, 1
      %v968 = vsel %vm967, %v963, 0.0
      %v969 = vadd.f32 %v958, %v968
      %s970 = sadd.s32 %s948, 2
      %s971 = sld [smem:[#allocation5 + %s970]]
      %s972 = sadd.s32 %s971, 8
      %s973 = scalar_lea.vmem [#allocation2], %s972
      %v974 = vld [vmem:[%s973] sm:$0x1]
      %p975 = scmp.gt.s32.totalorder %s947, 2
      %s976 = scalar_select %p975, 1, 0
      %v977 = vstv %s976
      %vm978 = vcmp.eq.s32.totalorder %v977, 1
      %v979 = vsel %vm978, %v974, 0.0
      %v980 = vadd.f32 %v969, %v979
      %v982 = vlaneseq
      %v983 = vshrl.u32 %v982, 7
      %v984 = vsub.s32 0, %v983
      %v985 = vrot.slane %v980, %v984
      %vm987 = vcmask 1040384
      %v988 = vsel %vm987, %v942, %v985
      %v992 = vrot.slane %v206, 2
      %v993 = vrot.slane %v208, 2
      %v994 = vrot.slane %v283, 2
      %v1001 = vrot.slane %v212, 1
      %v1002 = vrot.slane %v214, 1
      %v1003 = vrot.slane %v288, 1
      %v1007 = vsel %vm987, %v992, %v1001
      %v1008 = vsel %vm987, %v993, %v1002
      %v1009 = vsel %vm987, %v994, %v1003
      %v1010 = vld [vmem:[#allocation12] sm:$0xff]
      %v1011 = vld [vmem:[#allocation12 + $0x8] sm:$0xff]
      %v1012 = vld [vmem:[#allocation12 + $0x10] sm:$0xff]
      %v1013 = vld [vmem:[#allocation12 + $0x18] sm:$0xff]
      %v1014 = vld [vmem:[#allocation12 + $0x20] sm:$0xff]
      %v1015 = vld [vmem:[#allocation12 + $0x28] sm:$0xff]
      %v1016 = vld [vmem:[#allocation12 + $0x30] sm:$0xff]
      %v1017 = vld [vmem:[#allocation12 + $0x38] sm:$0xff]
      %v1018 = vld [vmem:[#allocation12 + $0x40] sm:$0xff]
      %v1019 = vld [vmem:[#allocation12 + $0x48] sm:$0xff]
      %v1020 = vld [vmem:[#allocation12 + $0x50] sm:$0xff]
      %v1021 = vld [vmem:[#allocation12 + $0x58] sm:$0xff]
      %v1022 = vld [vmem:[#allocation12 + $0x60] sm:$0xff]
      %v1023 = vld [vmem:[#allocation12 + $0x68] sm:$0xff]
      %v1024 = vld [vmem:[#allocation12 + $0x70] sm:$0xff]
      %v1025 = vld [vmem:[#allocation12 + $0x78] sm:$0xff]
      %v1026 = vld [vmem:[#allocation12 + $0x80] sm:$0xff]
      %v1027 = vld [vmem:[#allocation12 + $0x88] sm:$0xff]
      %v1028 = vld [vmem:[#allocation12 + $0x90] sm:$0xff]
      %v1029 = vld [vmem:[#allocation12 + $0x98] sm:$0xff]
      %v1030 = vld [vmem:[#allocation12 + $0xa0] sm:$0xff]
      %v1031 = vld [vmem:[#allocation12 + $0xa8] sm:$0xff]
      %v1032 = vld [vmem:[#allocation12 + $0xb0] sm:$0xff]
      %v1033 = vld [vmem:[#allocation12 + $0xb8] sm:$0xff]
      %v1034 = vld [vmem:[#allocation12 + $0xc0] sm:$0xff]
      %v1035 = vld [vmem:[#allocation12 + $0xc8] sm:$0xff]
      %v1036 = vld [vmem:[#allocation12 + $0xd0] sm:$0xff]
      %v1037 = vld [vmem:[#allocation12 + $0xd8] sm:$0xff]
      %v1038 = vld [vmem:[#allocation12 + $0xe0] sm:$0xff]
      %v1039 = vld [vmem:[#allocation12 + $0xe8] sm:$0xff]
      %v1040 = vld [vmem:[#allocation12 + $0xf0] sm:$0xff]
      %v1041 = vld [vmem:[#allocation12 + $0xf8] sm:$0xff]
      %1042 = vmatprep.subr.mxu0 %v1041
      %1043 = vmatpush1.msra.mxu0 %v1040
      %1044 = vmatprep.subr.mxu0 %v1039
      %1045 = vmatpush1.msra.mxu0 %v1038
      %1046 = vmatprep.subr.mxu0 %v1037
      %1047 = vmatpush1.msra.mxu0 %v1036
      %1048 = vmatprep.subr.mxu0 %v1035
      %1049 = vmatpush1.msra.mxu0 %v1034
      %1050 = vmatprep.subr.mxu0 %v1033
      %1051 = vmatpush1.msra.mxu0 %v1032
      %1052 = vmatprep.subr.mxu0 %v1031
      %1053 = vmatpush1.msra.mxu0 %v1030
      %1054 = vmatprep.subr.mxu0 %v1029
      %1055 = vmatpush1.msra.mxu0 %v1028
      %1056 = vmatprep.subr.mxu0 %v1027
      %1057 = vmatpush1.msra.mxu0 %v1026
      %1058 = vmatprep.subr.mxu0 %v1025
      %1059 = vmatpush1.msra.mxu0 %v1024
      %1060 = vmatprep.subr.mxu0 %v1023
      %1061 = vmatpush1.msra.mxu0 %v1022
      %1062 = vmatprep.subr.mxu0 %v1021
      %1063 = vmatpush1.msra.mxu0 %v1020
      %1064 = vmatprep.subr.mxu0 %v1019
      %1065 = vmatpush1.msra.mxu0 %v1018
      %1066 = vmatprep.subr.mxu0 %v1017
      %1067 = vmatpush1.msra.mxu0 %v1016
      %1068 = vmatprep.subr.mxu0 %v1015
      %1069 = vmatpush1.msra.mxu0 %v1014
      %1070 = vmatprep.subr.mxu0 %v1013
      %1071 = vmatpush1.msra.mxu0 %v1012
      %1072 = vmatprep.subr.mxu0 %v1011
      %1073 = vmatpush1.msra.mxu0 %v1010
      %1074 = vmatprep.subr.mxu0 0.0
      %1075 = vmatpush2.msra.mxu0 0.0
      %1076 = vmatprep.subr.mxu0 0.0
      %1077 = vmatpush2.msra.mxu0 0.0
      %1078 = vmatprep.subr.mxu0 0.0
      %1079 = vmatpush2.msra.mxu0 0.0
      %1080 = vmatprep.subr.mxu0 0.0
      %1081 = vmatpush2.msra.mxu0 0.0
      %1082 = vmatprep.subr.mxu0 0.0
      %1083 = vmatpush2.msra.mxu0 0.0
      %1084 = vmatprep.subr.mxu0 0.0
      %1085 = vmatpush2.msra.mxu0 0.0
      %1086 = vmatprep.subr.mxu0 0.0
      %1087 = vmatpush2.msra.mxu0 0.0
      %1088 = vmatprep.subr.mxu0 0.0
      %1089 = vmatpush2.msra.mxu0 0.0
      %1090 = vmatprep.subr.mxu0 0.0
      %1091 = vmatpush2.msra.mxu0 0.0
      %1092 = vmatprep.subr.mxu0 0.0
      %1093 = vmatpush2.msra.mxu0 0.0
      %1094 = vmatprep.subr.mxu0 0.0
      %1095 = vmatpush2.msra.mxu0 0.0
      %1096 = vmatprep.subr.mxu0 0.0
      %1097 = vmatpush2.msra.mxu0 0.0
      %1098 = vmatprep.subr.mxu0 0.0
      %1099 = vmatpush2.msra.mxu0 0.0
      %1100 = vmatprep.subr.mxu0 0.0
      %1101 = vmatpush2.msra.mxu0 0.0
      %1102 = vmatprep.subr.mxu0 0.0
      %1103 = vmatpush2.msra.mxu0 0.0
      %1104 = vmatprep.subr.mxu0 0.0
      %1105 = vmatpush2.msra.mxu0 0.0
      %1106 = vmatprep.mubr.f32.mxu0 0.0
      %1107 = vmatmul.mubr.f32.gmra.mxu0 %v988
      %v1108 = vpop.f32.mrf.mxu0
      %v1109 = vadd.f32 0.0, %v1108
      %v1110 = vpop.f32.mrf.mxu0
      %v1111 = vadd.f32 0.0, %v1110
      %1112 = vdwg.mxu0
      %v1113 = vadd.f32 %v1007, %v1109
      %v1114 = vadd.f32 %v1008, %v1111
      %v1115 = vxor.u32 %v1113, 2147483648
      %v1116 = vxor.u32 %v1114, 2147483648
      %v1117 = vmul.f32 %v1115, 1.442695
      %v1118 = vpow.pop %v1117
      %v1119 = vmul.f32 %v1116, 1.442695
      %v1120 = vpow.pop %v1119
      %v1121 = vadd.f32 %v1118, 1.0
      %v1122 = vadd.f32 %v1120, 1.0
      %v1123 = vrcp.pop %v1121
      %v1124 = vmul.f32 1.0, %v1123
      %v1125 = vrcp.pop %v1122
      %v1126 = vmul.f32 1.0, %v1125
      %v1127 = vmul.f32 %v1124, %v988
      %v1128 = vld [vmem:[#allocation13] sm:$0xff]
      %v1129 = vld [vmem:[#allocation13 + $0x8] sm:$0xff]
      %v1130 = vld [vmem:[#allocation13 + $0x10] sm:$0xff]
      %v1131 = vld [vmem:[#allocation13 + $0x18] sm:$0xff]
      %v1132 = vld [vmem:[#allocation13 + $0x20] sm:$0xff]
      %v1133 = vld [vmem:[#allocation13 + $0x28] sm:$0xff]
      %v1134 = vld [vmem:[#allocation13 + $0x30] sm:$0xff]
      %v1135 = vld [vmem:[#allocation13 + $0x38] sm:$0xff]
      %v1136 = vld [vmem:[#allocation13 + $0x40] sm:$0xff]
      %v1137 = vld [vmem:[#allocation13 + $0x48] sm:$0xff]
      %v1138 = vld [vmem:[#allocation13 + $0x50] sm:$0xff]
      %v1139 = vld [vmem:[#allocation13 + $0x58] sm:$0xff]
      %v1140 = vld [vmem:[#allocation13 + $0x60] sm:$0xff]
      %v1141 = vld [vmem:[#allocation13 + $0x68] sm:$0xff]
      %v1142 = vld [vmem:[#allocation13 + $0x70] sm:$0xff]
      %v1143 = vld [vmem:[#allocation13 + $0x78] sm:$0xff]
      %1144 = vmatprep.subr.mxu0 0.0
      %1145 = vmatpush1.msra.mxu0 %v1143
      %1146 = vmatprep.subr.mxu0 0.0
      %1147 = vmatpush1.msra.mxu0 %v1142
      %1148 = vmatprep.subr.mxu0 0.0
      %1149 = vmatpush1.msra.mxu0 %v1141
      %1150 = vmatprep.subr.mxu0 0.0
      %1151 = vmatpush1.msra.mxu0 %v1140
      %1152 = vmatprep.subr.mxu0 0.0
      %1153 = vmatpush1.msra.mxu0 %v1139
      %1154 = vmatprep.subr.mxu0 0.0
      %1155 = vmatpush1.msra.mxu0 %v1138
      %1156 = vmatprep.subr.mxu0 0.0
      %1157 = vmatpush1.msra.mxu0 %v1137
      %1158 = vmatprep.subr.mxu0 0.0
      %1159 = vmatpush1.msra.mxu0 %v1136
      %1160 = vmatprep.subr.mxu0 0.0
      %1161 = vmatpush1.msra.mxu0 %v1135
      %1162 = vmatprep.subr.mxu0 0.0
      %1163 = vmatpush1.msra.mxu0 %v1134
      %1164 = vmatprep.subr.mxu0 0.0
      %1165 = vmatpush1.msra.mxu0 %v1133
      %1166 = vmatprep.subr.mxu0 0.0
      %1167 = vmatpush1.msra.mxu0 %v1132
      %1168 = vmatprep.subr.mxu0 0.0
      %1169 = vmatpush1.msra.mxu0 %v1131
      %1170 = vmatprep.subr.mxu0 0.0
      %1171 = vmatpush1.msra.mxu0 %v1130
      %1172 = vmatprep.subr.mxu0 0.0
      %1173 = vmatpush1.msra.mxu0 %v1129
      %1174 = vmatprep.subr.mxu0 0.0
      %1175 = vmatpush1.msra.mxu0 %v1128
      %1176 = vmatprep.subr.mxu0 0.0
      %1177 = vmatpush2.msra.mxu0 0.0
      %1178 = vmatprep.subr.mxu0 0.0
      %1179 = vmatpush2.msra.mxu0 0.0
      %1180 = vmatprep.subr.mxu0 0.0
      %1181 = vmatpush2.msra.mxu0 0.0
      %1182 = vmatprep.subr.mxu0 0.0
      %1183 = vmatpush2.msra.mxu0 0.0
      %1184 = vmatprep.subr.mxu0 0.0
      %1185 = vmatpush2.msra.mxu0 0.0
      %1186 = vmatprep.subr.mxu0 0.0
      %1187 = vmatpush2.msra.mxu0 0.0
      %1188 = vmatprep.subr.mxu0 0.0
      %1189 = vmatpush2.msra.mxu0 0.0
      %1190 = vmatprep.subr.mxu0 0.0
      %1191 = vmatpush2.msra.mxu0 0.0
      %1192 = vmatprep.subr.mxu0 0.0
      %1193 = vmatpush2.msra.mxu0 0.0
      %1194 = vmatprep.subr.mxu0 0.0
      %1195 = vmatpush2.msra.mxu0 0.0
      %1196 = vmatprep.subr.mxu0 0.0
      %1197 = vmatpush2.msra.mxu0 0.0
      %1198 = vmatprep.subr.mxu0 0.0
      %1199 = vmatpush2.msra.mxu0 0.0
      %1200 = vmatprep.subr.mxu0 0.0
      %1201 = vmatpush2.msra.mxu0 0.0
      %1202 = vmatprep.subr.mxu0 0.0
      %1203 = vmatpush2.msra.mxu0 0.0
      %1204 = vmatprep.subr.mxu0 0.0
      %1205 = vmatpush2.msra.mxu0 0.0
      %1206 = vmatprep.subr.mxu0 0.0
      %1207 = vmatpush2.msra.mxu0 0.0
      %1208 = vmatprep.mubr.f32.mxu0 0.0
      %1209 = vmatmul.mubr.f32.gmra.mxu0 %v1127
      %v1210 = vpop.f32.mrf.mxu0
      %v1211 = vadd.f32 0.0, %v1210
      %v1212 = vpop.f32.mrf.mxu0
      %1213 = vdwg.mxu0
      %v1214 = vadd.f32 %v1009, %v1211
      %v1215 = vtanh.pop %v1214
      %v1216 = vsub.f32 1.0, %v1126
      %v1217 = vmul.f32 %v1216, %v988
      %v1218 = vmul.f32 %v1126, %v1215
      %v1219 = vadd.f32 %v1217, %v1218
      %s1220 = scalar_lea.vmem [#allocation2], 2
      %1221 = vst [vmem:[%s1220] sm:$0x1] %v1219
      %s1222 = scalar_lea.vmem [#allocation2], 10
      %1223 = vst [vmem:[%s1222 - $0x1] sm:$0x2] %v1219
    $region49: #{tpu_custom_call.1} parent=1 // pred_fallthru
      _
    %p1224 = scmp.le.s32.totalorder %s90, 3
    // Predicated region
    $region50: #{tpu_custom_call.1} parent=1 // pred_check
      %p1225 = pneg %p1224
    $region51: #{tpu_custom_call.1} parent=1 // pred_check_branch
      %1227 = sbr.rel (%p1225) target = $region53
    $region52: #{tpu_custom_call.1} parent=1 // pred_region
      %s1228 = smul.u32 0, 16
      %s1229 = sadd.s32 %s1228, 3
      %s1230 = sld [smem:[#allocation4 + %s1229]]
      %s1231 = smul.u32 %s1229, 3
      %s1232 = sld [smem:[#allocation5 + %s1231]]
      %s1233 = scalar_lea.vmem [#allocation2], %s1232
      %v1234 = vld [vmem:[%s1233] sm:$0x1]
      %p1235 = scmp.gt.s32.totalorder %s1230, 0
      %s1236 = scalar_select %p1235, 1, 0
      %v1237 = vstv %s1236
      %vm1238 = vcmp.eq.s32.totalorder %v1237, 1
      %v1239 = vsel %vm1238, %v1234, 0.0
      %v1240 = vadd.f32 %v1239, 0.0
      %s1241 = sadd.s32 %s1231, 1
      %s1242 = sld [smem:[#allocation5 + %s1241]]
      %s1243 = scalar_lea.vmem [#allocation2], %s1242
      %v1244 = vld [vmem:[%s1243] sm:$0x1]
      %p1245 = scmp.gt.s32.totalorder %s1230, 1
      %s1246 = scalar_select %p1245, 1, 0
      %v1247 = vstv %s1246
      %vm1248 = vcmp.eq.s32.totalorder %v1247, 1
      %v1249 = vsel %vm1248, %v1244, 0.0
      %v1250 = vadd.f32 %v1240, %v1249
      %s1251 = sadd.s32 %s1231, 2
      %s1252 = sld [smem:[#allocation5 + %s1251]]
      %s1253 = scalar_lea.vmem [#allocation2], %s1252
      %v1254 = vld [vmem:[%s1253] sm:$0x1]
      %p1255 = scmp.gt.s32.totalorder %s1230, 2
      %s1256 = scalar_select %p1255, 1, 0
      %v1257 = vstv %s1256
      %vm1258 = vcmp.eq.s32.totalorder %v1257, 1
      %v1259 = vsel %vm1258, %v1254, 0.0
      %v1260 = vadd.f32 %v1250, %v1259
      %s1261 = smul.u32 0, 2
      %s1262 = sadd.s32 %s1261, 1
      %s1263 = smul.u32 %s1262, 8
      %s1264 = sadd.s32 %s1263, 3
      %s1265 = sld [smem:[#allocation4 + %s1264]]
      %s1266 = smul.u32 %s1264, 3
      %s1267 = sld [smem:[#allocation5 + %s1266]]
      %s1268 = sadd.s32 %s1267, 8
      %s1269 = scalar_lea.vmem [#allocation2], %s1268
      %v1270 = vld [vmem:[%s1269] sm:$0x1]
      %p1271 = scmp.gt.s32.totalorder %s1265, 0
      %s1272 = scalar_select %p1271, 1, 0
      %v1273 = vstv %s1272
      %vm1274 = vcmp.eq.s32.totalorder %v1273, 1
      %v1275 = vsel %vm1274, %v1270, 0.0
      %v1276 = vadd.f32 %v1275, 0.0
      %s1277 = sadd.s32 %s1266, 1
      %s1278 = sld [smem:[#allocation5 + %s1277]]
      %s1279 = sadd.s32 %s1278, 8
      %s1280 = scalar_lea.vmem [#allocation2], %s1279
      %v1281 = vld [vmem:[%s1280] sm:$0x1]
      %p1282 = scmp.gt.s32.totalorder %s1265, 1
      %s1283 = scalar_select %p1282, 1, 0
      %v1284 = vstv %s1283
      %vm1285 = vcmp.eq.s32.totalorder %v1284, 1
      %v1286 = vsel %vm1285, %v1281, 0.0
      %v1287 = vadd.f32 %v1276, %v1286
      %s1288 = sadd.s32 %s1266, 2
      %s1289 = sld [smem:[#allocation5 + %s1288]]
      %s1290 = sadd.s32 %s1289, 8
      %s1291 = scalar_lea.vmem [#allocation2], %s1290
      %v1292 = vld [vmem:[%s1291] sm:$0x1]
      %p1293 = scmp.gt.s32.totalorder %s1265, 2
      %s1294 = scalar_select %p1293, 1, 0
      %v1295 = vstv %s1294
      %vm1296 = vcmp.eq.s32.totalorder %v1295, 1
      %v1297 = vsel %vm1296, %v1292, 0.0
      %v1298 = vadd.f32 %v1287, %v1297
      %v1300 = vlaneseq
      %v1301 = vshrl.u32 %v1300, 7
      %v1302 = vsub.s32 0, %v1301
      %v1303 = vrot.slane %v1298, %v1302
      %vm1305 = vcmask 1040384
      %v1306 = vsel %vm1305, %v1260, %v1303
      %v1310 = vrot.slane %v206, 3
      %v1311 = vrot.slane %v208, 3
      %v1312 = vrot.slane %v283, 3
      %v1319 = vrot.slane %v212, 2
      %v1320 = vrot.slane %v214, 2
      %v1321 = vrot.slane %v288, 2
      %v1325 = vsel %vm1305, %v1310, %v1319
      %v1326 = vsel %vm1305, %v1311, %v1320
      %v1327 = vsel %vm1305, %v1312, %v1321
      %v1328 = vld [vmem:[#allocation12] sm:$0xff]
      %v1329 = vld [vmem:[#allocation12 + $0x8] sm:$0xff]
      %v1330 = vld [vmem:[#allocation12 + $0x10] sm:$0xff]
      %v1331 = vld [vmem:[#allocation12 + $0x18] sm:$0xff]
      %v1332 = vld [vmem:[#allocation12 + $0x20] sm:$0xff]
      %v1333 = vld [vmem:[#allocation12 + $0x28] sm:$0xff]
      %v1334 = vld [vmem:[#allocation12 + $0x30] sm:$0xff]
      %v1335 = vld [vmem:[#allocation12 + $0x38] sm:$0xff]
      %v1336 = vld [vmem:[#allocation12 + $0x40] sm:$0xff]
      %v1337 = vld [vmem:[#allocation12 + $0x48] sm:$0xff]
      %v1338 = vld [vmem:[#allocation12 + $0x50] sm:$0xff]
      %v1339 = vld [vmem:[#allocation12 + $0x58] sm:$0xff]
      %v1340 = vld [vmem:[#allocation12 + $0x60] sm:$0xff]
      %v1341 = vld [vmem:[#allocation12 + $0x68] sm:$0xff]
      %v1342 = vld [vmem:[#allocation12 + $0x70] sm:$0xff]
      %v1343 = vld [vmem:[#allocation12 + $0x78] sm:$0xff]
      %v1344 = vld [vmem:[#allocation12 + $0x80] sm:$0xff]
      %v1345 = vld [vmem:[#allocation12 + $0x88] sm:$0xff]
      %v1346 = vld [vmem:[#allocation12 + $0x90] sm:$0xff]
      %v1347 = vld [vmem:[#allocation12 + $0x98] sm:$0xff]
      %v1348 = vld [vmem:[#allocation12 + $0xa0] sm:$0xff]
      %v1349 = vld [vmem:[#allocation12 + $0xa8] sm:$0xff]
      %v1350 = vld [vmem:[#allocation12 + $0xb0] sm:$0xff]
      %v1351 = vld [vmem:[#allocation12 + $0xb8] sm:$0xff]
      %v1352 = vld [vmem:[#allocation12 + $0xc0] sm:$0xff]
      %v1353 = vld [vmem:[#allocation12 + $0xc8] sm:$0xff]
      %v1354 = vld [vmem:[#allocation12 + $0xd0] sm:$0xff]
      %v1355 = vld [vmem:[#allocation12 + $0xd8] sm:$0xff]
      %v1356 = vld [vmem:[#allocation12 + $0xe0] sm:$0xff]
      %v1357 = vld [vmem:[#allocation12 + $0xe8] sm:$0xff]
      %v1358 = vld [vmem:[#allocation12 + $0xf0] sm:$0xff]
      %v1359 = vld [vmem:[#allocation12 + $0xf8] sm:$0xff]
      %1360 = vmatprep.subr.mxu0 %v1359
      %1361 = vmatpush1.msra.mxu0 %v1358
      %1362 = vmatprep.subr.mxu0 %v1357
      %1363 = vmatpush1.msra.mxu0 %v1356
      %1364 = vmatprep.subr.mxu0 %v1355
      %1365 = vmatpush1.msra.mxu0 %v1354
      %1366 = vmatprep.subr.mxu0 %v1353
      %1367 = vmatpush1.msra.mxu0 %v1352
      %1368 = vmatprep.subr.mxu0 %v1351
      %1369 = vmatpush1.msra.mxu0 %v1350
      %1370 = vmatprep.subr.mxu0 %v1349
      %1371 = vmatpush1.msra.mxu0 %v1348
      %1372 = vmatprep.subr.mxu0 %v1347
      %1373 = vmatpush1.msra.mxu0 %v1346
      %1374 = vmatprep.subr.mxu0 %v1345
      %1375 = vmatpush1.msra.mxu0 %v1344
      %1376 = vmatprep.subr.mxu0 %v1343
      %1377 = vmatpush1.msra.mxu0 %v1342
      %1378 = vmatprep.subr.mxu0 %v1341
      %1379 = vmatpush1.msra.mxu0 %v1340
      %1380 = vmatprep.subr.mxu0 %v1339
      %1381 = vmatpush1.msra.mxu0 %v1338
      %1382 = vmatprep.subr.mxu0 %v1337
      %1383 = vmatpush1.msra.mxu0 %v1336
      %1384 = vmatprep.subr.mxu0 %v1335
      %1385 = vmatpush1.msra.mxu0 %v1334
      %1386 = vmatprep.subr.mxu0 %v1333
      %1387 = vmatpush1.msra.mxu0 %v1332
      %1388 = vmatprep.subr.mxu0 %v1331
      %1389 = vmatpush1.msra.mxu0 %v1330
      %1390 = vmatprep.subr.mxu0 %v1329
      %1391 = vmatpush1.msra.mxu0 %v1328
      %1392 = vmatprep.subr.mxu0 0.0
      %1393 = vmatpush2.msra.mxu0 0.0
      %1394 = vmatprep.subr.mxu0 0.0
      %1395 = vmatpush2.msra.mxu0 0.0
      %1396 = vmatprep.subr.mxu0 0.0
      %1397 = vmatpush2.msra.mxu0 0.0
      %1398 = vmatprep.subr.mxu0 0.0
      %1399 = vmatpush2.msra.mxu0 0.0
      %1400 = vmatprep.subr.mxu0 0.0
      %1401 = vmatpush2.msra.mxu0 0.0
      %1402 = vmatprep.subr.mxu0 0.0
      %1403 = vmatpush2.msra.mxu0 0.0
      %1404 = vmatprep.subr.mxu0 0.0
      %1405 = vmatpush2.msra.mxu0 0.0
      %1406 = vmatprep.subr.mxu0 0.0
      %1407 = vmatpush2.msra.mxu0 0.0
      %1408 = vmatprep.subr.mxu0 0.0
      %1409 = vmatpush2.msra.mxu0 0.0
      %1410 = vmatprep.subr.mxu0 0.0
      %1411 = vmatpush2.msra.mxu0 0.0
      %1412 = vmatprep.subr.mxu0 0.0
      %1413 = vmatpush2.msra.mxu0 0.0
      %1414 = vmatprep.subr.mxu0 0.0
      %1415 = vmatpush2.msra.mxu0 0.0
      %1416 = vmatprep.subr.mxu0 0.0
      %1417 = vmatpush2.msra.mxu0 0.0
      %1418 = vmatprep.subr.mxu0 0.0
      %1419 = vmatpush2.msra.mxu0 0.0
      %1420 = vmatprep.subr.mxu0 0.0
      %1421 = vmatpush2.msra.mxu0 0.0
      %1422 = vmatprep.subr.mxu0 0.0
      %1423 = vmatpush2.msra.mxu0 0.0
      %1424 = vmatprep.mubr.f32.mxu0 0.0
      %1425 = vmatmul.mubr.f32.gmra.mxu0 %v1306
      %v1426 = vpop.f32.mrf.mxu0
      %v1427 = vadd.f32 0.0, %v1426
      %v1428 = vpop.f32.mrf.mxu0
      %v1429 = vadd.f32 0.0, %v1428
      %1430 = vdwg.mxu0
      %v1431 = vadd.f32 %v1325, %v1427
      %v1432 = vadd.f32 %v1326, %v1429
      %v1433 = vxor.u32 %v1431, 2147483648
      %v1434 = vxor.u32 %v1432, 2147483648
      %v1435 = vmul.f32 %v1433, 1.442695
      %v1436 = vpow.pop %v1435
      %v1437 = vmul.f32 %v1434, 1.442695
      %v1438 = vpow.pop %v1437
      %v1439 = vadd.f32 %v1436, 1.0
      %v1440 = vadd.f32 %v1438, 1.0
      %v1441 = vrcp.pop %v1439
      %v1442 = vmul.f32 1.0, %v1441
      %v1443 = vrcp.pop %v1440
      %v1444 = vmul.f32 1.0, %v1443
      %v1445 = vmul.f32 %v1442, %v1306
      %v1446 = vld [vmem:[#allocation13] sm:$0xff]
      %v1447 = vld [vmem:[#allocation13 + $0x8] sm:$0xff]
      %v1448 = vld [vmem:[#allocation13 + $0x10] sm:$0xff]
      %v1449 = vld [vmem:[#allocation13 + $0x18] sm:$0xff]
      %v1450 = vld [vmem:[#allocation13 + $0x20] sm:$0xff]
      %v1451 = vld [vmem:[#allocation13 + $0x28] sm:$0xff]
      %v1452 = vld [vmem:[#allocation13 + $0x30] sm:$0xff]
      %v1453 = vld [vmem:[#allocation13 + $0x38] sm:$0xff]
      %v1454 = vld [vmem:[#allocation13 + $0x40] sm:$0xff]
      %v1455 = vld [vmem:[#allocation13 + $0x48] sm:$0xff]
      %v1456 = vld [vmem:[#allocation13 + $0x50] sm:$0xff]
      %v1457 = vld [vmem:[#allocation13 + $0x58] sm:$0xff]
      %v1458 = vld [vmem:[#allocation13 + $0x60] sm:$0xff]
      %v1459 = vld [vmem:[#allocation13 + $0x68] sm:$0xff]
      %v1460 = vld [vmem:[#allocation13 + $0x70] sm:$0xff]
      %v1461 = vld [vmem:[#allocation13 + $0x78] sm:$0xff]
      %1462 = vmatprep.subr.mxu0 0.0
      %1463 = vmatpush1.msra.mxu0 %v1461
      %1464 = vmatprep.subr.mxu0 0.0
      %1465 = vmatpush1.msra.mxu0 %v1460
      %1466 = vmatprep.subr.mxu0 0.0
      %1467 = vmatpush1.msra.mxu0 %v1459
      %1468 = vmatprep.subr.mxu0 0.0
      %1469 = vmatpush1.msra.mxu0 %v1458
      %1470 = vmatprep.subr.mxu0 0.0
      %1471 = vmatpush1.msra.mxu0 %v1457
      %1472 = vmatprep.subr.mxu0 0.0
      %1473 = vmatpush1.msra.mxu0 %v1456
      %1474 = vmatprep.subr.mxu0 0.0
      %1475 = vmatpush1.msra.mxu0 %v1455
      %1476 = vmatprep.subr.mxu0 0.0
      %1477 = vmatpush1.msra.mxu0 %v1454
      %1478 = vmatprep.subr.mxu0 0.0
      %1479 = vmatpush1.msra.mxu0 %v1453
      %1480 = vmatprep.subr.mxu0 0.0
      %1481 = vmatpush1.msra.mxu0 %v1452
      %1482 = vmatprep.subr.mxu0 0.0
      %1483 = vmatpush1.msra.mxu0 %v1451
      %1484 = vmatprep.subr.mxu0 0.0
      %1485 = vmatpush1.msra.mxu0 %v1450
      %1486 = vmatprep.subr.mxu0 0.0
      %1487 = vmatpush1.msra.mxu0 %v1449
      %1488 = vmatprep.subr.mxu0 0.0
      %1489 = vmatpush1.msra.mxu0 %v1448
      %1490 = vmatprep.subr.mxu0 0.0
      %1491 = vmatpush1.msra.mxu0 %v1447
      %1492 = vmatprep.subr.mxu0 0.0
      %1493 = vmatpush1.msra.mxu0 %v1446
      %1494 = vmatprep.subr.mxu0 0.0
      %1495 = vmatpush2.msra.mxu0 0.0
      %1496 = vmatprep.subr.mxu0 0.0
      %1497 = vmatpush2.msra.mxu0 0.0
      %1498 = vmatprep.subr.mxu0 0.0
      %1499 = vmatpush2.msra.mxu0 0.0
      %1500 = vmatprep.subr.mxu0 0.0
      %1501 = vmatpush2.msra.mxu0 0.0
      %1502 = vmatprep.subr.mxu0 0.0
      %1503 = vmatpush2.msra.mxu0 0.0
      %1504 = vmatprep.subr.mxu0 0.0
      %1505 = vmatpush2.msra.mxu0 0.0
      %1506 = vmatprep.subr.mxu0 0.0
      %1507 = vmatpush2.msra.mxu0 0.0
      %1508 = vmatprep.subr.mxu0 0.0
      %1509 = vmatpush2.msra.mxu0 0.0
      %1510 = vmatprep.subr.mxu0 0.0
      %1511 = vmatpush2.msra.mxu0 0.0
      %1512 = vmatprep.subr.mxu0 0.0
      %1513 = vmatpush2.msra.mxu0 0.0
      %1514 = vmatprep.subr.mxu0 0.0
      %1515 = vmatpush2.msra.mxu0 0.0
      %1516 = vmatprep.subr.mxu0 0.0
      %1517 = vmatpush2.msra.mxu0 0.0
      %1518 = vmatprep.subr.mxu0 0.0
      %1519 = vmatpush2.msra.mxu0 0.0
      %1520 = vmatprep.subr.mxu0 0.0
      %1521 = vmatpush2.msra.mxu0 0.0
      %1522 = vmatprep.subr.mxu0 0.0
      %1523 = vmatpush2.msra.mxu0 0.0
      %1524 = vmatprep.subr.mxu0 0.0
      %1525 = vmatpush2.msra.mxu0 0.0
      %1526 = vmatprep.mubr.f32.mxu0 0.0
      %1527 = vmatmul.mubr.f32.gmra.mxu0 %v1445
      %v1528 = vpop.f32.mrf.mxu0
      %v1529 = vadd.f32 0.0, %v1528
      %v1530 = vpop.f32.mrf.mxu0
      %1531 = vdwg.mxu0
      %v1532 = vadd.f32 %v1327, %v1529
      %v1533 = vtanh.pop %v1532
      %v1534 = vsub.f32 1.0, %v1444
      %v1535 = vmul.f32 %v1534, %v1306
      %v1536 = vmul.f32 %v1444, %v1533
      %v1537 = vadd.f32 %v1535, %v1536
      %s1538 = scalar_lea.vmem [#allocation2], 3
      %1539 = vst [vmem:[%s1538] sm:$0x1] %v1537
      %s1540 = scalar_lea.vmem [#allocation2], 11
      %1541 = vst [vmem:[%s1540 - $0x1] sm:$0x2] %v1537
    $region53: #{tpu_custom_call.1} parent=1 // pred_fallthru
      _
    %p1542 = scmp.le.s32.totalorder %s90, 4
    // Predicated region
    $region54: #{tpu_custom_call.1} parent=1 // pred_check
      %p1543 = pneg %p1542
    $region55: #{tpu_custom_call.1} parent=1 // pred_check_branch
      %1545 = sbr.rel (%p1543) target = $region57
    $region56: #{tpu_custom_call.1} parent=1 // pred_region
      %s1546 = smul.u32 0, 16
      %s1547 = sadd.s32 %s1546, 4
      %s1548 = sld [smem:[#allocation4 + %s1547]]
      %s1549 = smul.u32 %s1547, 3
      %s1550 = sld [smem:[#allocation5 + %s1549]]
      %s1551 = scalar_lea.vmem [#allocation2], %s1550
      %v1552 = vld [vmem:[%s1551] sm:$0x1]
      %p1553 = scmp.gt.s32.totalorder %s1548, 0
      %s1554 = scalar_select %p1553, 1, 0
      %v1555 = vstv %s1554
      %vm1556 = vcmp.eq.s32.totalorder %v1555, 1
      %v1557 = vsel %vm1556, %v1552, 0.0
      %v1558 = vadd.f32 %v1557, 0.0
      %s1559 = sadd.s32 %s1549, 1
      %s1560 = sld [smem:[#allocation5 + %s1559]]
      %s1561 = scalar_lea.vmem [#allocation2], %s1560
      %v1562 = vld [vmem:[%s1561] sm:$0x1]
      %p1563 = scmp.gt.s32.totalorder %s1548, 1
      %s1564 = scalar_select %p1563, 1, 0
      %v1565 = vstv %s1564
      %vm1566 = vcmp.eq.s32.totalorder %v1565, 1
      %v1567 = vsel %vm1566, %v1562, 0.0
      %v1568 = vadd.f32 %v1558, %v1567
      %s1569 = sadd.s32 %s1549, 2
      %s1570 = sld [smem:[#allocation5 + %s1569]]
      %s1571 = scalar_lea.vmem [#allocation2], %s1570
      %v1572 = vld [vmem:[%s1571] sm:$0x1]
      %p1573 = scmp.gt.s32.totalorder %s1548, 2
      %s1574 = scalar_select %p1573, 1, 0
      %v1575 = vstv %s1574
      %vm1576 = vcmp.eq.s32.totalorder %v1575, 1
      %v1577 = vsel %vm1576, %v1572, 0.0
      %v1578 = vadd.f32 %v1568, %v1577
      %s1579 = smul.u32 0, 2
      %s1580 = sadd.s32 %s1579, 1
      %s1581 = smul.u32 %s1580, 8
      %s1582 = sadd.s32 %s1581, 4
      %s1583 = sld [smem:[#allocation4 + %s1582]]
      %s1584 = smul.u32 %s1582, 3
      %s1585 = sld [smem:[#allocation5 + %s1584]]
      %s1586 = sadd.s32 %s1585, 8
      %s1587 = scalar_lea.vmem [#allocation2], %s1586
      %v1588 = vld [vmem:[%s1587] sm:$0x1]
      %p1589 = scmp.gt.s32.totalorder %s1583, 0
      %s1590 = scalar_select %p1589, 1, 0
      %v1591 = vstv %s1590
      %vm1592 = vcmp.eq.s32.totalorder %v1591, 1
      %v1593 = vsel %vm1592, %v1588, 0.0
      %v1594 = vadd.f32 %v1593, 0.0
      %s1595 = sadd.s32 %s1584, 1
      %s1596 = sld [smem:[#allocation5 + %s1595]]
      %s1597 = sadd.s32 %s1596, 8
      %s1598 = scalar_lea.vmem [#allocation2], %s1597
      %v1599 = vld [vmem:[%s1598] sm:$0x1]
      %p1600 = scmp.gt.s32.totalorder %s1583, 1
      %s1601 = scalar_select %p1600, 1, 0
      %v1602 = vstv %s1601
      %vm1603 = vcmp.eq.s32.totalorder %v1602, 1
      %v1604 = vsel %vm1603, %v1599, 0.0
      %v1605 = vadd.f32 %v1594, %v1604
      %s1606 = sadd.s32 %s1584, 2
      %s1607 = sld [smem:[#allocation5 + %s1606]]
      %s1608 = sadd.s32 %s1607, 8
      %s1609 = scalar_lea.vmem [#allocation2], %s1608
      %v1610 = vld [vmem:[%s1609] sm:$0x1]
      %p1611 = scmp.gt.s32.totalorder %s1583, 2
      %s1612 = scalar_select %p1611, 1, 0
      %v1613 = vstv %s1612
      %vm1614 = vcmp.eq.s32.totalorder %v1613, 1
      %v1615 = vsel %vm1614, %v1610, 0.0
      %v1616 = vadd.f32 %v1605, %v1615
      %v1618 = vlaneseq
      %v1619 = vshrl.u32 %v1618, 7
      %v1620 = vsub.s32 0, %v1619
      %v1621 = vrot.slane %v1616, %v1620
      %vm1623 = vcmask 1040384
      %v1624 = vsel %vm1623, %v1578, %v1621
      %v1628 = vrot.slane %v206, 4
      %v1629 = vrot.slane %v208, 4
      %v1630 = vrot.slane %v283, 4
      %v1637 = vrot.slane %v212, 3
      %v1638 = vrot.slane %v214, 3
      %v1639 = vrot.slane %v288, 3
      %v1643 = vsel %vm1623, %v1628, %v1637
      %v1644 = vsel %vm1623, %v1629, %v1638
      %v1645 = vsel %vm1623, %v1630, %v1639
      %v1646 = vld [vmem:[#allocation12] sm:$0xff]
      %v1647 = vld [vmem:[#allocation12 + $0x8] sm:$0xff]
      %v1648 = vld [vmem:[#allocation12 + $0x10] sm:$0xff]
      %v1649 = vld [vmem:[#allocation12 + $0x18] sm:$0xff]
      %v1650 = vld [vmem:[#allocation12 + $0x20] sm:$0xff]
      %v1651 = vld [vmem:[#allocation12 + $0x28] sm:$0xff]
      %v1652 = vld [vmem:[#allocation12 + $0x30] sm:$0xff]
      %v1653 = vld [vmem:[#allocation12 + $0x38] sm:$0xff]
      %v1654 = vld [vmem:[#allocation12 + $0x40] sm:$0xff]
      %v1655 = vld [vmem:[#allocation12 + $0x48] sm:$0xff]
      %v1656 = vld [vmem:[#allocation12 + $0x50] sm:$0xff]
      %v1657 = vld [vmem:[#allocation12 + $0x58] sm:$0xff]
      %v1658 = vld [vmem:[#allocation12 + $0x60] sm:$0xff]
      %v1659 = vld [vmem:[#allocation12 + $0x68] sm:$0xff]
      %v1660 = vld [vmem:[#allocation12 + $0x70] sm:$0xff]
      %v1661 = vld [vmem:[#allocation12 + $0x78] sm:$0xff]
      %v1662 = vld [vmem:[#allocation12 + $0x80] sm:$0xff]
      %v1663 = vld [vmem:[#allocation12 + $0x88] sm:$0xff]
      %v1664 = vld [vmem:[#allocation12 + $0x90] sm:$0xff]
      %v1665 = vld [vmem:[#allocation12 + $0x98] sm:$0xff]
      %v1666 = vld [vmem:[#allocation12 + $0xa0] sm:$0xff]
      %v1667 = vld [vmem:[#allocation12 + $0xa8] sm:$0xff]
      %v1668 = vld [vmem:[#allocation12 + $0xb0] sm:$0xff]
      %v1669 = vld [vmem:[#allocation12 + $0xb8] sm:$0xff]
      %v1670 = vld [vmem:[#allocation12 + $0xc0] sm:$0xff]
      %v1671 = vld [vmem:[#allocation12 + $0xc8] sm:$0xff]
      %v1672 = vld [vmem:[#allocation12 + $0xd0] sm:$0xff]
      %v1673 = vld [vmem:[#allocation12 + $0xd8] sm:$0xff]
      %v1674 = vld [vmem:[#allocation12 + $0xe0] sm:$0xff]
      %v1675 = vld [vmem:[#allocation12 + $0xe8] sm:$0xff]
      %v1676 = vld [vmem:[#allocation12 + $0xf0] sm:$0xff]
      %v1677 = vld [vmem:[#allocation12 + $0xf8] sm:$0xff]
      %1678 = vmatprep.subr.mxu0 %v1677
      %1679 = vmatpush1.msra.mxu0 %v1676
      %1680 = vmatprep.subr.mxu0 %v1675
      %1681 = vmatpush1.msra.mxu0 %v1674
      %1682 = vmatprep.subr.mxu0 %v1673
      %1683 = vmatpush1.msra.mxu0 %v1672
      %1684 = vmatprep.subr.mxu0 %v1671
      %1685 = vmatpush1.msra.mxu0 %v1670
      %1686 = vmatprep.subr.mxu0 %v1669
      %1687 = vmatpush1.msra.mxu0 %v1668
      %1688 = vmatprep.subr.mxu0 %v1667
      %1689 = vmatpush1.msra.mxu0 %v1666
      %1690 = vmatprep.subr.mxu0 %v1665
      %1691 = vmatpush1.msra.mxu0 %v1664
      %1692 = vmatprep.subr.mxu0 %v1663
      %1693 = vmatpush1.msra.mxu0 %v1662
      %1694 = vmatprep.subr.mxu0 %v1661
      %1695 = vmatpush1.msra.mxu0 %v1660
      %1696 = vmatprep.subr.mxu0 %v1659
      %1697 = vmatpush1.msra.mxu0 %v1658
      %1698 = vmatprep.subr.mxu0 %v1657
      %1699 = vmatpush1.msra.mxu0 %v1656
      %1700 = vmatprep.subr.mxu0 %v1655
      %1701 = vmatpush1.msra.mxu0 %v1654
      %1702 = vmatprep.subr.mxu0 %v1653
      %1703 = vmatpush1.msra.mxu0 %v1652
      %1704 = vmatprep.subr.mxu0 %v1651
      %1705 = vmatpush1.msra.mxu0 %v1650
      %1706 = vmatprep.subr.mxu0 %v1649
      %1707 = vmatpush1.msra.mxu0 %v1648
      %1708 = vmatprep.subr.mxu0 %v1647
      %1709 = vmatpush1.msra.mxu0 %v1646
      %1710 = vmatprep.subr.mxu0 0.0
      %1711 = vmatpush2.msra.mxu0 0.0
      %1712 = vmatprep.subr.mxu0 0.0
      %1713 = vmatpush2.msra.mxu0 0.0
      %1714 = vmatprep.subr.mxu0 0.0
      %1715 = vmatpush2.msra.mxu0 0.0
      %1716 = vmatprep.subr.mxu0 0.0
      %1717 = vmatpush2.msra.mxu0 0.0
      %1718 = vmatprep.subr.mxu0 0.0
      %1719 = vmatpush2.msra.mxu0 0.0
      %1720 = vmatprep.subr.mxu0 0.0
      %1721 = vmatpush2.msra.mxu0 0.0
      %1722 = vmatprep.subr.mxu0 0.0
      %1723 = vmatpush2.msra.mxu0 0.0
      %1724 = vmatprep.subr.mxu0 0.0
      %1725 = vmatpush2.msra.mxu0 0.0
      %1726 = vmatprep.subr.mxu0 0.0
      %1727 = vmatpush2.msra.mxu0 0.0
      %1728 = vmatprep.subr.mxu0 0.0
      %1729 = vmatpush2.msra.mxu0 0.0
      %1730 = vmatprep.subr.mxu0 0.0
      %1731 = vmatpush2.msra.mxu0 0.0
      %1732 = vmatprep.subr.mxu0 0.0
      %1733 = vmatpush2.msra.mxu0 0.0
      %1734 = vmatprep.subr.mxu0 0.0
      %1735 = vmatpush2.msra.mxu0 0.0
      %1736 = vmatprep.subr.mxu0 0.0
      %1737 = vmatpush2.msra.mxu0 0.0
      %1738 = vmatprep.subr.mxu0 0.0
      %1739 = vmatpush2.msra.mxu0 0.0
      %1740 = vmatprep.subr.mxu0 0.0
      %1741 = vmatpush2.msra.mxu0 0.0
      %1742 = vmatprep.mubr.f32.mxu0 0.0
      %1743 = vmatmul.mubr.f32.gmra.mxu0 %v1624
      %v1744 = vpop.f32.mrf.mxu0
      %v1745 = vadd.f32 0.0, %v1744
      %v1746 = vpop.f32.mrf.mxu0
      %v1747 = vadd.f32 0.0, %v1746
      %1748 = vdwg.mxu0
      %v1749 = vadd.f32 %v1643, %v1745
      %v1750 = vadd.f32 %v1644, %v1747
      %v1751 = vxor.u32 %v1749, 2147483648
      %v1752 = vxor.u32 %v1750, 2147483648
      %v1753 = vmul.f32 %v1751, 1.442695
      %v1754 = vpow.pop %v1753
      %v1755 = vmul.f32 %v1752, 1.442695
      %v1756 = vpow.pop %v1755
      %v1757 = vadd.f32 %v1754, 1.0
      %v1758 = vadd.f32 %v1756, 1.0
      %v1759 = vrcp.pop %v1757
      %v1760 = vmul.f32 1.0, %v1759
      %v1761 = vrcp.pop %v1758
      %v1762 = vmul.f32 1.0, %v1761
      %v1763 = vmul.f32 %v1760, %v1624
      %v1764 = vld [vmem:[#allocation13] sm:$0xff]
      %v1765 = vld [vmem:[#allocation13 + $0x8] sm:$0xff]
      %v1766 = vld [vmem:[#allocation13 + $0x10] sm:$0xff]
      %v1767 = vld [vmem:[#allocation13 + $0x18] sm:$0xff]
      %v1768 = vld [vmem:[#allocation13 + $0x20] sm:$0xff]
      %v1769 = vld [vmem:[#allocation13 + $0x28] sm:$0xff]
      %v1770 = vld [vmem:[#allocation13 + $0x30] sm:$0xff]
      %v1771 = vld [vmem:[#allocation13 + $0x38] sm:$0xff]
      %v1772 = vld [vmem:[#allocation13 + $0x40] sm:$0xff]
      %v1773 = vld [vmem:[#allocation13 + $0x48] sm:$0xff]
      %v1774 = vld [vmem:[#allocation13 + $0x50] sm:$0xff]
      %v1775 = vld [vmem:[#allocation13 + $0x58] sm:$0xff]
      %v1776 = vld [vmem:[#allocation13 + $0x60] sm:$0xff]
      %v1777 = vld [vmem:[#allocation13 + $0x68] sm:$0xff]
      %v1778 = vld [vmem:[#allocation13 + $0x70] sm:$0xff]
      %v1779 = vld [vmem:[#allocation13 + $0x78] sm:$0xff]
      %1780 = vmatprep.subr.mxu0 0.0
      %1781 = vmatpush1.msra.mxu0 %v1779
      %1782 = vmatprep.subr.mxu0 0.0
      %1783 = vmatpush1.msra.mxu0 %v1778
      %1784 = vmatprep.subr.mxu0 0.0
      %1785 = vmatpush1.msra.mxu0 %v1777
      %1786 = vmatprep.subr.mxu0 0.0
      %1787 = vmatpush1.msra.mxu0 %v1776
      %1788 = vmatprep.subr.mxu0 0.0
      %1789 = vmatpush1.msra.mxu0 %v1775
      %1790 = vmatprep.subr.mxu0 0.0
      %1791 = vmatpush1.msra.mxu0 %v1774
      %1792 = vmatprep.subr.mxu0 0.0
      %1793 = vmatpush1.msra.mxu0 %v1773
      %1794 = vmatprep.subr.mxu0 0.0
      %1795 = vmatpush1.msra.mxu0 %v1772
      %1796 = vmatprep.subr.mxu0 0.0
      %1797 = vmatpush1.msra.mxu0 %v1771
      %1798 = vmatprep.subr.mxu0 0.0
      %1799 = vmatpush1.msra.mxu0 %v1770
      %1800 = vmatprep.subr.mxu0 0.0
      %1801 = vmatpush1.msra.mxu0 %v1769
      %1802 = vmatprep.subr.mxu0 0.0
      %1803 = vmatpush1.msra.mxu0 %v1768
      %1804 = vmatprep.subr.mxu0 0.0
      %1805 = vmatpush1.msra.mxu0 %v1767
      %1806 = vmatprep.subr.mxu0 0.0
      %1807 = vmatpush1.msra.mxu0 %v1766
      %1808 = vmatprep.subr.mxu0 0.0
      %1809 = vmatpush1.msra.mxu0 %v1765
      %1810 = vmatprep.subr.mxu0 0.0
      %1811 = vmatpush1.msra.mxu0 %v1764
      %1812 = vmatprep.subr.mxu0 0.0
      %1813 = vmatpush2.msra.mxu0 0.0
      %1814 = vmatprep.subr.mxu0 0.0
      %1815 = vmatpush2.msra.mxu0 0.0
      %1816 = vmatprep.subr.mxu0 0.0
      %1817 = vmatpush2.msra.mxu0 0.0
      %1818 = vmatprep.subr.mxu0 0.0
      %1819 = vmatpush2.msra.mxu0 0.0
      %1820 = vmatprep.subr.mxu0 0.0
      %1821 = vmatpush2.msra.mxu0 0.0
      %1822 = vmatprep.subr.mxu0 0.0
      %1823 = vmatpush2.msra.mxu0 0.0
      %1824 = vmatprep.subr.mxu0 0.0
      %1825 = vmatpush2.msra.mxu0 0.0
      %1826 = vmatprep.subr.mxu0 0.0
      %1827 = vmatpush2.msra.mxu0 0.0
      %1828 = vmatprep.subr.mxu0 0.0
      %1829 = vmatpush2.msra.mxu0 0.0
      %1830 = vmatprep.subr.mxu0 0.0
      %1831 = vmatpush2.msra.mxu0 0.0
      %1832 = vmatprep.subr.mxu0 0.0
      %1833 = vmatpush2.msra.mxu0 0.0
      %1834 = vmatprep.subr.mxu0 0.0
      %1835 = vmatpush2.msra.mxu0 0.0
      %1836 = vmatprep.subr.mxu0 0.0
      %1837 = vmatpush2.msra.mxu0 0.0
      %1838 = vmatprep.subr.mxu0 0.0
      %1839 = vmatpush2.msra.mxu0 0.0
      %1840 = vmatprep.subr.mxu0 0.0
      %1841 = vmatpush2.msra.mxu0 0.0
      %1842 = vmatprep.subr.mxu0 0.0
      %1843 = vmatpush2.msra.mxu0 0.0
      %1844 = vmatprep.mubr.f32.mxu0 0.0
      %1845 = vmatmul.mubr.f32.gmra.mxu0 %v1763
      %v1846 = vpop.f32.mrf.mxu0
      %v1847 = vadd.f32 0.0, %v1846
      %v1848 = vpop.f32.mrf.mxu0
      %1849 = vdwg.mxu0
      %v1850 = vadd.f32 %v1645, %v1847
      %v1851 = vtanh.pop %v1850
      %v1852 = vsub.f32 1.0, %v1762
      %v1853 = vmul.f32 %v1852, %v1624
      %v1854 = vmul.f32 %v1762, %v1851
      %v1855 = vadd.f32 %v1853, %v1854
      %s1856 = scalar_lea.vmem [#allocation2], 4
      %1857 = vst [vmem:[%s1856] sm:$0x1] %v1855
      %s1858 = scalar_lea.vmem [#allocation2], 12
      %1859 = vst [vmem:[%s1858 - $0x1] sm:$0x2] %v1855
    $region57: #{tpu_custom_call.1} parent=1 // pred_fallthru
      _
    %p1860 = scmp.le.s32.totalorder %s90, 5
    // Predicated region
    $region58: #{tpu_custom_call.1} parent=1 // pred_check
      %p1861 = pneg %p1860
    $region59: #{tpu_custom_call.1} parent=1 // pred_check_branch
      %1863 = sbr.rel (%p1861) target = $region61
    $region60: #{tpu_custom_call.1} parent=1 // pred_region
      %s1864 = smul.u32 0, 16
      %s1865 = sadd.s32 %s1864, 5
      %s1866 = sld [smem:[#allocation4 + %s1865]]
      %s1867 = smul.u32 %s1865, 3
      %s1868 = sld [smem:[#allocation5 + %s1867]]
      %s1869 = scalar_lea.vmem [#allocation2], %s1868
      %v1870 = vld [vmem:[%s1869] sm:$0x1]
      %p1871 = scmp.gt.s32.totalorder %s1866, 0
      %s1872 = scalar_select %p1871, 1, 0
      %v1873 = vstv %s1872
      %vm1874 = vcmp.eq.s32.totalorder %v1873, 1
      %v1875 = vsel %vm1874, %v1870, 0.0
      %v1876 = vadd.f32 %v1875, 0.0
      %s1877 = sadd.s32 %s1867, 1
      %s1878 = sld [smem:[#allocation5 + %s1877]]
      %s1879 = scalar_lea.vmem [#allocation2], %s1878
      %v1880 = vld [vmem:[%s1879] sm:$0x1]
      %p1881 = scmp.gt.s32.totalorder %s1866, 1
      %s1882 = scalar_select %p1881, 1, 0
      %v1883 = vstv %s1882
      %vm1884 = vcmp.eq.s32.totalorder %v1883, 1
      %v1885 = vsel %vm1884, %v1880, 0.0
      %v1886 = vadd.f32 %v1876, %v1885
      %s1887 = sadd.s32 %s1867, 2
      %s1888 = sld [smem:[#allocation5 + %s1887]]
      %s1889 = scalar_lea.vmem [#allocation2], %s1888
      %v1890 = vld [vmem:[%s1889] sm:$0x1]
      %p1891 = scmp.gt.s32.totalorder %s1866, 2
      %s1892 = scalar_select %p1891, 1, 0
      %v1893 = vstv %s1892
      %vm1894 = vcmp.eq.s32.totalorder %v1893, 1
      %v1895 = vsel %vm1894, %v1890, 0.0
      %v1896 = vadd.f32 %v1886, %v1895
      %s1897 = smul.u32 0, 2
      %s1898 = sadd.s32 %s1897, 1
      %s1899 = smul.u32 %s1898, 8
      %s1900 = sadd.s32 %s1899, 5
      %s1901 = sld [smem:[#allocation4 + %s1900]]
      %s1902 = smul.u32 %s1900, 3
      %s1903 = sld [smem:[#allocation5 + %s1902]]
      %s1904 = sadd.s32 %s1903, 8
      %s1905 = scalar_lea.vmem [#allocation2], %s1904
      %v1906 = vld [vmem:[%s1905] sm:$0x1]
      %p1907 = scmp.gt.s32.totalorder %s1901, 0
      %s1908 = scalar_select %p1907, 1, 0
      %v1909 = vstv %s1908
      %vm1910 = vcmp.eq.s32.totalorder %v1909, 1
      %v1911 = vsel %vm1910, %v1906, 0.0
      %v1912 = vadd.f32 %v1911, 0.0
      %s1913 = sadd.s32 %s1902, 1
      %s1914 = sld [smem:[#allocation5 + %s1913]]
      %s1915 = sadd.s32 %s1914, 8
      %s1916 = scalar_lea.vmem [#allocation2], %s1915
      %v1917 = vld [vmem:[%s1916] sm:$0x1]
      %p1918 = scmp.gt.s32.totalorder %s1901, 1
      %s1919 = scalar_select %p1918, 1, 0
      %v1920 = vstv %s1919
      %vm1921 = vcmp.eq.s32.totalorder %v1920, 1
      %v1922 = vsel %vm1921, %v1917, 0.0
      %v1923 = vadd.f32 %v1912, %v1922
      %s1924 = sadd.s32 %s1902, 2
      %s1925 = sld [smem:[#allocation5 + %s1924]]
      %s1926 = sadd.s32 %s1925, 8
      %s1927 = scalar_lea.vmem [#allocation2], %s1926
      %v1928 = vld [vmem:[%s1927] sm:$0x1]
      %p1929 = scmp.gt.s32.totalorder %s1901, 2
      %s1930 = scalar_select %p1929, 1, 0
      %v1931 = vstv %s1930
      %vm1932 = vcmp.eq.s32.totalorder %v1931, 1
      %v1933 = vsel %vm1932, %v1928, 0.0
      %v1934 = vadd.f32 %v1923, %v1933
      %v1936 = vlaneseq
      %v1937 = vshrl.u32 %v1936, 7
      %v1938 = vsub.s32 0, %v1937
      %v1939 = vrot.slane %v1934, %v1938
      %vm1941 = vcmask 1040384
      %v1942 = vsel %vm1941, %v1896, %v1939
      %v1946 = vrot.slane %v206, 5
      %v1947 = vrot.slane %v208, 5
      %v1948 = vrot.slane %v283, 5
      %v1955 = vrot.slane %v212, 4
      %v1956 = vrot.slane %v214, 4
      %v1957 = vrot.slane %v288, 4
      %v1961 = vsel %vm1941, %v1946, %v1955
      %v1962 = vsel %vm1941, %v1947, %v1956
      %v1963 = vsel %vm1941, %v1948, %v1957
      %v1964 = vld [vmem:[#allocation12] sm:$0xff]
      %v1965 = vld [vmem:[#allocation12 + $0x8] sm:$0xff]
      %v1966 = vld [vmem:[#allocation12 + $0x10] sm:$0xff]
      %v1967 = vld [vmem:[#allocation12 + $0x18] sm:$0xff]
      %v1968 = vld [vmem:[#allocation12 + $0x20] sm:$0xff]
      %v1969 = vld [vmem:[#allocation12 + $0x28] sm:$0xff]
      %v1970 = vld [vmem:[#allocation12 + $0x30] sm:$0xff]
      %v1971 = vld [vmem:[#allocation12 + $0x38] sm:$0xff]
      %v1972 = vld [vmem:[#allocation12 + $0x40] sm:$0xff]
      %v1973 = vld [vmem:[#allocation12 + $0x48] sm:$0xff]
      %v1974 = vld [vmem:[#allocation12 + $0x50] sm:$0xff]
      %v1975 = vld [vmem:[#allocation12 + $0x58] sm:$0xff]
      %v1976 = vld [vmem:[#allocation12 + $0x60] sm:$0xff]
      %v1977 = vld [vmem:[#allocation12 + $0x68] sm:$0xff]
      %v1978 = vld [vmem:[#allocation12 + $0x70] sm:$0xff]
      %v1979 = vld [vmem:[#allocation12 + $0x78] sm:$0xff]
      %v1980 = vld [vmem:[#allocation12 + $0x80] sm:$0xff]
      %v1981 = vld [vmem:[#allocation12 + $0x88] sm:$0xff]
      %v1982 = vld [vmem:[#allocation12 + $0x90] sm:$0xff]
      %v1983 = vld [vmem:[#allocation12 + $0x98] sm:$0xff]
      %v1984 = vld [vmem:[#allocation12 + $0xa0] sm:$0xff]
      %v1985 = vld [vmem:[#allocation12 + $0xa8] sm:$0xff]
      %v1986 = vld [vmem:[#allocation12 + $0xb0] sm:$0xff]
      %v1987 = vld [vmem:[#allocation12 + $0xb8] sm:$0xff]
      %v1988 = vld [vmem:[#allocation12 + $0xc0] sm:$0xff]
      %v1989 = vld [vmem:[#allocation12 + $0xc8] sm:$0xff]
      %v1990 = vld [vmem:[#allocation12 + $0xd0] sm:$0xff]
      %v1991 = vld [vmem:[#allocation12 + $0xd8] sm:$0xff]
      %v1992 = vld [vmem:[#allocation12 + $0xe0] sm:$0xff]
      %v1993 = vld [vmem:[#allocation12 + $0xe8] sm:$0xff]
      %v1994 = vld [vmem:[#allocation12 + $0xf0] sm:$0xff]
      %v1995 = vld [vmem:[#allocation12 + $0xf8] sm:$0xff]
      %1996 = vmatprep.subr.mxu0 %v1995
      %1997 = vmatpush1.msra.mxu0 %v1994
      %1998 = vmatprep.subr.mxu0 %v1993
      %1999 = vmatpush1.msra.mxu0 %v1992
      %2000 = vmatprep.subr.mxu0 %v1991
      %2001 = vmatpush1.msra.mxu0 %v1990
      %2002 = vmatprep.subr.mxu0 %v1989
      %2003 = vmatpush1.msra.mxu0 %v1988
      %2004 = vmatprep.subr.mxu0 %v1987
      %2005 = vmatpush1.msra.mxu0 %v1986
      %2006 = vmatprep.subr.mxu0 %v1985
      %2007 = vmatpush1.msra.mxu0 %v1984
      %2008 = vmatprep.subr.mxu0 %v1983
      %2009 = vmatpush1.msra.mxu0 %v1982
      %2010 = vmatprep.subr.mxu0 %v1981
      %2011 = vmatpush1.msra.mxu0 %v1980
      %2012 = vmatprep.subr.mxu0 %v1979
      %2013 = vmatpush1.msra.mxu0 %v1978
      %2014 = vmatprep.subr.mxu0 %v1977
      %2015 = vmatpush1.msra.mxu0 %v1976
      %2016 = vmatprep.subr.mxu0 %v1975
      %2017 = vmatpush1.msra.mxu0 %v1974
      %2018 = vmatprep.subr.mxu0 %v1973
      %2019 = vmatpush1.msra.mxu0 %v1972
      %2020 = vmatprep.subr.mxu0 %v1971
      %2021 = vmatpush1.msra.mxu0 %v1970
      %2022 = vmatprep.subr.mxu0 %v1969
      %2023 = vmatpush1.msra.mxu0 %v1968
      %2024 = vmatprep.subr.mxu0 %v1967
      %2025 = vmatpush1.msra.mxu0 %v1966
      %2026 = vmatprep.subr.mxu0 %v1965
      %2027 = vmatpush1.msra.mxu0 %v1964
      %2028 = vmatprep.subr.mxu0 0.0
      %2029 = vmatpush2.msra.mxu0 0.0
      %2030 = vmatprep.subr.mxu0 0.0
      %2031 = vmatpush2.msra.mxu0 0.0
      %2032 = vmatprep.subr.mxu0 0.0
      %2033 = vmatpush2.msra.mxu0 0.0
      %2034 = vmatprep.subr.mxu0 0.0
      %2035 = vmatpush2.msra.mxu0 0.0
      %2036 = vmatprep.subr.mxu0 0.0
      %2037 = vmatpush2.msra.mxu0 0.0
      %2038 = vmatprep.subr.mxu0 0.0
      %2039 = vmatpush2.msra.mxu0 0.0
      %2040 = vmatprep.subr.mxu0 0.0
      %2041 = vmatpush2.msra.mxu0 0.0
      %2042 = vmatprep.subr.mxu0 0.0
      %2043 = vmatpush2.msra.mxu0 0.0
      %2044 = vmatprep.subr.mxu0 0.0
      %2045 = vmatpush2.msra.mxu0 0.0
      %2046 = vmatprep.subr.mxu0 0.0
      %2047 = vmatpush2.msra.mxu0 0.0
      %2048 = vmatprep.subr.mxu0 0.0
      %2049 = vmatpush2.msra.mxu0 0.0
      %2050 = vmatprep.subr.mxu0 0.0
      %2051 = vmatpush2.msra.mxu0 0.0
      %2052 = vmatprep.subr.mxu0 0.0
      %2053 = vmatpush2.msra.mxu0 0.0
      %2054 = vmatprep.subr.mxu0 0.0
      %2055 = vmatpush2.msra.mxu0 0.0
      %2056 = vmatprep.subr.mxu0 0.0
      %2057 = vmatpush2.msra.mxu0 0.0
      %2058 = vmatprep.subr.mxu0 0.0
      %2059 = vmatpush2.msra.mxu0 0.0
      %2060 = vmatprep.mubr.f32.mxu0 0.0
      %2061 = vmatmul.mubr.f32.gmra.mxu0 %v1942
      %v2062 = vpop.f32.mrf.mxu0
      %v2063 = vadd.f32 0.0, %v2062
      %v2064 = vpop.f32.mrf.mxu0
      %v2065 = vadd.f32 0.0, %v2064
      %2066 = vdwg.mxu0
      %v2067 = vadd.f32 %v1961, %v2063
      %v2068 = vadd.f32 %v1962, %v2065
      %v2069 = vxor.u32 %v2067, 2147483648
      %v2070 = vxor.u32 %v2068, 2147483648
      %v2071 = vmul.f32 %v2069, 1.442695
      %v2072 = vpow.pop %v2071
      %v2073 = vmul.f32 %v2070, 1.442695
      %v2074 = vpow.pop %v2073
      %v2075 = vadd.f32 %v2072, 1.0
      %v2076 = vadd.f32 %v2074, 1.0
      %v2077 = vrcp.pop %v2075
      %v2078 = vmul.f32 1.0, %v2077
      %v2079 = vrcp.pop %v2076
      %v2080 = vmul.f32 1.0, %v2079
      %v2081 = vmul.f32 %v2078, %v1942
      %v2082 = vld [vmem:[#allocation13] sm:$0xff]
      %v2083 = vld [vmem:[#allocation13 + $0x8] sm:$0xff]
      %v2084 = vld [vmem:[#allocation13 + $0x10] sm:$0xff]
      %v2085 = vld [vmem:[#allocation13 + $0x18] sm:$0xff]
      %v2086 = vld [vmem:[#allocation13 + $0x20] sm:$0xff]
      %v2087 = vld [vmem:[#allocation13 + $0x28] sm:$0xff]
      %v2088 = vld [vmem:[#allocation13 + $0x30] sm:$0xff]
      %v2089 = vld [vmem:[#allocation13 + $0x38] sm:$0xff]
      %v2090 = vld [vmem:[#allocation13 + $0x40] sm:$0xff]
      %v2091 = vld [vmem:[#allocation13 + $0x48] sm:$0xff]
      %v2092 = vld [vmem:[#allocation13 + $0x50] sm:$0xff]
      %v2093 = vld [vmem:[#allocation13 + $0x58] sm:$0xff]
      %v2094 = vld [vmem:[#allocation13 + $0x60] sm:$0xff]
      %v2095 = vld [vmem:[#allocation13 + $0x68] sm:$0xff]
      %v2096 = vld [vmem:[#allocation13 + $0x70] sm:$0xff]
      %v2097 = vld [vmem:[#allocation13 + $0x78] sm:$0xff]
      %2098 = vmatprep.subr.mxu0 0.0
      %2099 = vmatpush1.msra.mxu0 %v2097
      %2100 = vmatprep.subr.mxu0 0.0
      %2101 = vmatpush1.msra.mxu0 %v2096
      %2102 = vmatprep.subr.mxu0 0.0
      %2103 = vmatpush1.msra.mxu0 %v2095
      %2104 = vmatprep.subr.mxu0 0.0
      %2105 = vmatpush1.msra.mxu0 %v2094
      %2106 = vmatprep.subr.mxu0 0.0
      %2107 = vmatpush1.msra.mxu0 %v2093
      %2108 = vmatprep.subr.mxu0 0.0
      %2109 = vmatpush1.msra.mxu0 %v2092
      %2110 = vmatprep.subr.mxu0 0.0
      %2111 = vmatpush1.msra.mxu0 %v2091
      %2112 = vmatprep.subr.mxu0 0.0
      %2113 = vmatpush1.msra.mxu0 %v2090
      %2114 = vmatprep.subr.mxu0 0.0
      %2115 = vmatpush1.msra.mxu0 %v2089
      %2116 = vmatprep.subr.mxu0 0.0
      %2117 = vmatpush1.msra.mxu0 %v2088
      %2118 = vmatprep.subr.mxu0 0.0
      %2119 = vmatpush1.msra.mxu0 %v2087
      %2120 = vmatprep.subr.mxu0 0.0
      %2121 = vmatpush1.msra.mxu0 %v2086
      %2122 = vmatprep.subr.mxu0 0.0
      %2123 = vmatpush1.msra.mxu0 %v2085
      %2124 = vmatprep.subr.mxu0 0.0
      %2125 = vmatpush1.msra.mxu0 %v2084
      %2126 = vmatprep.subr.mxu0 0.0
      %2127 = vmatpush1.msra.mxu0 %v2083
      %2128 = vmatprep.subr.mxu0 0.0
      %2129 = vmatpush1.msra.mxu0 %v2082
      %2130 = vmatprep.subr.mxu0 0.0
      %2131 = vmatpush2.msra.mxu0 0.0
      %2132 = vmatprep.subr.mxu0 0.0
      %2133 = vmatpush2.msra.mxu0 0.0
      %2134 = vmatprep.subr.mxu0 0.0
      %2135 = vmatpush2.msra.mxu0 0.0
      %2136 = vmatprep.subr.mxu0 0.0
      %2137 = vmatpush2.msra.mxu0 0.0
      %2138 = vmatprep.subr.mxu0 0.0
      %2139 = vmatpush2.msra.mxu0 0.0
      %2140 = vmatprep.subr.mxu0 0.0
      %2141 = vmatpush2.msra.mxu0 0.0
      %2142 = vmatprep.subr.mxu0 0.0
      %2143 = vmatpush2.msra.mxu0 0.0
      %2144 = vmatprep.subr.mxu0 0.0
      %2145 = vmatpush2.msra.mxu0 0.0
      %2146 = vmatprep.subr.mxu0 0.0
      %2147 = vmatpush2.msra.mxu0 0.0
      %2148 = vmatprep.subr.mxu0 0.0
      %2149 = vmatpush2.msra.mxu0 0.0
      %2150 = vmatprep.subr.mxu0 0.0
      %2151 = vmatpush2.msra.mxu0 0.0
      %2152 = vmatprep.subr.mxu0 0.0
      %2153 = vmatpush2.msra.mxu0 0.0
      %2154 = vmatprep.subr.mxu0 0.0
      %2155 = vmatpush2.msra.mxu0 0.0
      %2156 = vmatprep.subr.mxu0 0.0
      %2157 = vmatpush2.msra.mxu0 0.0
      %2158 = vmatprep.subr.mxu0 0.0
      %2159 = vmatpush2.msra.mxu0 0.0
      %2160 = vmatprep.subr.mxu0 0.0
      %2161 = vmatpush2.msra.mxu0 0.0
      %2162 = vmatprep.mubr.f32.mxu0 0.0
      %2163 = vmatmul.mubr.f32.gmra.mxu0 %v2081
      %v2164 = vpop.f32.mrf.mxu0
      %v2165 = vadd.f32 0.0, %v2164
      %v2166 = vpop.f32.mrf.mxu0
      %2167 = vdwg.mxu0
      %v2168 = vadd.f32 %v1963, %v2165
      %v2169 = vtanh.pop %v2168
      %v2170 = vsub.f32 1.0, %v2080
      %v2171 = vmul.f32 %v2170, %v1942
      %v2172 = vmul.f32 %v2080, %v2169
      %v2173 = vadd.f32 %v2171, %v2172
      %s2174 = scalar_lea.vmem [#allocation2], 5
      %2175 = vst [vmem:[%s2174] sm:$0x1] %v2173
      %s2176 = scalar_lea.vmem [#allocation2], 13
      %2177 = vst [vmem:[%s2176 - $0x1] sm:$0x2] %v2173
    $region61: #{tpu_custom_call.1} parent=1 // pred_fallthru
      _
    %p2178 = scmp.le.s32.totalorder %s90, 6
    // Predicated region
    $region62: #{tpu_custom_call.1} parent=1 // pred_check
      %p2179 = pneg %p2178
    $region63: #{tpu_custom_call.1} parent=1 // pred_check_branch
      %2181 = sbr.rel (%p2179) target = $region65
    $region64: #{tpu_custom_call.1} parent=1 // pred_region
      %s2182 = smul.u32 0, 16
      %s2183 = sadd.s32 %s2182, 6
      %s2184 = sld [smem:[#allocation4 + %s2183]]
      %s2185 = smul.u32 %s2183, 3
      %s2186 = sld [smem:[#allocation5 + %s2185]]
      %s2187 = scalar_lea.vmem [#allocation2], %s2186
      %v2188 = vld [vmem:[%s2187] sm:$0x1]
      %p2189 = scmp.gt.s32.totalorder %s2184, 0
      %s2190 = scalar_select %p2189, 1, 0
      %v2191 = vstv %s2190
      %vm2192 = vcmp.eq.s32.totalorder %v2191, 1
      %v2193 = vsel %vm2192, %v2188, 0.0
      %v2194 = vadd.f32 %v2193, 0.0
      %s2195 = sadd.s32 %s2185, 1
      %s2196 = sld [smem:[#allocation5 + %s2195]]
      %s2197 = scalar_lea.vmem [#allocation2], %s2196
      %v2198 = vld [vmem:[%s2197] sm:$0x1]
      %p2199 = scmp.gt.s32.totalorder %s2184, 1
      %s2200 = scalar_select %p2199, 1, 0
      %v2201 = vstv %s2200
      %vm2202 = vcmp.eq.s32.totalorder %v2201, 1
      %v2203 = vsel %vm2202, %v2198, 0.0
      %v2204 = vadd.f32 %v2194, %v2203
      %s2205 = sadd.s32 %s2185, 2
      %s2206 = sld [smem:[#allocation5 + %s2205]]
      %s2207 = scalar_lea.vmem [#allocation2], %s2206
      %v2208 = vld [vmem:[%s2207] sm:$0x1]
      %p2209 = scmp.gt.s32.totalorder %s2184, 2
      %s2210 = scalar_select %p2209, 1, 0
      %v2211 = vstv %s2210
      %vm2212 = vcmp.eq.s32.totalorder %v2211, 1
      %v2213 = vsel %vm2212, %v2208, 0.0
      %v2214 = vadd.f32 %v2204, %v2213
      %s2215 = smul.u32 0, 2
      %s2216 = sadd.s32 %s2215, 1
      %s2217 = smul.u32 %s2216, 8
      %s2218 = sadd.s32 %s2217, 6
      %s2219 = sld [smem:[#allocation4 + %s2218]]
      %s2220 = smul.u32 %s2218, 3
      %s2221 = sld [smem:[#allocation5 + %s2220]]
      %s2222 = sadd.s32 %s2221, 8
      %s2223 = scalar_lea.vmem [#allocation2], %s2222
      %v2224 = vld [vmem:[%s2223] sm:$0x1]
      %p2225 = scmp.gt.s32.totalorder %s2219, 0
      %s2226 = scalar_select %p2225, 1, 0
      %v2227 = vstv %s2226
      %vm2228 = vcmp.eq.s32.totalorder %v2227, 1
      %v2229 = vsel %vm2228, %v2224, 0.0
      %v2230 = vadd.f32 %v2229, 0.0
      %s2231 = sadd.s32 %s2220, 1
      %s2232 = sld [smem:[#allocation5 + %s2231]]
      %s2233 = sadd.s32 %s2232, 8
      %s2234 = scalar_lea.vmem [#allocation2], %s2233
      %v2235 = vld [vmem:[%s2234] sm:$0x1]
      %p2236 = scmp.gt.s32.totalorder %s2219, 1
      %s2237 = scalar_select %p2236, 1, 0
      %v2238 = vstv %s2237
      %vm2239 = vcmp.eq.s32.totalorder %v2238, 1
      %v2240 = vsel %vm2239, %v2235, 0.0
      %v2241 = vadd.f32 %v2230, %v2240
      %s2242 = sadd.s32 %s2220, 2
      %s2243 = sld [smem:[#allocation5 + %s2242]]
      %s2244 = sadd.s32 %s2243, 8
      %s2245 = scalar_lea.vmem [#allocation2], %s2244
      %v2246 = vld [vmem:[%s2245] sm:$0x1]
      %p2247 = scmp.gt.s32.totalorder %s2219, 2
      %s2248 = scalar_select %p2247, 1, 0
      %v2249 = vstv %s2248
      %vm2250 = vcmp.eq.s32.totalorder %v2249, 1
      %v2251 = vsel %vm2250, %v2246, 0.0
      %v2252 = vadd.f32 %v2241, %v2251
      %v2254 = vlaneseq
      %v2255 = vshrl.u32 %v2254, 7
      %v2256 = vsub.s32 0, %v2255
      %v2257 = vrot.slane %v2252, %v2256
      %vm2259 = vcmask 1040384
      %v2260 = vsel %vm2259, %v2214, %v2257
      %v2264 = vrot.slane %v206, 6
      %v2265 = vrot.slane %v208, 6
      %v2266 = vrot.slane %v283, 6
      %v2273 = vrot.slane %v212, 5
      %v2274 = vrot.slane %v214, 5
      %v2275 = vrot.slane %v288, 5
      %v2279 = vsel %vm2259, %v2264, %v2273
      %v2280 = vsel %vm2259, %v2265, %v2274
      %v2281 = vsel %vm2259, %v2266, %v2275
      %v2282 = vld [vmem:[#allocation12] sm:$0xff]
      %v2283 = vld [vmem:[#allocation12 + $0x8] sm:$0xff]
      %v2284 = vld [vmem:[#allocation12 + $0x10] sm:$0xff]
      %v2285 = vld [vmem:[#allocation12 + $0x18] sm:$0xff]
      %v2286 = vld [vmem:[#allocation12 + $0x20] sm:$0xff]
      %v2287 = vld [vmem:[#allocation12 + $0x28] sm:$0xff]
      %v2288 = vld [vmem:[#allocation12 + $0x30] sm:$0xff]
      %v2289 = vld [vmem:[#allocation12 + $0x38] sm:$0xff]
      %v2290 = vld [vmem:[#allocation12 + $0x40] sm:$0xff]
      %v2291 = vld [vmem:[#allocation12 + $0x48] sm:$0xff]
      %v2292 = vld [vmem:[#allocation12 + $0x50] sm:$0xff]
      %v2293 = vld [vmem:[#allocation12 + $0x58] sm:$0xff]
      %v2294 = vld [vmem:[#allocation12 + $0x60] sm:$0xff]
      %v2295 = vld [vmem:[#allocation12 + $0x68] sm:$0xff]
      %v2296 = vld [vmem:[#allocation12 + $0x70] sm:$0xff]
      %v2297 = vld [vmem:[#allocation12 + $0x78] sm:$0xff]
      %v2298 = vld [vmem:[#allocation12 + $0x80] sm:$0xff]
      %v2299 = vld [vmem:[#allocation12 + $0x88] sm:$0xff]
      %v2300 = vld [vmem:[#allocation12 + $0x90] sm:$0xff]
      %v2301 = vld [vmem:[#allocation12 + $0x98] sm:$0xff]
      %v2302 = vld [vmem:[#allocation12 + $0xa0] sm:$0xff]
      %v2303 = vld [vmem:[#allocation12 + $0xa8] sm:$0xff]
      %v2304 = vld [vmem:[#allocation12 + $0xb0] sm:$0xff]
      %v2305 = vld [vmem:[#allocation12 + $0xb8] sm:$0xff]
      %v2306 = vld [vmem:[#allocation12 + $0xc0] sm:$0xff]
      %v2307 = vld [vmem:[#allocation12 + $0xc8] sm:$0xff]
      %v2308 = vld [vmem:[#allocation12 + $0xd0] sm:$0xff]
      %v2309 = vld [vmem:[#allocation12 + $0xd8] sm:$0xff]
      %v2310 = vld [vmem:[#allocation12 + $0xe0] sm:$0xff]
      %v2311 = vld [vmem:[#allocation12 + $0xe8] sm:$0xff]
      %v2312 = vld [vmem:[#allocation12 + $0xf0] sm:$0xff]
      %v2313 = vld [vmem:[#allocation12 + $0xf8] sm:$0xff]
      %2314 = vmatprep.subr.mxu0 %v2313
      %2315 = vmatpush1.msra.mxu0 %v2312
      %2316 = vmatprep.subr.mxu0 %v2311
      %2317 = vmatpush1.msra.mxu0 %v2310
      %2318 = vmatprep.subr.mxu0 %v2309
      %2319 = vmatpush1.msra.mxu0 %v2308
      %2320 = vmatprep.subr.mxu0 %v2307
      %2321 = vmatpush1.msra.mxu0 %v2306
      %2322 = vmatprep.subr.mxu0 %v2305
      %2323 = vmatpush1.msra.mxu0 %v2304
      %2324 = vmatprep.subr.mxu0 %v2303
      %2325 = vmatpush1.msra.mxu0 %v2302
      %2326 = vmatprep.subr.mxu0 %v2301
      %2327 = vmatpush1.msra.mxu0 %v2300
      %2328 = vmatprep.subr.mxu0 %v2299
      %2329 = vmatpush1.msra.mxu0 %v2298
      %2330 = vmatprep.subr.mxu0 %v2297
      %2331 = vmatpush1.msra.mxu0 %v2296
      %2332 = vmatprep.subr.mxu0 %v2295
      %2333 = vmatpush1.msra.mxu0 %v2294
      %2334 = vmatprep.subr.mxu0 %v2293
      %2335 = vmatpush1.msra.mxu0 %v2292
      %2336 = vmatprep.subr.mxu0 %v2291
      %2337 = vmatpush1.msra.mxu0 %v2290
      %2338 = vmatprep.subr.mxu0 %v2289
      %2339 = vmatpush1.msra.mxu0 %v2288
      %2340 = vmatprep.subr.mxu0 %v2287
      %2341 = vmatpush1.msra.mxu0 %v2286
      %2342 = vmatprep.subr.mxu0 %v2285
      %2343 = vmatpush1.msra.mxu0 %v2284
      %2344 = vmatprep.subr.mxu0 %v2283
      %2345 = vmatpush1.msra.mxu0 %v2282
      %2346 = vmatprep.subr.mxu0 0.0
      %2347 = vmatpush2.msra.mxu0 0.0
      %2348 = vmatprep.subr.mxu0 0.0
      %2349 = vmatpush2.msra.mxu0 0.0
      %2350 = vmatprep.subr.mxu0 0.0
      %2351 = vmatpush2.msra.mxu0 0.0
      %2352 = vmatprep.subr.mxu0 0.0
      %2353 = vmatpush2.msra.mxu0 0.0
      %2354 = vmatprep.subr.mxu0 0.0
      %2355 = vmatpush2.msra.mxu0 0.0
      %2356 = vmatprep.subr.mxu0 0.0
      %2357 = vmatpush2.msra.mxu0 0.0
      %2358 = vmatprep.subr.mxu0 0.0
      %2359 = vmatpush2.msra.mxu0 0.0
      %2360 = vmatprep.subr.mxu0 0.0
      %2361 = vmatpush2.msra.mxu0 0.0
      %2362 = vmatprep.subr.mxu0 0.0
      %2363 = vmatpush2.msra.mxu0 0.0
      %2364 = vmatprep.subr.mxu0 0.0
      %2365 = vmatpush2.msra.mxu0 0.0
      %2366 = vmatprep.subr.mxu0 0.0
      %2367 = vmatpush2.msra.mxu0 0.0
      %2368 = vmatprep.subr.mxu0 0.0
      %2369 = vmatpush2.msra.mxu0 0.0
      %2370 = vmatprep.subr.mxu0 0.0
      %2371 = vmatpush2.msra.mxu0 0.0
      %2372 = vmatprep.subr.mxu0 0.0
      %2373 = vmatpush2.msra.mxu0 0.0
      %2374 = vmatprep.subr.mxu0 0.0
      %2375 = vmatpush2.msra.mxu0 0.0
      %2376 = vmatprep.subr.mxu0 0.0
      %2377 = vmatpush2.msra.mxu0 0.0
      %2378 = vmatprep.mubr.f32.mxu0 0.0
      %2379 = vmatmul.mubr.f32.gmra.mxu0 %v2260
      %v2380 = vpop.f32.mrf.mxu0
      %v2381 = vadd.f32 0.0, %v2380
      %v2382 = vpop.f32.mrf.mxu0
      %v2383 = vadd.f32 0.0, %v2382
      %2384 = vdwg.mxu0
      %v2385 = vadd.f32 %v2279, %v2381
      %v2386 = vadd.f32 %v2280, %v2383
      %v2387 = vxor.u32 %v2385, 2147483648
      %v2388 = vxor.u32 %v2386, 2147483648
      %v2389 = vmul.f32 %v2387, 1.442695
      %v2390 = vpow.pop %v2389
      %v2391 = vmul.f32 %v2388, 1.442695
      %v2392 = vpow.pop %v2391
      %v2393 = vadd.f32 %v2390, 1.0
      %v2394 = vadd.f32 %v2392, 1.0
      %v2395 = vrcp.pop %v2393
      %v2396 = vmul.f32 1.0, %v2395
      %v2397 = vrcp.pop %v2394
      %v2398 = vmul.f32 1.0, %v2397
      %v2399 = vmul.f32 %v2396, %v2260
      %v2400 = vld [vmem:[#allocation13] sm:$0xff]
      %v2401 = vld [vmem:[#allocation13 + $0x8] sm:$0xff]
      %v2402 = vld [vmem:[#allocation13 + $0x10] sm:$0xff]
      %v2403 = vld [vmem:[#allocation13 + $0x18] sm:$0xff]
      %v2404 = vld [vmem:[#allocation13 + $0x20] sm:$0xff]
      %v2405 = vld [vmem:[#allocation13 + $0x28] sm:$0xff]
      %v2406 = vld [vmem:[#allocation13 + $0x30] sm:$0xff]
      %v2407 = vld [vmem:[#allocation13 + $0x38] sm:$0xff]
      %v2408 = vld [vmem:[#allocation13 + $0x40] sm:$0xff]
      %v2409 = vld [vmem:[#allocation13 + $0x48] sm:$0xff]
      %v2410 = vld [vmem:[#allocation13 + $0x50] sm:$0xff]
      %v2411 = vld [vmem:[#allocation13 + $0x58] sm:$0xff]
      %v2412 = vld [vmem:[#allocation13 + $0x60] sm:$0xff]
      %v2413 = vld [vmem:[#allocation13 + $0x68] sm:$0xff]
      %v2414 = vld [vmem:[#allocation13 + $0x70] sm:$0xff]
      %v2415 = vld [vmem:[#allocation13 + $0x78] sm:$0xff]
      %2416 = vmatprep.subr.mxu0 0.0
      %2417 = vmatpush1.msra.mxu0 %v2415
      %2418 = vmatprep.subr.mxu0 0.0
      %2419 = vmatpush1.msra.mxu0 %v2414
      %2420 = vmatprep.subr.mxu0 0.0
      %2421 = vmatpush1.msra.mxu0 %v2413
      %2422 = vmatprep.subr.mxu0 0.0
      %2423 = vmatpush1.msra.mxu0 %v2412
      %2424 = vmatprep.subr.mxu0 0.0
      %2425 = vmatpush1.msra.mxu0 %v2411
      %2426 = vmatprep.subr.mxu0 0.0
      %2427 = vmatpush1.msra.mxu0 %v2410
      %2428 = vmatprep.subr.mxu0 0.0
      %2429 = vmatpush1.msra.mxu0 %v2409
      %2430 = vmatprep.subr.mxu0 0.0
      %2431 = vmatpush1.msra.mxu0 %v2408
      %2432 = vmatprep.subr.mxu0 0.0
      %2433 = vmatpush1.msra.mxu0 %v2407
      %2434 = vmatprep.subr.mxu0 0.0
      %2435 = vmatpush1.msra.mxu0 %v2406
      %2436 = vmatprep.subr.mxu0 0.0
      %2437 = vmatpush1.msra.mxu0 %v2405
      %2438 = vmatprep.subr.mxu0 0.0
      %2439 = vmatpush1.msra.mxu0 %v2404
      %2440 = vmatprep.subr.mxu0 0.0
      %2441 = vmatpush1.msra.mxu0 %v2403
      %2442 = vmatprep.subr.mxu0 0.0
      %2443 = vmatpush1.msra.mxu0 %v2402
      %2444 = vmatprep.subr.mxu0 0.0
      %2445 = vmatpush1.msra.mxu0 %v2401
      %2446 = vmatprep.subr.mxu0 0.0
      %2447 = vmatpush1.msra.mxu0 %v2400
      %2448 = vmatprep.subr.mxu0 0.0
      %2449 = vmatpush2.msra.mxu0 0.0
      %2450 = vmatprep.subr.mxu0 0.0
      %2451 = vmatpush2.msra.mxu0 0.0
      %2452 = vmatprep.subr.mxu0 0.0
      %2453 = vmatpush2.msra.mxu0 0.0
      %2454 = vmatprep.subr.mxu0 0.0
      %2455 = vmatpush2.msra.mxu0 0.0
      %2456 = vmatprep.subr.mxu0 0.0
      %2457 = vmatpush2.msra.mxu0 0.0
      %2458 = vmatprep.subr.mxu0 0.0
      %2459 = vmatpush2.msra.mxu0 0.0
      %2460 = vmatprep.subr.mxu0 0.0
      %2461 = vmatpush2.msra.mxu0 0.0
      %2462 = vmatprep.subr.mxu0 0.0
      %2463 = vmatpush2.msra.mxu0 0.0
      %2464 = vmatprep.subr.mxu0 0.0
      %2465 = vmatpush2.msra.mxu0 0.0
      %2466 = vmatprep.subr.mxu0 0.0
      %2467 = vmatpush2.msra.mxu0 0.0
      %2468 = vmatprep.subr.mxu0 0.0
      %2469 = vmatpush2.msra.mxu0 0.0
      %2470 = vmatprep.subr.mxu0 0.0
      %2471 = vmatpush2.msra.mxu0 0.0
      %2472 = vmatprep.subr.mxu0 0.0
      %2473 = vmatpush2.msra.mxu0 0.0
      %2474 = vmatprep.subr.mxu0 0.0
      %2475 = vmatpush2.msra.mxu0 0.0
      %2476 = vmatprep.subr.mxu0 0.0
      %2477 = vmatpush2.msra.mxu0 0.0
      %2478 = vmatprep.subr.mxu0 0.0
      %2479 = vmatpush2.msra.mxu0 0.0
      %2480 = vmatprep.mubr.f32.mxu0 0.0
      %2481 = vmatmul.mubr.f32.gmra.mxu0 %v2399
      %v2482 = vpop.f32.mrf.mxu0
      %v2483 = vadd.f32 0.0, %v2482
      %v2484 = vpop.f32.mrf.mxu0
      %2485 = vdwg.mxu0
      %v2486 = vadd.f32 %v2281, %v2483
      %v2487 = vtanh.pop %v2486
      %v2488 = vsub.f32 1.0, %v2398
      %v2489 = vmul.f32 %v2488, %v2260
      %v2490 = vmul.f32 %v2398, %v2487
      %v2491 = vadd.f32 %v2489, %v2490
      %s2492 = scalar_lea.vmem [#allocation2], 6
      %2493 = vst [vmem:[%s2492] sm:$0x1] %v2491
      %s2494 = scalar_lea.vmem [#allocation2], 14
      %2495 = vst [vmem:[%s2494 - $0x1] sm:$0x2] %v2491
    $region65: #{tpu_custom_call.1} parent=1 // pred_fallthru
      _
    %p2496 = scmp.le.s32.totalorder %s90, 7
    // Predicated region
    $region66: #{tpu_custom_call.1} parent=1 // pred_check
      %p2497 = pneg %p2496
    $region67: #{tpu_custom_call.1} parent=1 // pred_check_branch
      %2499 = sbr.rel (%p2497) target = $region69
    $region68: #{tpu_custom_call.1} parent=1 // pred_region
      %s2500 = smul.u32 0, 16
      %s2501 = sadd.s32 %s2500, 7
      %s2502 = sld [smem:[#allocation4 + %s2501]]
      %s2503 = smul.u32 %s2501, 3
      %s2504 = sld [smem:[#allocation5 + %s2503]]
      %s2505 = scalar_lea.vmem [#allocation2], %s2504
      %v2506 = vld [vmem:[%s2505] sm:$0x1]
      %p2507 = scmp.gt.s32.totalorder %s2502, 0
      %s2508 = scalar_select %p2507, 1, 0
      %v2509 = vstv %s2508
      %vm2510 = vcmp.eq.s32.totalorder %v2509, 1
      %v2511 = vsel %vm2510, %v2506, 0.0
      %v2512 = vadd.f32 %v2511, 0.0
      %s2513 = sadd.s32 %s2503, 1
      %s2514 = sld [smem:[#allocation5 + %s2513]]
      %s2515 = scalar_lea.vmem [#allocation2], %s2514
      %v2516 = vld [vmem:[%s2515] sm:$0x1]
      %p2517 = scmp.gt.s32.totalorder %s2502, 1
      %s2518 = scalar_select %p2517, 1, 0
      %v2519 = vstv %s2518
      %vm2520 = vcmp.eq.s32.totalorder %v2519, 1
      %v2521 = vsel %vm2520, %v2516, 0.0
      %v2522 = vadd.f32 %v2512, %v2521
      %s2523 = sadd.s32 %s2503, 2
      %s2524 = sld [smem:[#allocation5 + %s2523]]
      %s2525 = scalar_lea.vmem [#allocation2], %s2524
      %v2526 = vld [vmem:[%s2525] sm:$0x1]
      %p2527 = scmp.gt.s32.totalorder %s2502, 2
      %s2528 = scalar_select %p2527, 1, 0
      %v2529 = vstv %s2528
      %vm2530 = vcmp.eq.s32.totalorder %v2529, 1
      %v2531 = vsel %vm2530, %v2526, 0.0
      %v2532 = vadd.f32 %v2522, %v2531
      %s2533 = smul.u32 0, 2
      %s2534 = sadd.s32 %s2533, 1
      %s2535 = smul.u32 %s2534, 8
      %s2536 = sadd.s32 %s2535, 7
      %s2537 = sld [smem:[#allocation4 + %s2536]]
      %s2538 = smul.u32 %s2536, 3
      %s2539 = sld [smem:[#allocation5 + %s2538]]
      %s2540 = sadd.s32 %s2539, 8
      %s2541 = scalar_lea.vmem [#allocation2], %s2540
      %v2542 = vld [vmem:[%s2541] sm:$0x1]
      %p2543 = scmp.gt.s32.totalorder %s2537, 0
      %s2544 = scalar_select %p2543, 1, 0
      %v2545 = vstv %s2544
      %vm2546 = vcmp.eq.s32.totalorder %v2545, 1
      %v2547 = vsel %vm2546, %v2542, 0.0
      %v2548 = vadd.f32 %v2547, 0.0
      %s2549 = sadd.s32 %s2538, 1
      %s2550 = sld [smem:[#allocation5 + %s2549]]
      %s2551 = sadd.s32 %s2550, 8
      %s2552 = scalar_lea.vmem [#allocation2], %s2551
      %v2553 = vld [vmem:[%s2552] sm:$0x1]
      %p2554 = scmp.gt.s32.totalorder %s2537, 1
      %s2555 = scalar_select %p2554, 1, 0
      %v2556 = vstv %s2555
      %vm2557 = vcmp.eq.s32.totalorder %v2556, 1
      %v2558 = vsel %vm2557, %v2553, 0.0
      %v2559 = vadd.f32 %v2548, %v2558
      %s2560 = sadd.s32 %s2538, 2
      %s2561 = sld [smem:[#allocation5 + %s2560]]
      %s2562 = sadd.s32 %s2561, 8
      %s2563 = scalar_lea.vmem [#allocation2], %s2562
      %v2564 = vld [vmem:[%s2563] sm:$0x1]
      %p2565 = scmp.gt.s32.totalorder %s2537, 2
      %s2566 = scalar_select %p2565, 1, 0
      %v2567 = vstv %s2566
      %vm2568 = vcmp.eq.s32.totalorder %v2567, 1
      %v2569 = vsel %vm2568, %v2564, 0.0
      %v2570 = vadd.f32 %v2559, %v2569
      %v2572 = vlaneseq
      %v2573 = vshrl.u32 %v2572, 7
      %v2574 = vsub.s32 0, %v2573
      %v2575 = vrot.slane %v2570, %v2574
      %vm2577 = vcmask 1040384
      %v2578 = vsel %vm2577, %v2532, %v2575
      %v2582 = vrot.slane %v206, 7
      %v2583 = vrot.slane %v208, 7
      %v2584 = vrot.slane %v283, 7
      %v2591 = vrot.slane %v212, 6
      %v2592 = vrot.slane %v214, 6
      %v2593 = vrot.slane %v288, 6
      %v2597 = vsel %vm2577, %v2582, %v2591
      %v2598 = vsel %vm2577, %v2583, %v2592
      %v2599 = vsel %vm2577, %v2584, %v2593
      %v2600 = vld [vmem:[#allocation12] sm:$0xff]
      %v2601 = vld [vmem:[#allocation12 + $0x8] sm:$0xff]
      %v2602 = vld [vmem:[#allocation12 + $0x10] sm:$0xff]
      %v2603 = vld [vmem:[#allocation12 + $0x18] sm:$0xff]
      %v2604 = vld [vmem:[#allocation12 + $0x20] sm:$0xff]
      %v2605 = vld [vmem:[#allocation12 + $0x28] sm:$0xff]
      %v2606 = vld [vmem:[#allocation12 + $0x30] sm:$0xff]
      %v2607 = vld [vmem:[#allocation12 + $0x38] sm:$0xff]
      %v2608 = vld [vmem:[#allocation12 + $0x40] sm:$0xff]
      %v2609 = vld [vmem:[#allocation12 + $0x48] sm:$0xff]
      %v2610 = vld [vmem:[#allocation12 + $0x50] sm:$0xff]
      %v2611 = vld [vmem:[#allocation12 + $0x58] sm:$0xff]
      %v2612 = vld [vmem:[#allocation12 + $0x60] sm:$0xff]
      %v2613 = vld [vmem:[#allocation12 + $0x68] sm:$0xff]
      %v2614 = vld [vmem:[#allocation12 + $0x70] sm:$0xff]
      %v2615 = vld [vmem:[#allocation12 + $0x78] sm:$0xff]
      %v2616 = vld [vmem:[#allocation12 + $0x80] sm:$0xff]
      %v2617 = vld [vmem:[#allocation12 + $0x88] sm:$0xff]
      %v2618 = vld [vmem:[#allocation12 + $0x90] sm:$0xff]
      %v2619 = vld [vmem:[#allocation12 + $0x98] sm:$0xff]
      %v2620 = vld [vmem:[#allocation12 + $0xa0] sm:$0xff]
      %v2621 = vld [vmem:[#allocation12 + $0xa8] sm:$0xff]
      %v2622 = vld [vmem:[#allocation12 + $0xb0] sm:$0xff]
      %v2623 = vld [vmem:[#allocation12 + $0xb8] sm:$0xff]
      %v2624 = vld [vmem:[#allocation12 + $0xc0] sm:$0xff]
      %v2625 = vld [vmem:[#allocation12 + $0xc8] sm:$0xff]
      %v2626 = vld [vmem:[#allocation12 + $0xd0] sm:$0xff]
      %v2627 = vld [vmem:[#allocation12 + $0xd8] sm:$0xff]
      %v2628 = vld [vmem:[#allocation12 + $0xe0] sm:$0xff]
      %v2629 = vld [vmem:[#allocation12 + $0xe8] sm:$0xff]
      %v2630 = vld [vmem:[#allocation12 + $0xf0] sm:$0xff]
      %v2631 = vld [vmem:[#allocation12 + $0xf8] sm:$0xff]
      %2632 = vmatprep.subr.mxu0 %v2631
      %2633 = vmatpush1.msra.mxu0 %v2630
      %2634 = vmatprep.subr.mxu0 %v2629
      %2635 = vmatpush1.msra.mxu0 %v2628
      %2636 = vmatprep.subr.mxu0 %v2627
      %2637 = vmatpush1.msra.mxu0 %v2626
      %2638 = vmatprep.subr.mxu0 %v2625
      %2639 = vmatpush1.msra.mxu0 %v2624
      %2640 = vmatprep.subr.mxu0 %v2623
      %2641 = vmatpush1.msra.mxu0 %v2622
      %2642 = vmatprep.subr.mxu0 %v2621
      %2643 = vmatpush1.msra.mxu0 %v2620
      %2644 = vmatprep.subr.mxu0 %v2619
      %2645 = vmatpush1.msra.mxu0 %v2618
      %2646 = vmatprep.subr.mxu0 %v2617
      %2647 = vmatpush1.msra.mxu0 %v2616
      %2648 = vmatprep.subr.mxu0 %v2615
      %2649 = vmatpush1.msra.mxu0 %v2614
      %2650 = vmatprep.subr.mxu0 %v2613
      %2651 = vmatpush1.msra.mxu0 %v2612
      %2652 = vmatprep.subr.mxu0 %v2611
      %2653 = vmatpush1.msra.mxu0 %v2610
      %2654 = vmatprep.subr.mxu0 %v2609
      %2655 = vmatpush1.msra.mxu0 %v2608
      %2656 = vmatprep.subr.mxu0 %v2607
      %2657 = vmatpush1.msra.mxu0 %v2606
      %2658 = vmatprep.subr.mxu0 %v2605
      %2659 = vmatpush1.msra.mxu0 %v2604
      %2660 = vmatprep.subr.mxu0 %v2603
      %2661 = vmatpush1.msra.mxu0 %v2602
      %2662 = vmatprep.subr.mxu0 %v2601
      %2663 = vmatpush1.msra.mxu0 %v2600
      %2664 = vmatprep.subr.mxu0 0.0
      %2665 = vmatpush2.msra.mxu0 0.0
      %2666 = vmatprep.subr.mxu0 0.0
      %2667 = vmatpush2.msra.mxu0 0.0
      %2668 = vmatprep.subr.mxu0 0.0
      %2669 = vmatpush2.msra.mxu0 0.0
      %2670 = vmatprep.subr.mxu0 0.0
      %2671 = vmatpush2.msra.mxu0 0.0
      %2672 = vmatprep.subr.mxu0 0.0
      %2673 = vmatpush2.msra.mxu0 0.0
      %2674 = vmatprep.subr.mxu0 0.0
      %2675 = vmatpush2.msra.mxu0 0.0
      %2676 = vmatprep.subr.mxu0 0.0
      %2677 = vmatpush2.msra.mxu0 0.0
      %2678 = vmatprep.subr.mxu0 0.0
      %2679 = vmatpush2.msra.mxu0 0.0
      %2680 = vmatprep.subr.mxu0 0.0
      %2681 = vmatpush2.msra.mxu0 0.0
      %2682 = vmatprep.subr.mxu0 0.0
      %2683 = vmatpush2.msra.mxu0 0.0
      %2684 = vmatprep.subr.mxu0 0.0
      %2685 = vmatpush2.msra.mxu0 0.0
      %2686 = vmatprep.subr.mxu0 0.0
      %2687 = vmatpush2.msra.mxu0 0.0
      %2688 = vmatprep.subr.mxu0 0.0
      %2689 = vmatpush2.msra.mxu0 0.0
      %2690 = vmatprep.subr.mxu0 0.0
      %2691 = vmatpush2.msra.mxu0 0.0
      %2692 = vmatprep.subr.mxu0 0.0
      %2693 = vmatpush2.msra.mxu0 0.0
      %2694 = vmatprep.subr.mxu0 0.0
      %2695 = vmatpush2.msra.mxu0 0.0
      %2696 = vmatprep.mubr.f32.mxu0 0.0
      %2697 = vmatmul.mubr.f32.gmra.mxu0 %v2578
      %v2698 = vpop.f32.mrf.mxu0
      %v2699 = vadd.f32 0.0, %v2698
      %v2700 = vpop.f32.mrf.mxu0
      %v2701 = vadd.f32 0.0, %v2700
      %2702 = vdwg.mxu0
      %v2703 = vadd.f32 %v2597, %v2699
      %v2704 = vadd.f32 %v2598, %v2701
      %v2705 = vxor.u32 %v2703, 2147483648
      %v2706 = vxor.u32 %v2704, 2147483648
      %v2707 = vmul.f32 %v2705, 1.442695
      %v2708 = vpow.pop %v2707
      %v2709 = vmul.f32 %v2706, 1.442695
      %v2710 = vpow.pop %v2709
      %v2711 = vadd.f32 %v2708, 1.0
      %v2712 = vadd.f32 %v2710, 1.0
      %v2713 = vrcp.pop %v2711
      %v2714 = vmul.f32 1.0, %v2713
      %v2715 = vrcp.pop %v2712
      %v2716 = vmul.f32 1.0, %v2715
      %v2717 = vmul.f32 %v2714, %v2578
      %v2718 = vld [vmem:[#allocation13] sm:$0xff]
      %v2719 = vld [vmem:[#allocation13 + $0x8] sm:$0xff]
      %v2720 = vld [vmem:[#allocation13 + $0x10] sm:$0xff]
      %v2721 = vld [vmem:[#allocation13 + $0x18] sm:$0xff]
      %v2722 = vld [vmem:[#allocation13 + $0x20] sm:$0xff]
      %v2723 = vld [vmem:[#allocation13 + $0x28] sm:$0xff]
      %v2724 = vld [vmem:[#allocation13 + $0x30] sm:$0xff]
      %v2725 = vld [vmem:[#allocation13 + $0x38] sm:$0xff]
      %v2726 = vld [vmem:[#allocation13 + $0x40] sm:$0xff]
      %v2727 = vld [vmem:[#allocation13 + $0x48] sm:$0xff]
      %v2728 = vld [vmem:[#allocation13 + $0x50] sm:$0xff]
      %v2729 = vld [vmem:[#allocation13 + $0x58] sm:$0xff]
      %v2730 = vld [vmem:[#allocation13 + $0x60] sm:$0xff]
      %v2731 = vld [vmem:[#allocation13 + $0x68] sm:$0xff]
      %v2732 = vld [vmem:[#allocation13 + $0x70] sm:$0xff]
      %v2733 = vld [vmem:[#allocation13 + $0x78] sm:$0xff]
      %2734 = vmatprep.subr.mxu0 0.0
      %2735 = vmatpush1.msra.mxu0 %v2733
      %2736 = vmatprep.subr.mxu0 0.0
      %2737 = vmatpush1.msra.mxu0 %v2732
      %2738 = vmatprep.subr.mxu0 0.0
      %2739 = vmatpush1.msra.mxu0 %v2731
      %2740 = vmatprep.subr.mxu0 0.0
      %2741 = vmatpush1.msra.mxu0 %v2730
      %2742 = vmatprep.subr.mxu0 0.0
      %2743 = vmatpush1.msra.mxu0 %v2729
      %2744 = vmatprep.subr.mxu0 0.0
      %2745 = vmatpush1.msra.mxu0 %v2728
      %2746 = vmatprep.subr.mxu0 0.0
      %2747 = vmatpush1.msra.mxu0 %v2727
      %2748 = vmatprep.subr.mxu0 0.0
      %2749 = vmatpush1.msra.mxu0 %v2726
      %2750 = vmatprep.subr.mxu0 0.0
      %2751 = vmatpush1.msra.mxu0 %v2725
      %2752 = vmatprep.subr.mxu0 0.0
      %2753 = vmatpush1.msra.mxu0 %v2724
      %2754 = vmatprep.subr.mxu0 0.0
      %2755 = vmatpush1.msra.mxu0 %v2723
      %2756 = vmatprep.subr.mxu0 0.0
      %2757 = vmatpush1.msra.mxu0 %v2722
      %2758 = vmatprep.subr.mxu0 0.0
      %2759 = vmatpush1.msra.mxu0 %v2721
      %2760 = vmatprep.subr.mxu0 0.0
      %2761 = vmatpush1.msra.mxu0 %v2720
      %2762 = vmatprep.subr.mxu0 0.0
      %2763 = vmatpush1.msra.mxu0 %v2719
      %2764 = vmatprep.subr.mxu0 0.0
      %2765 = vmatpush1.msra.mxu0 %v2718
      %2766 = vmatprep.subr.mxu0 0.0
      %2767 = vmatpush2.msra.mxu0 0.0
      %2768 = vmatprep.subr.mxu0 0.0
      %2769 = vmatpush2.msra.mxu0 0.0
      %2770 = vmatprep.subr.mxu0 0.0
      %2771 = vmatpush2.msra.mxu0 0.0
      %2772 = vmatprep.subr.mxu0 0.0
      %2773 = vmatpush2.msra.mxu0 0.0
      %2774 = vmatprep.subr.mxu0 0.0
      %2775 = vmatpush2.msra.mxu0 0.0
      %2776 = vmatprep.subr.mxu0 0.0
      %2777 = vmatpush2.msra.mxu0 0.0
      %2778 = vmatprep.subr.mxu0 0.0
      %2779 = vmatpush2.msra.mxu0 0.0
      %2780 = vmatprep.subr.mxu0 0.0
      %2781 = vmatpush2.msra.mxu0 0.0
      %2782 = vmatprep.subr.mxu0 0.0
      %2783 = vmatpush2.msra.mxu0 0.0
      %2784 = vmatprep.subr.mxu0 0.0
      %2785 = vmatpush2.msra.mxu0 0.0
      %2786 = vmatprep.subr.mxu0 0.0
      %2787 = vmatpush2.msra.mxu0 0.0
      %2788 = vmatprep.subr.mxu0 0.0
      %2789 = vmatpush2.msra.mxu0 0.0
      %2790 = vmatprep.subr.mxu0 0.0
      %2791 = vmatpush2.msra.mxu0 0.0
      %2792 = vmatprep.subr.mxu0 0.0
      %2793 = vmatpush2.msra.mxu0 0.0
      %2794 = vmatprep.subr.mxu0 0.0
      %2795 = vmatpush2.msra.mxu0 0.0
      %2796 = vmatprep.subr.mxu0 0.0
      %2797 = vmatpush2.msra.mxu0 0.0
      %2798 = vmatprep.mubr.f32.mxu0 0.0
      %2799 = vmatmul.mubr.f32.gmra.mxu0 %v2717
      %v2800 = vpop.f32.mrf.mxu0
      %v2801 = vadd.f32 0.0, %v2800
      %v2802 = vpop.f32.mrf.mxu0
      %2803 = vdwg.mxu0
      %v2804 = vadd.f32 %v2599, %v2801
      %v2805 = vtanh.pop %v2804
      %v2806 = vsub.f32 1.0, %v2716
      %v2807 = vmul.f32 %v2806, %v2578
      %v2808 = vmul.f32 %v2716, %v2805
      %v2809 = vadd.f32 %v2807, %v2808
      %s2810 = scalar_lea.vmem [#allocation2], 7
      %2811 = vst [vmem:[%s2810] sm:$0x1] %v2809
      %s2812 = scalar_lea.vmem [#allocation2], 15
      %2813 = vst [vmem:[%s2812 - $0x1] sm:$0x2] %v2809
    $region69: #{tpu_custom_call.1} parent=1 // pred_fallthru
      _
    %s2814 = scalar_lea.vmem [#allocation2], 7
    %v2815 = vld [vmem:[%s2814] sm:$0x1]
    %2816 = vst [vmem:[#allocation15] sm:$0x1] %v2815
    %s2817 = scalar_lea.vmem [#allocation2], 15
    %v2818 = vld [vmem:[%s2817] sm:$0x1]
    %s2819 = scalar_lea.vmem [#allocation15], 1
    %2820 = vst [vmem:[%s2819] sm:$0x1] %v2818
    // Predicated region
    $region70: #{tpu_custom_call.1} parent=1 // pred_check
      _
    $region71: #{tpu_custom_call.1} parent=1 // pred_check_branch
      %2822 = sbr.rel (0) target = $region73
    $region72: #{tpu_custom_call.1} parent=1 // pred_region
      %s2824 = ssub.s32 32, 32
      %2825 = vsyncadd [#allocation9], %s2824
      %s2826 = sshll.u32 [#allocation15], 4
      %s2827 = int_to_ptr.vmem [resolvable:$true] %s2826
      %2832 = dma.vmem_to_hbm [thread:$0]  %s2827, 32, %s8, [#allocation9], 16, 16, 1
    $region73: #{tpu_custom_call.1} parent=1 // pred_fallthru
      _
    // Predicated region
    $region74: #{tpu_custom_call.1} parent=1 // pred_check
      _
    $region75: #{tpu_custom_call.1} parent=1 // pred_check_branch
      %2834 = sbr.rel (0) target = $region77
    $region76: #{tpu_custom_call.1} parent=1 // pred_region
      %2835 = dma.done [#allocation9], 32
    $region77: #{tpu_custom_call.1} parent=1 // pred_fallthru
      _
    %2836 = vsyncpa [#allocation8], 1
    %2837 = vsyncpa [#allocation11], 1
    %2838 = vsyncpa [#allocation14], 1
    %2839 = vsyncpa [#allocation9], 1

</llo_original>
